<compile_context>
chip_gen: v7x
topology: tpu7x:2x2x1
jax: 0.10.0
libtpu: 0.0.40
codegen_flags: <defaults>
</compile_context>

<pallas_src>
import jax
import jax.numpy as jnp
from jax import lax
from jax.experimental import pallas as pl
from jax.experimental.pallas import tpu as pltpu

EPS = 1e-5
LANE = 128   # pad output-channel dims to a multiple of this (lane-dense stores)

_TAPS = [(ky, kx) for ky in range(3) for kx in range(3)]


def _ceil_to(n, m):
    return ((n + m - 1) // m) * m


def _pick_band(h):
    """Largest divisor of h that is <= 8 (output-row band size)."""
    for r in (8, 7, 6, 5, 4, 3, 2, 1):
        if h % r == 0:
            return r
    return 1


def _cparams(est_bytes):
    """'parallel' grid axis + explicit scoped-VMEM budget (2x estimated
    per-step footprint, floored at 32 MiB, capped at v7x's 64 MiB)."""
    limit = int(min(max(32 * 2**20, 2 * est_bytes), 64 * 2**20))
    return pltpu.CompilerParams(dimension_semantics=("parallel",),
                                vmem_limit_bytes=limit)


# ----------------------------- Pallas kernels ------------------------------


def _make_conv1_packed_kernel(Ho, Wo, c_p, proj):
    """conv1 for tiny cin: taps packed into the contraction dim -> one MXU
    matmul per image.  The 1x1 projection shortcut reuses the same patch block
    (its weight is zero except at the centre-tap rows)."""

    def kernel(*refs):
        if proj:
            (p_ref, w_ref, wsc_ref, y_ref, ysc_ref,
             s_ref, q_ref, ssc_ref, qsc_ref) = refs
        else:
            p_ref, w_ref, y_ref, s_ref, q_ref = refs

        pat = p_ref[0]                                    # (Ho*Wo, Kp) bf16
        acc = jnp.dot(pat, w_ref[...], preferred_element_type=jnp.float32)
        y_ref[0] = acc.reshape(Ho, Wo, c_p).astype(y_ref.dtype)
        s_ref[0] = jnp.sum(acc, axis=0, keepdims=True)
        q_ref[0] = jnp.sum(acc * acc, axis=0, keepdims=True)
        if proj:
            acc_sc = jnp.dot(pat, wsc_ref[...],
                             preferred_element_type=jnp.float32)
            ysc_ref[0] = acc_sc.reshape(Ho, Wo, c_p).astype(ysc_ref.dtype)
            ssc_ref[0] = jnp.sum(acc_sc, axis=0, keepdims=True)
            qsc_ref[0] = jnp.sum(acc_sc * acc_sc, axis=0, keepdims=True)

    return kernel


def _make_conv1_shift_kernel(stride, Ho, Wo, cin_p, c_p, proj, RB):
    """conv1 for larger cin: 9 shifted bf16 matmuls over the polyphase slabs
    of the zero-padded input, computed in RB-row output bands so the f32
    accumulator stays small.  The centre tap equals x[:, ::s, ::s, :] and
    doubles as the 1x1 projection shortcut (no extra HBM reads)."""
    RBW = RB * Wo
    nb = Ho // RB

    def kernel(*refs):
        if proj:
            (xq_ref, w_ref, wsc_ref, y_ref, ysc_ref,
             s_ref, q_ref, ssc_ref, qsc_ref) = refs
        else:
            xq_ref, w_ref, y_ref, s_ref, q_ref = refs

        def band(r, carry):
            r0 = pl.multiple_of(r * RB, RB)
            acc = jnp.zeros((RBW, c_p), jnp.float32)
            acc_sc = None
            for k, (ky, kx) in enumerate(_TAPS):
                phase = (ky % stride) * stride + (kx % stride)
                dy, dx = ky // stride, kx // stride
                xs = xq_ref[phase, pl.ds(r0 + dy, RB), dx:dx + Wo, :]
                xs = xs.reshape(RBW, cin_p)
                acc = acc + jnp.dot(xs, w_ref[k],
                                    preferred_element_type=jnp.float32)
                if proj and (ky, kx) == (1, 1):
                    acc_sc = jnp.dot(xs, wsc_ref[...],
                                     preferred_element_type=jnp.float32)
            y_ref[0, pl.ds(r0, RB), :, :] = (
                acc.reshape(RB, Wo, c_p).astype(y_ref.dtype))
            if proj:
                s_a, q_a, ssc_a, qsc_a = carry
                ysc_ref[0, pl.ds(r0, RB), :, :] = (
                    acc_sc.reshape(RB, Wo, c_p).astype(ysc_ref.dtype))
                return (s_a + jnp.sum(acc, axis=0, keepdims=True),
                        q_a + jnp.sum(acc * acc, axis=0, keepdims=True),
                        ssc_a + jnp.sum(acc_sc, axis=0, keepdims=True),
                        qsc_a + jnp.sum(acc_sc * acc_sc, axis=0, keepdims=True))
            s_a, q_a = carry
            return (s_a + jnp.sum(acc, axis=0, keepdims=True),
                    q_a + jnp.sum(acc * acc, axis=0, keepdims=True))

        zero = jnp.zeros((1, c_p), jnp.float32)
        init = (zero,) * (4 if proj else 2)
        tot = lax.fori_loop(0, nb, band, init, unroll=nb <= 4)
        s_ref[0], q_ref[0] = tot[0], tot[1]
        if proj:
            ssc_ref[0], qsc_ref[0] = tot[2], tot[3]

    return kernel


def _make_conv2_kernel(Ho, Wo, c_p, RB):
    """Fused BN1-apply + ReLU + 3x3 stride-1 conv + per-image BN2 stats.

    conv1's output never round-trips HBM at 9x expansion: it is re-padded with
    a 1-pixel halo into a bf16 VMEM scratch.  Only the 4 halo strips are
    (re)zeroed each step (the interior is overwritten), and the conv runs as
    9 shifted bf16 matmuls per RB-row band with f32 accumulation."""
    RBW = RB * Wo
    nb = Ho // RB

    def kernel(y1_ref, s1_ref, t1_ref, w_ref, y2_ref, s_ref, q_ref, apad_ref):
        a1 = jnp.maximum(
            y1_ref[0].astype(jnp.float32) * s1_ref[...] + t1_ref[...], 0.0)
        zrow = jnp.zeros((1, Wo + 2, c_p), jnp.bfloat16)
        zcol = jnp.zeros((Ho + 2, 1, c_p), jnp.bfloat16)
        apad_ref[0:1, :, :] = zrow
        apad_ref[Ho + 1:Ho + 2, :, :] = zrow
        apad_ref[:, 0:1, :] = zcol
        apad_ref[:, Wo + 1:Wo + 2, :] = zcol
        apad_ref[1:Ho + 1, 1:Wo + 1, :] = a1.astype(jnp.bfloat16)

        def band(r, carry):
            s_a, q_a = carry
            r0 = pl.multiple_of(r * RB, RB)
            acc = jnp.zeros((RBW, c_p), jnp.float32)
            for k, (ky, kx) in enumerate(_TAPS):
                xs = apad_ref[pl.ds(r0 + ky, RB), kx:kx + Wo, :]
                acc = acc + jnp.dot(xs.reshape(RBW, c_p), w_ref[k],
                                    preferred_element_type=jnp.float32)
            y2_ref[0, pl.ds(r0, RB), :, :] = (
                acc.reshape(RB, Wo, c_p).astype(y2_ref.dtype))
            return (s_a + jnp.sum(acc, axis=0, keepdims=True),
                    q_a + jnp.sum(acc * acc, axis=0, keepdims=True))

        zero = jnp.zeros((1, c_p), jnp.float32)
        s_tot, q_tot = lax.fori_loop(0, nb, band, (zero, zero),
                                     unroll=nb <= 4)
        s_ref[0] = s_tot
        q_ref[0] = q_tot

    return kernel


def _final_proj_kernel(y2_ref, ysc_ref, s2_ref, t2_ref, ssc_ref, tsc_ref,
                       o_ref):
    """BN2 apply + projection-shortcut BN apply + add + ReLU (elementwise)."""
    o_ref[...] = jnp.maximum(
        y2_ref[...].astype(jnp.float32) * s2_ref[...] + t2_ref[...]
        + ysc_ref[...].astype(jnp.float32) * ssc_ref[...] + tsc_ref[...], 0.0)


def _final_id_kernel(y2_ref, x_ref, s2_ref, t2_ref, o_ref):
    """BN2 apply + identity-shortcut add + ReLU (elementwise)."""
    o_ref[...] = jnp.maximum(
        y2_ref[...].astype(jnp.float32) * s2_ref[...] + t2_ref[...]
        + x_ref[...], 0.0)


# ------------------------------- JAX glue -----------------------------------


def _fold_bn(sum_, ssq, count, gamma, beta):
    """Fold batch statistics into per-channel scale/shift (tiny O(C) work).
    NOTE: single-pass E[x^2]-E[x]^2 in f32; adequate at these scales, a
    two-pass / Welford variant would be safer for very large N*H*W."""
    mean = sum_ / count
    var = jnp.maximum(ssq / count - mean * mean, 0.0)
    scale = gamma * lax.rsqrt(var + EPS)
    shift = beta - mean * scale
    return scale, shift


def basic_block_forward(x_nchw, params, stride):
    x = jnp.transpose(x_nchw, (0, 2, 3, 1)).astype(jnp.float32)   # NCHW->NHWC
    N, H, W, cin = x.shape
    planes = params['w1'].shape[-1]
    proj = (stride != 1) or (cin != planes)

    s = stride
    c_p = _ceil_to(planes, LANE)
    Ho = (H - 1) // s + 1
    Wo = (W - 1) // s + 1
    M = N * Ho * Wo
    RB = _pick_band(Ho)
    blk = Ho * Wo * c_p

    pad_c = lambda a: jnp.pad(a, ((0, 0), (0, c_p - planes)))
    g1, b1, g2, b2 = map(pad_c, (params['g1'], params['b1'],
                                 params['g2'], params['b2']))
    if proj:
        gsc, bsc = pad_c(params['gsc']), pad_c(params['bsc'])

    # conv operands are staged in bf16 (f32 kept only for the identity add).
    x_bf = x.astype(jnp.bfloat16)

    y4d_spec = pl.BlockSpec((1, Ho, Wo, c_p), lambda n: (n, 0, 0, 0))
    stat_out = pl.BlockSpec((1, 1, c_p), lambda n: (n, 0, 0))
    chan_spec = pl.BlockSpec((1, c_p), lambda n: (0, 0))
    stats = jax.ShapeDtypeStruct((N, 1, c_p), jnp.float32)
    y4d = jax.ShapeDtypeStruct((N, Ho, Wo, c_p), jnp.bfloat16)

    # ---- pass 1: conv1 (+ optional 1x1 projection shortcut) + BN1 stats ----
    packed = 9 * cin <= LANE
    n_out = 2 if proj else 1
    if packed:
        # Tiny cin: pack the 9 taps into the contraction dim (K = 9*cin padded
        # to one lane group) -> one MXU matmul per image, no cin->128 padding.
        Kp = LANE
        xsp = jnp.pad(x_bf, ((0, 0), (1, s * Ho + 1 - H),
                             (1, s * Wo + 1 - W), (0, 0)))
        pats = [xsp[:, ky:ky + s * (Ho - 1) + 1:s,
                    kx:kx + s * (Wo - 1) + 1:s, :] for (ky, kx) in _TAPS]
        patches = jnp.stack(pats, axis=3).reshape(N, Ho * Wo, 9 * cin)
        patches = jnp.pad(patches, ((0, 0), (0, 0), (0, Kp - 9 * cin)))
        w1p = jnp.pad(params['w1'].reshape(9 * cin, planes),
                      ((0, Kp - 9 * cin), (0, c_p - planes))
                      ).astype(jnp.bfloat16)
        pat_spec = pl.BlockSpec((1, Ho * Wo, Kp), lambda n: (n, 0, 0))
        w_spec = pl.BlockSpec((Kp, c_p), lambda n: (0, 0))
        est1 = (2 * Ho * Wo * Kp * 2 + n_out * Kp * c_p * 2
                + n_out * (2 * blk * 2 + blk * 4))
        k1 = _make_conv1_packed_kernel(Ho, Wo, c_p, proj)
        if proj:
            wscp = jnp.zeros((Kp, c_p), jnp.float32)
            wscp = wscp.at[4 * cin:5 * cin, :planes].set(
                params['wsc'].reshape(cin, planes))
            y1, ysc, s1p, q1p, sscp, qscp = pl.pallas_call(
                k1, grid=(N,),
                in_specs=[pat_spec, w_spec, w_spec],
                out_specs=(y4d_spec, y4d_spec, stat_out, stat_out,
                           stat_out, stat_out),
                out_shape=(y4d, y4d, stats, stats, stats, stats),
                compiler_params=_cparams(est1),
            )(patches, w1p, wscp.astype(jnp.bfloat16))
        else:
            y1, s1p, q1p = pl.pallas_call(
                k1, grid=(N,),
                in_specs=[pat_spec, w_spec],
                out_specs=(y4d_spec, stat_out, stat_out),
                out_shape=(y4d, stats, stats),
                compiler_params=_cparams(est1),
            )(patches, w1p)
    else:
        # Larger cin: polyphase shift-and-matmul (no im2col HBM blowup).
        cin_p = _ceil_to(cin, LANE)
        xpb = jnp.pad(x_bf, ((0, 0), (0, 0), (0, 0), (0, cin_p - cin)))
        xsp = jnp.pad(xpb, ((0, 0), (1, s * Ho + 1 - H),
                            (1, s * Wo + 1 - W), (0, 0)))
        xq = jnp.stack([xsp[:, a::s, b::s, :]
                        for a in range(s) for b in range(s)], axis=1)
        _, _, Hs, Ws, _ = xq.shape
        xq = xq.reshape(N * s * s, Hs, Ws, cin_p)
        w1 = jnp.pad(params['w1'],
                     ((0, 0), (0, 0), (0, cin_p - cin), (0, c_p - planes)))
        w1 = w1.reshape(9, cin_p, c_p).astype(jnp.bfloat16)
        xq_spec = pl.BlockSpec((s * s, Hs, Ws, cin_p), lambda n: (n, 0, 0, 0))
        w1_spec = pl.BlockSpec((9, cin_p, c_p), lambda n: (0, 0, 0))
        est1 = (2 * s * s * Hs * Ws * cin_p * 2
                + (9 + (1 if proj else 0)) * cin_p * c_p * 2
                + n_out * (2 * blk * 2 + RB * Wo * c_p * 4))
        k1 = _make_conv1_shift_kernel(s, Ho, Wo, cin_p, c_p, proj, RB)
        if proj:
            wsc = jnp.pad(params['wsc'],
                          ((0, 0), (0, 0), (0, cin_p - cin), (0, c_p - planes)))
            wsc = wsc.reshape(cin_p, c_p).astype(jnp.bfloat16)
            y1, ysc, s1p, q1p, sscp, qscp = pl.pallas_call(
                k1, grid=(N,),
                in_specs=[xq_spec, w1_spec,
                          pl.BlockSpec((cin_p, c_p), lambda n: (0, 0))],
                out_specs=(y4d_spec, y4d_spec, stat_out, stat_out,
                           stat_out, stat_out),
                out_shape=(y4d, y4d, stats, stats, stats, stats),
                compiler_params=_cparams(est1),
            )(xq, w1, wsc)
        else:
            y1, s1p, q1p = pl.pallas_call(
                k1, grid=(N,),
                in_specs=[xq_spec, w1_spec],
                out_specs=(y4d_spec, stat_out, stat_out),
                out_shape=(y4d, stats, stats),
                compiler_params=_cparams(est1),
            )(xq, w1)

    s1v, t1v = _fold_bn(jnp.sum(s1p, axis=0), jnp.sum(q1p, axis=0), M, g1, b1)

    # ---- pass 2: fused BN1+ReLU -> conv2 + BN2 stats ----
    w2 = jnp.pad(params['w2'],
                 ((0, 0), (0, 0), (0, c_p - planes), (0, c_p - planes)))
    w2 = w2.reshape(9, c_p, c_p).astype(jnp.bfloat16)
    est2 = (2 * blk * 2 + 9 * c_p * c_p * 2 + 2 * blk * 2
            + (Ho + 2) * (Wo + 2) * c_p * 2 + blk * 4 + RB * Wo * c_p * 4)
    y2, s2p, q2p = pl.pallas_call(
        _make_conv2_kernel(Ho, Wo, c_p, RB),
        grid=(N,),
        in_specs=[y4d_spec, chan_spec, chan_spec,
                  pl.BlockSpec((9, c_p, c_p), lambda n: (0, 0, 0))],
        out_specs=(y4d_spec, stat_out, stat_out),
        out_shape=(y4d, stats, stats),
        scratch_shapes=[pltpu.VMEM((Ho + 2, Wo + 2, c_p), jnp.bfloat16)],
        compiler_params=_cparams(est2),
    )(y1, s1v, t1v, w2)

    s2v, t2v = _fold_bn(jnp.sum(s2p, axis=0), jnp.sum(q2p, axis=0), M, g2, b2)

    # ---- pass 3: BN2 apply + shortcut + ReLU (mem-bound, fixed row tile) ----
    TM = min(512, _ceil_to(M, 8))
    grid3 = (pl.cdiv(M, TM),)
    row_spec = pl.BlockSpec((TM, c_p), lambda i: (i, 0))
    y2f = y2.reshape(M, c_p)
    est3 = 2 * TM * c_p * (2 + 4 + 4)
    if proj:
        sscv, tscv = _fold_bn(jnp.sum(sscp, axis=0), jnp.sum(qscp, axis=0),
                              M, gsc, bsc)
        out = pl.pallas_call(
            _final_proj_kernel, grid=grid3,
            in_specs=[row_spec, row_spec, chan_spec, chan_spec,
                      chan_spec, chan_spec],
            out_specs=row_spec,
            out_shape=jax.ShapeDtypeStruct((M, c_p), jnp.float32),
            compiler_params=_cparams(est3),
        )(y2f, ysc.reshape(M, c_p), s2v, t2v, sscv, tscv)
    else:
        # identity shortcut stays f32 for accuracy
        xid = jnp.pad(x, ((0, 0), (0, 0), (0, 0), (0, c_p - cin))).reshape(M, c_p)
        out = pl.pallas_call(
            _final_id_kernel, grid=grid3,
            in_specs=[row_spec, row_spec, chan_spec, chan_spec],
            out_specs=row_spec,
            out_shape=jax.ShapeDtypeStruct((M, c_p), jnp.float32),
            compiler_params=_cparams(est3),
        )(y2f, xid, s2v, t2v)

    out = out.reshape(N, Ho, Wo, c_p)[..., :planes]
    return jnp.transpose(out, (0, 3, 1, 2))                       # NHWC->NCHW


# ------------------------------ test helpers --------------------------------


def init_params(key, in_planes, planes, stride):
    ks = jax.random.split(key, 9)
    params = {
        'w1': 0.1 * jax.random.normal(ks[0], (3, 3, in_planes, planes), jnp.float32),
        'g1': 1.0 + 0.1 * jax.random.normal(ks[1], (1, planes), jnp.float32),
        'b1': 0.1 * jax.random.normal(ks[2], (1, planes), jnp.float32),
        'w2': 0.1 * jax.random.normal(ks[3], (3, 3, planes, planes), jnp.float32),
        'g2': 1.0 + 0.1 * jax.random.normal(ks[4], (1, planes), jnp.float32),
        'b2': 0.1 * jax.random.normal(ks[5], (1, planes), jnp.float32),
    }
    if stride != 1 or in_planes != planes:
        params['wsc'] = 0.1 * jax.random.normal(ks[6], (1, 1, in_planes, planes), jnp.float32)
        params['gsc'] = 1.0 + 0.1 * jax.random.normal(ks[7], (1, planes), jnp.float32)
        params['bsc'] = 0.1 * jax.random.normal(ks[8], (1, planes), jnp.float32)
    return params


# Pure-JAX f32 reference (correctness check only).  The Pallas kernels run the
# matmuls with bf16 MXU operands and store intermediates in bf16, so the
# tolerances below are widened accordingly.
def ref_basic_block(x_nchw, params, stride):
    x = jnp.transpose(x_nchw, (0, 2, 3, 1)).astype(jnp.float32)

    def conv(z, w, s, pad):
        return lax.conv_general_dilated(
            z, w, (s, s), [(pad, pad), (pad, pad)],
            dimension_numbers=('NHWC', 'HWIO', 'NHWC'),
            precision=lax.Precision.HIGHEST)

    def bn(y, g, b):
        m = jnp.mean(y, axis=(0, 1, 2), keepdims=True)
        v = jnp.mean((y - m) ** 2, axis=(0, 1, 2), keepdims=True)
        return (y - m) * lax.rsqrt(v + EPS) * g.reshape(1, 1, 1, -1) + b.reshape(1, 1, 1, -1)

    out = jax.nn.relu(bn(conv(x, params['w1'], stride, 1), params['g1'], params['b1']))
    out = bn(conv(out, params['w2'], 1, 1), params['g2'], params['b2'])
    if 'wsc' in params:
        sc = bn(conv(x, params['wsc'], stride, 0), params['gsc'], params['bsc'])
    else:
        sc = x
    out = jax.nn.relu(out + sc)
    return jnp.transpose(out, (0, 3, 1, 2))


if __name__ == "__main__":
    key = jax.random.PRNGKey(0)
    fwd = jax.jit(basic_block_forward, static_argnames="stride")

    # (in_planes, planes, stride, H=W): covers packed-cin vs shift conv1,
    # projection vs identity shortcut, stride 1 vs 2, single vs multi row band.
    cases = [(4, 8, 2, 16), (8, 8, 1, 16), (16, 16, 1, 16), (16, 32, 2, 16)]
    for i, (cin, pls, st, hw) in enumerate(cases):
        kx, kp = jax.random.split(jax.random.fold_in(key, i))
        x = jax.random.normal(kx, (2, cin, hw, hw), jnp.float32)        # NCHW
        p = init_params(kp, cin, pls, st)
        out = jax.block_until_ready(fwd(x, p, stride=st))
        ref = ref_basic_block(x, p, st)
        assert out.shape == ref.shape, (i, out.shape, ref.shape)
        # bf16 MXU operands + bf16 intermediate storage -> widened tolerance.
        assert jnp.allclose(out, ref, atol=4e-2, rtol=4e-2), \
            (i, float(jnp.max(jnp.abs(out - ref))))

    print("KERNEL_OK")
</pallas_src>

<mosaic_0001>
module attributes {stable_mosaic.version = 11 : i64} {
  func.func @kernel(%arg0: i32, %arg1: memref<1x8x8x128xbf16, #tpu.memory_space<vmem>>, %arg2: memref<1x128xf32, #tpu.memory_space<vmem>>, %arg3: memref<1x128xf32, #tpu.memory_space<vmem>>, %arg4: memref<9x128x128xbf16, #tpu.memory_space<vmem>>, %arg5: memref<1x8x8x128xbf16, #tpu.memory_space<vmem>>, %arg6: memref<1x1x128xf32, #tpu.memory_space<vmem>>, %arg7: memref<1x1x128xf32, #tpu.memory_space<vmem>>, %arg8: memref<10x10x128xbf16, #tpu.memory_space<vmem>>) attributes {dimension_semantics = [#tpu.dimension_semantics<parallel>], iteration_bounds = array<i64: 2>, scalar_prefetch = 0 : i64, scratch_operands = 1 : i64, tpu.core_type = #tpu.core_type<tc>, window_params = [{transform_indices = @transform_0, window_bounds = array<i64: 1, 8, 8, 128>}, {pipeline_mode = #tpu.pipeline_mode<synchronous>, transform_indices = @transform_1, window_bounds = array<i64: 1, 128>}, {pipeline_mode = #tpu.pipeline_mode<synchronous>, transform_indices = @transform_2, window_bounds = array<i64: 1, 128>}, {pipeline_mode = #tpu.pipeline_mode<synchronous>, transform_indices = @transform_3, window_bounds = array<i64: 9, 128, 128>}, {transform_indices = @transform_4, window_bounds = array<i64: 1, 8, 8, 128>}, {transform_indices = @transform_5, window_bounds = array<i64: 1, 1, 128>}, {transform_indices = @transform_6, window_bounds = array<i64: 1, 1, 128>}]} {
    %c0 = arith.constant 0 : index
    %c0_0 = arith.constant 0 : index
    %c0_1 = arith.constant 0 : index
    %c0_2 = arith.constant 0 : index
    %0 = vector.load %arg1[%c0, %c0_0, %c0_1, %c0_2] : memref<1x8x8x128xbf16, #tpu.memory_space<vmem>>, vector<1x8x8x128xbf16>
    %1 = vector.shape_cast %0 : vector<1x8x8x128xbf16> to vector<8x8x128xbf16>
    %2 = arith.extf %1 : vector<8x8x128xbf16> to vector<8x8x128xf32>
    %c0_3 = arith.constant 0 : index
    %c0_4 = arith.constant 0 : index
    %3 = vector.load %arg2[%c0_3, %c0_4] : memref<1x128xf32, #tpu.memory_space<vmem>>, vector<1x128xf32>
    %4 = vector.shape_cast %3 : vector<1x128xf32> to vector<1x1x128xf32>
    %5 = vector.broadcast %4 : vector<1x1x128xf32> to vector<8x8x128xf32>
    %6 = arith.mulf %2, %5 : vector<8x8x128xf32>
    %c0_5 = arith.constant 0 : index
    %c0_6 = arith.constant 0 : index
    %7 = vector.load %arg3[%c0_5, %c0_6] : memref<1x128xf32, #tpu.memory_space<vmem>>, vector<1x128xf32>
    %8 = vector.shape_cast %7 : vector<1x128xf32> to vector<1x1x128xf32>
    %9 = vector.broadcast %8 : vector<1x1x128xf32> to vector<8x8x128xf32>
    %10 = arith.addf %6, %9 : vector<8x8x128xf32>
    %cst = arith.constant 0.000000e+00 : f32
    %11 = vector.broadcast %cst : f32 to vector<8x8x128xf32>
    %12 = arith.maximumf %10, %11 : vector<8x8x128xf32>
    %cst_7 = arith.constant 0.000000e+00 : bf16
    %13 = vector.broadcast %cst_7 : bf16 to vector<1x10x128xbf16>
    %cst_8 = arith.constant 0.000000e+00 : bf16
    %14 = vector.broadcast %cst_8 : bf16 to vector<10x1x128xbf16>
    %c0_9 = arith.constant 0 : index
    %c0_10 = arith.constant 0 : index
    %c0_11 = arith.constant 0 : index
    %15 = vector.load %arg8[%c0_9, %c0_10, %c0_11] : memref<10x10x128xbf16, #tpu.memory_space<vmem>>, vector<1x10x128xbf16>
    tpu.vector_store %arg8[%c0_9, %c0_10, %c0_11], %13 {strides = array<i32>} : memref<10x10x128xbf16, #tpu.memory_space<vmem>>, vector<1x10x128xbf16>,
    %c9 = arith.constant 9 : index
    %c0_12 = arith.constant 0 : index
    %c0_13 = arith.constant 0 : index
    %16 = vector.load %arg8[%c9, %c0_12, %c0_13] : memref<10x10x128xbf16, #tpu.memory_space<vmem>>, vector<1x10x128xbf16>
    tpu.vector_store %arg8[%c9, %c0_12, %c0_13], %13 {strides = array<i32>} : memref<10x10x128xbf16, #tpu.memory_space<vmem>>, vector<1x10x128xbf16>,
    %c0_14 = arith.constant 0 : index
    %c0_15 = arith.constant 0 : index
    %c0_16 = arith.constant 0 : index
    %17 = vector.load %arg8[%c0_14, %c0_15, %c0_16] : memref<10x10x128xbf16, #tpu.memory_space<vmem>>, vector<10x1x128xbf16>
    tpu.vector_store %arg8[%c0_14, %c0_15, %c0_16], %14 {strides = array<i32>} : memref<10x10x128xbf16, #tpu.memory_space<vmem>>, vector<10x1x128xbf16>,
    %c0_17 = arith.constant 0 : index
    %c9_18 = arith.constant 9 : index
    %c0_19 = arith.constant 0 : index
    %18 = vector.load %arg8[%c0_17, %c9_18, %c0_19] : memref<10x10x128xbf16, #tpu.memory_space<vmem>>, vector<10x1x128xbf16>
    tpu.vector_store %arg8[%c0_17, %c9_18, %c0_19], %14 {strides = array<i32>} : memref<10x10x128xbf16, #tpu.memory_space<vmem>>, vector<10x1x128xbf16>,
    %19 = arith.truncf %12 : vector<8x8x128xf32> to vector<8x8x128xbf16>
    %c1 = arith.constant 1 : index
    %c1_20 = arith.constant 1 : index
    %c0_21 = arith.constant 0 : index
    %20 = vector.load %arg8[%c1, %c1_20, %c0_21] : memref<10x10x128xbf16, #tpu.memory_space<vmem>>, vector<8x8x128xbf16>
    tpu.vector_store %arg8[%c1, %c1_20, %c0_21], %19 {strides = array<i32>} : memref<10x10x128xbf16, #tpu.memory_space<vmem>>, vector<8x8x128xbf16>,
    %cst_22 = arith.constant 0.000000e+00 : f32
    %21 = vector.broadcast %cst_22 : f32 to vector<1x128xf32>
    %c0_i32 = arith.constant 0 : i32
    %c8_i32 = arith.constant 8 : i32
    %22 = arith.muli %c0_i32, %c8_i32 : i32
    %23 = tpu.assume_multiple %22, 8 : i32
    %cst_23 = arith.constant 0.000000e+00 : f32
    %24 = vector.broadcast %cst_23 : f32 to vector<64x128xf32>
    %c0_i32_24 = arith.constant 0 : i32
    %25 = arith.addi %23, %c0_i32_24 : i32
    %26 = arith.index_cast %25 : i32 to index
    %c0_25 = arith.constant 0 : index
    %c0_26 = arith.constant 0 : index
    %27 = vector.load %arg8[%26, %c0_25, %c0_26] : memref<10x10x128xbf16, #tpu.memory_space<vmem>>, vector<8x8x128xbf16>
    %28 = vector.shape_cast %27 : vector<8x8x128xbf16> to vector<64x128xbf16>
    %c0_27 = arith.constant 0 : index
    %c0_28 = arith.constant 0 : index
    %c0_29 = arith.constant 0 : index
    %29 = vector.load %arg4[%c0_27, %c0_28, %c0_29] : memref<9x128x128xbf16, #tpu.memory_space<vmem>>, vector<1x128x128xbf16>
    %30 = vector.shape_cast %29 : vector<1x128x128xbf16> to vector<128x128xbf16>
    %cst_30 = arith.constant dense<0.000000e+00> : vector<64x128xf32>
    %31 = tpu.matmul %28, %30, %cst_30 {dimension_numbers = #tpu.dot_dimension_numbers<[1], [0], [0], [1], [0, 0, 1, 1], [], []>} : vector<64x128xbf16>, vector<128x128xbf16>, vector<64x128xf32> -> vector<64x128xf32>
    %32 = arith.addf %24, %31 : vector<64x128xf32>
    %c0_i32_31 = arith.constant 0 : i32
    %33 = arith.addi %23, %c0_i32_31 : i32
    %34 = arith.index_cast %33 : i32 to index
    %c1_32 = arith.constant 1 : index
    %c0_33 = arith.constant 0 : index
    %35 = vector.load %arg8[%34, %c1_32, %c0_33] : memref<10x10x128xbf16, #tpu.memory_space<vmem>>, vector<8x8x128xbf16>
    %36 = vector.shape_cast %35 : vector<8x8x128xbf16> to vector<64x128xbf16>
    %c1_34 = arith.constant 1 : index
    %c0_35 = arith.constant 0 : index
    %c0_36 = arith.constant 0 : index
    %37 = vector.load %arg4[%c1_34, %c0_35, %c0_36] : memref<9x128x128xbf16, #tpu.memory_space<vmem>>, vector<1x128x128xbf16>
    %38 = vector.shape_cast %37 : vector<1x128x128xbf16> to vector<128x128xbf16>
    %cst_37 = arith.constant dense<0.000000e+00> : vector<64x128xf32>
    %39 = tpu.matmul %36, %38, %cst_37 {dimension_numbers = #tpu.dot_dimension_numbers<[1], [0], [0], [1], [0, 0, 1, 1], [], []>} : vector<64x128xbf16>, vector<128x128xbf16>, vector<64x128xf32> -> vector<64x128xf32>
    %40 = arith.addf %32, %39 : vector<64x128xf32>
    %c0_i32_38 = arith.constant 0 : i32
    %41 = arith.addi %23, %c0_i32_38 : i32
    %42 = arith.index_cast %41 : i32 to index
    %c2 = arith.constant 2 : index
    %c0_39 = arith.constant 0 : index
    %43 = vector.load %arg8[%42, %c2, %c0_39] : memref<10x10x128xbf16, #tpu.memory_space<vmem>>, vector<8x8x128xbf16>
    %44 = vector.shape_cast %43 : vector<8x8x128xbf16> to vector<64x128xbf16>
    %c2_40 = arith.constant 2 : index
    %c0_41 = arith.constant 0 : index
    %c0_42 = arith.constant 0 : index
    %45 = vector.load %arg4[%c2_40, %c0_41, %c0_42] : memref<9x128x128xbf16, #tpu.memory_space<vmem>>, vector<1x128x128xbf16>
    %46 = vector.shape_cast %45 : vector<1x128x128xbf16> to vector<128x128xbf16>
    %cst_43 = arith.constant dense<0.000000e+00> : vector<64x128xf32>
    %47 = tpu.matmul %44, %46, %cst_43 {dimension_numbers = #tpu.dot_dimension_numbers<[1], [0], [0], [1], [0, 0, 1, 1], [], []>} : vector<64x128xbf16>, vector<128x128xbf16>, vector<64x128xf32> -> vector<64x128xf32>
    %48 = arith.addf %40, %47 : vector<64x128xf32>
    %c1_i32 = arith.constant 1 : i32
    %49 = arith.addi %23, %c1_i32 : i32
    %50 = arith.index_cast %49 : i32 to index
    %c0_44 = arith.constant 0 : index
    %c0_45 = arith.constant 0 : index
    %51 = vector.load %arg8[%50, %c0_44, %c0_45] : memref<10x10x128xbf16, #tpu.memory_space<vmem>>, vector<8x8x128xbf16>
    %52 = vector.shape_cast %51 : vector<8x8x128xbf16> to vector<64x128xbf16>
    %c3 = arith.constant 3 : index
    %c0_46 = arith.constant 0 : index
    %c0_47 = arith.constant 0 : index
    %53 = vector.load %arg4[%c3, %c0_46, %c0_47] : memref<9x128x128xbf16, #tpu.memory_space<vmem>>, vector<1x128x128xbf16>
    %54 = vector.shape_cast %53 : vector<1x128x128xbf16> to vector<128x128xbf16>
    %cst_48 = arith.constant dense<0.000000e+00> : vector<64x128xf32>
    %55 = tpu.matmul %52, %54, %cst_48 {dimension_numbers = #tpu.dot_dimension_numbers<[1], [0], [0], [1], [0, 0, 1, 1], [], []>} : vector<64x128xbf16>, vector<128x128xbf16>, vector<64x128xf32> -> vector<64x128xf32>
    %56 = arith.addf %48, %55 : vector<64x128xf32>
    %c1_i32_49 = arith.constant 1 : i32
    %57 = arith.addi %23, %c1_i32_49 : i32
    %58 = arith.index_cast %57 : i32 to index
    %c1_50 = arith.constant 1 : index
    %c0_51 = arith.constant 0 : index
    %59 = vector.load %arg8[%58, %c1_50, %c0_51] : memref<10x10x128xbf16, #tpu.memory_space<vmem>>, vector<8x8x128xbf16>
    %60 = vector.shape_cast %59 : vector<8x8x128xbf16> to vector<64x128xbf16>
    %c4 = arith.constant 4 : index
    %c0_52 = arith.constant 0 : index
    %c0_53 = arith.constant 0 : index
    %61 = vector.load %arg4[%c4, %c0_52, %c0_53] : memref<9x128x128xbf16, #tpu.memory_space<vmem>>, vector<1x128x128xbf16>
    %62 = vector.shape_cast %61 : vector<1x128x128xbf16> to vector<128x128xbf16>
    %cst_54 = arith.constant dense<0.000000e+00> : vector<64x128xf32>
    %63 = tpu.matmul %60, %62, %cst_54 {dimension_numbers = #tpu.dot_dimension_numbers<[1], [0], [0], [1], [0, 0, 1, 1], [], []>} : vector<64x128xbf16>, vector<128x128xbf16>, vector<64x128xf32> -> vector<64x128xf32>
    %64 = arith.addf %56, %63 : vector<64x128xf32>
    %c1_i32_55 = arith.constant 1 : i32
    %65 = arith.addi %23, %c1_i32_55 : i32
    %66 = arith.index_cast %65 : i32 to index
    %c2_56 = arith.constant 2 : index
    %c0_57 = arith.constant 0 : index
    %67 = vector.load %arg8[%66, %c2_56, %c0_57] : memref<10x10x128xbf16, #tpu.memory_space<vmem>>, vector<8x8x128xbf16>
    %68 = vector.shape_cast %67 : vector<8x8x128xbf16> to vector<64x128xbf16>
    %c5 = arith.constant 5 : index
    %c0_58 = arith.constant 0 : index
    %c0_59 = arith.constant 0 : index
    %69 = vector.load %arg4[%c5, %c0_58, %c0_59] : memref<9x128x128xbf16, #tpu.memory_space<vmem>>, vector<1x128x128xbf16>
    %70 = vector.shape_cast %69 : vector<1x128x128xbf16> to vector<128x128xbf16>
    %cst_60 = arith.constant dense<0.000000e+00> : vector<64x128xf32>
    %71 = tpu.matmul %68, %70, %cst_60 {dimension_numbers = #tpu.dot_dimension_numbers<[1], [0], [0], [1], [0, 0, 1, 1], [], []>} : vector<64x128xbf16>, vector<128x128xbf16>, vector<64x128xf32> -> vector<64x128xf32>
    %72 = arith.addf %64, %71 : vector<64x128xf32>
    %c2_i32 = arith.constant 2 : i32
    %73 = arith.addi %23, %c2_i32 : i32
    %74 = arith.index_cast %73 : i32 to index
    %c0_61 = arith.constant 0 : index
    %c0_62 = arith.constant 0 : index
    %75 = vector.load %arg8[%74, %c0_61, %c0_62] : memref<10x10x128xbf16, #tpu.memory_space<vmem>>, vector<8x8x128xbf16>
    %76 = vector.shape_cast %75 : vector<8x8x128xbf16> to vector<64x128xbf16>
    %c6 = arith.constant 6 : index
    %c0_63 = arith.constant 0 : index
    %c0_64 = arith.constant 0 : index
    %77 = vector.load %arg4[%c6, %c0_63, %c0_64] : memref<9x128x128xbf16, #tpu.memory_space<vmem>>, vector<1x128x128xbf16>
    %78 = vector.shape_cast %77 : vector<1x128x128xbf16> to vector<128x128xbf16>
    %cst_65 = arith.constant dense<0.000000e+00> : vector<64x128xf32>
    %79 = tpu.matmul %76, %78, %cst_65 {dimension_numbers = #tpu.dot_dimension_numbers<[1], [0], [0], [1], [0, 0, 1, 1], [], []>} : vector<64x128xbf16>, vector<128x128xbf16>, vector<64x128xf32> -> vector<64x128xf32>
    %80 = arith.addf %72, %79 : vector<64x128xf32>
    %c2_i32_66 = arith.constant 2 : i32
    %81 = arith.addi %23, %c2_i32_66 : i32
    %82 = arith.index_cast %81 : i32 to index
    %c1_67 = arith.constant 1 : index
    %c0_68 = arith.constant 0 : index
    %83 = vector.load %arg8[%82, %c1_67, %c0_68] : memref<10x10x128xbf16, #tpu.memory_space<vmem>>, vector<8x8x128xbf16>
    %84 = vector.shape_cast %83 : vector<8x8x128xbf16> to vector<64x128xbf16>
    %c7 = arith.constant 7 : index
    %c0_69 = arith.constant 0 : index
    %c0_70 = arith.constant 0 : index
    %85 = vector.load %arg4[%c7, %c0_69, %c0_70] : memref<9x128x128xbf16, #tpu.memory_space<vmem>>, vector<1x128x128xbf16>
    %86 = vector.shape_cast %85 : vector<1x128x128xbf16> to vector<128x128xbf16>
    %cst_71 = arith.constant dense<0.000000e+00> : vector<64x128xf32>
    %87 = tpu.matmul %84, %86, %cst_71 {dimension_numbers = #tpu.dot_dimension_numbers<[1], [0], [0], [1], [0, 0, 1, 1], [], []>} : vector<64x128xbf16>, vector<128x128xbf16>, vector<64x128xf32> -> vector<64x128xf32>
    %88 = arith.addf %80, %87 : vector<64x128xf32>
    %c2_i32_72 = arith.constant 2 : i32
    %89 = arith.addi %23, %c2_i32_72 : i32
    %90 = arith.index_cast %89 : i32 to index
    %c2_73 = arith.constant 2 : index
    %c0_74 = arith.constant 0 : index
    %91 = vector.load %arg8[%90, %c2_73, %c0_74] : memref<10x10x128xbf16, #tpu.memory_space<vmem>>, vector<8x8x128xbf16>
    %92 = vector.shape_cast %91 : vector<8x8x128xbf16> to vector<64x128xbf16>
    %c8 = arith.constant 8 : index
    %c0_75 = arith.constant 0 : index
    %c0_76 = arith.constant 0 : index
    %93 = vector.load %arg4[%c8, %c0_75, %c0_76] : memref<9x128x128xbf16, #tpu.memory_space<vmem>>, vector<1x128x128xbf16>
    %94 = vector.shape_cast %93 : vector<1x128x128xbf16> to vector<128x128xbf16>
    %cst_77 = arith.constant dense<0.000000e+00> : vector<64x128xf32>
    %95 = tpu.matmul %92, %94, %cst_77 {dimension_numbers = #tpu.dot_dimension_numbers<[1], [0], [0], [1], [0, 0, 1, 1], [], []>} : vector<64x128xbf16>, vector<128x128xbf16>, vector<64x128xf32> -> vector<64x128xf32>
    %96 = arith.addf %88, %95 : vector<64x128xf32>
    %97 = vector.shape_cast %96 : vector<64x128xf32> to vector<8x8x128xf32>
    %98 = arith.truncf %97 : vector<8x8x128xf32> to vector<8x8x128xbf16>
    %c0_78 = arith.constant 0 : index
    %99 = arith.index_cast %23 : i32 to index
    %c0_79 = arith.constant 0 : index
    %c0_80 = arith.constant 0 : index
    %100 = vector.load %arg5[%c0_78, %99, %c0_79, %c0_80] : memref<1x8x8x128xbf16, #tpu.memory_space<vmem>>, vector<1x8x8x128xbf16>
    %101 = vector.shape_cast %100 : vector<1x8x8x128xbf16> to vector<8x8x128xbf16>
    %102 = vector.shape_cast %98 : vector<8x8x128xbf16> to vector<1x8x8x128xbf16>
    tpu.vector_store %arg5[%c0_78, %99, %c0_79, %c0_80], %102 {strides = array<i32>} : memref<1x8x8x128xbf16, #tpu.memory_space<vmem>>, vector<1x8x8x128xbf16>,
    %cst_81 = arith.constant dense<0.000000e+00> : vector<128xf32>
    %103 = vector.multi_reduction <add>, %96, %cst_81 [0] : vector<64x128xf32> to vector<128xf32>
    %104 = vector.shape_cast %103 : vector<128xf32> to vector<1x128xf32>
    %105 = arith.addf %21, %104 : vector<1x128xf32>
    %106 = arith.mulf %96, %96 : vector<64x128xf32>
    %cst_82 = arith.constant dense<0.000000e+00> : vector<128xf32>
    %107 = vector.multi_reduction <add>, %106, %cst_82 [0] : vector<64x128xf32> to vector<128xf32>
    %108 = vector.shape_cast %107 : vector<128xf32> to vector<1x128xf32>
    %109 = arith.addf %21, %108 : vector<1x128xf32>
    %c1_i32_83 = arith.constant 1 : i32
    %c0_84 = arith.constant 0 : index
    %c0_85 = arith.constant 0 : index
    %c0_86 = arith.constant 0 : index
    %110 = vector.load %arg6[%c0_84, %c0_85, %c0_86] : memref<1x1x128xf32, #tpu.memory_space<vmem>>, vector<1x1x128xf32>
    %111 = vector.shape_cast %110 : vector<1x1x128xf32> to vector<1x128xf32>
    %112 = vector.shape_cast %105 : vector<1x128xf32> to vector<1x1x128xf32>
    tpu.vector_store %arg6[%c0_84, %c0_85, %c0_86], %112 {strides = array<i32>} : memref<1x1x128xf32, #tpu.memory_space<vmem>>, vector<1x1x128xf32>,
    %c0_87 = arith.constant 0 : index
    %c0_88 = arith.constant 0 : index
    %c0_89 = arith.constant 0 : index
    %113 = vector.load %arg7[%c0_87, %c0_88, %c0_89] : memref<1x1x128xf32, #tpu.memory_space<vmem>>, vector<1x1x128xf32>
    %114 = vector.shape_cast %113 : vector<1x1x128xf32> to vector<1x128xf32>
    %115 = vector.shape_cast %109 : vector<1x128xf32> to vector<1x1x128xf32>
    tpu.vector_store %arg7[%c0_87, %c0_88, %c0_89], %115 {strides = array<i32>} : memref<1x1x128xf32, #tpu.memory_space<vmem>>, vector<1x1x128xf32>,
    return
  }
  func.func @transform_0(%arg0: i32) -> (i32, i32, i32, i32) {
    %c0_i32 = arith.constant 0 : i32
    %c0_i32_0 = arith.constant 0 : i32
    %c0_i32_1 = arith.constant 0 : i32
    %c0_i32_2 = arith.constant 0 : i32
    return %arg0, %c0_i32, %c0_i32_0, %c0_i32_1 : i32, i32, i32, i32
  }
  func.func @transform_1(%arg0: i32) -> (i32, i32) {
    %c0_i32 = arith.constant 0 : i32
    %c0_i32_0 = arith.constant 0 : i32
    %c0_i32_1 = arith.constant 0 : i32
    return %c0_i32, %c0_i32_0 : i32, i32
  }
  func.func @transform_2(%arg0: i32) -> (i32, i32) {
    %c0_i32 = arith.constant 0 : i32
    %c0_i32_0 = arith.constant 0 : i32
    %c0_i32_1 = arith.constant 0 : i32
    return %c0_i32, %c0_i32_0 : i32, i32
  }
  func.func @transform_3(%arg0: i32) -> (i32, i32, i32) {
    %c0_i32 = arith.constant 0 : i32
    %c0_i32_0 = arith.constant 0 : i32
    %c0_i32_1 = arith.constant 0 : i32
    %c0_i32_2 = arith.constant 0 : i32
    return %c0_i32, %c0_i32_0, %c0_i32_1 : i32, i32, i32
  }
  func.func @transform_4(%arg0: i32) -> (i32, i32, i32, i32) {
    %c0_i32 = arith.constant 0 : i32
    %c0_i32_0 = arith.constant 0 : i32
    %c0_i32_1 = arith.constant 0 : i32
    %c0_i32_2 = arith.constant 0 : i32
    return %arg0, %c0_i32, %c0_i32_0, %c0_i32_1 : i32, i32, i32, i32
  }
  func.func @transform_5(%arg0: i32) -> (i32, i32, i32) {
    %c0_i32 = arith.constant 0 : i32
    %c0_i32_0 = arith.constant 0 : i32
    %c0_i32_1 = arith.constant 0 : i32
    return %arg0, %c0_i32, %c0_i32_0 : i32, i32, i32
  }
  func.func @transform_6(%arg0: i32) -> (i32, i32, i32) {
    %c0_i32 = arith.constant 0 : i32
    %c0_i32_0 = arith.constant 0 : i32
    %c0_i32_1 = arith.constant 0 : i32
    return %arg0, %c0_i32, %c0_i32_0 : i32, i32, i32
  }
}

module attributes {stable_mosaic.version = 11 : i64} {
  func.func @kernel(%arg0: i32, %arg1: memref<1x64x128xbf16, #tpu.memory_space<vmem>>, %arg2: memref<128x128xbf16, #tpu.memory_space<vmem>>, %arg3: memref<128x128xbf16, #tpu.memory_space<vmem>>, %arg4: memref<1x8x8x128xbf16, #tpu.memory_space<vmem>>, %arg5: memref<1x8x8x128xbf16, #tpu.memory_space<vmem>>, %arg6: memref<1x1x128xf32, #tpu.memory_space<vmem>>, %arg7: memref<1x1x128xf32, #tpu.memory_space<vmem>>, %arg8: memref<1x1x128xf32, #tpu.memory_space<vmem>>, %arg9: memref<1x1x128xf32, #tpu.memory_space<vmem>>) attributes {dimension_semantics = [#tpu.dimension_semantics<parallel>], iteration_bounds = array<i64: 2>, scalar_prefetch = 0 : i64, scratch_operands = 0 : i64, tpu.core_type = #tpu.core_type<tc>, window_params = [{transform_indices = @transform_0, window_bounds = array<i64: 1, 64, 128>}, {pipeline_mode = #tpu.pipeline_mode<synchronous>, transform_indices = @transform_1, window_bounds = array<i64: 128, 128>}, {pipeline_mode = #tpu.pipeline_mode<synchronous>, transform_indices = @transform_2, window_bounds = array<i64: 128, 128>}, {transform_indices = @transform_3, window_bounds = array<i64: 1, 8, 8, 128>}, {transform_indices = @transform_4, window_bounds = array<i64: 1, 8, 8, 128>}, {transform_indices = @transform_5, window_bounds = array<i64: 1, 1, 128>}, {transform_indices = @transform_6, window_bounds = array<i64: 1, 1, 128>}, {transform_indices = @transform_7, window_bounds = array<i64: 1, 1, 128>}, {transform_indices = @transform_8, window_bounds = array<i64: 1, 1, 128>}]} {
    %c0 = arith.constant 0 : index
    %c0_0 = arith.constant 0 : index
    %c0_1 = arith.constant 0 : index
    %0 = vector.load %arg1[%c0, %c0_0, %c0_1] : memref<1x64x128xbf16, #tpu.memory_space<vmem>>, vector<1x64x128xbf16>
    %1 = vector.shape_cast %0 : vector<1x64x128xbf16> to vector<64x128xbf16>
    %c0_2 = arith.constant 0 : index
    %c0_3 = arith.constant 0 : index
    %2 = vector.load %arg2[%c0_2, %c0_3] : memref<128x128xbf16, #tpu.memory_space<vmem>>, vector<128x128xbf16>
    %cst = arith.constant dense<0.000000e+00> : vector<64x128xf32>
    %3 = tpu.matmul %1, %2, %cst {dimension_numbers = #tpu.dot_dimension_numbers<[1], [0], [0], [1], [0, 0, 1, 1], [], []>} : vector<64x128xbf16>, vector<128x128xbf16>, vector<64x128xf32> -> vector<64x128xf32>
    %4 = vector.shape_cast %3 : vector<64x128xf32> to vector<8x8x128xf32>
    %5 = arith.truncf %4 : vector<8x8x128xf32> to vector<8x8x128xbf16>
    %c0_4 = arith.constant 0 : index
    %c0_5 = arith.constant 0 : index
    %c0_6 = arith.constant 0 : index
    %c0_7 = arith.constant 0 : index
    %6 = vector.load %arg4[%c0_4, %c0_5, %c0_6, %c0_7] : memref<1x8x8x128xbf16, #tpu.memory_space<vmem>>, vector<1x8x8x128xbf16>
    %7 = vector.shape_cast %6 : vector<1x8x8x128xbf16> to vector<8x8x128xbf16>
    %8 = vector.shape_cast %5 : vector<8x8x128xbf16> to vector<1x8x8x128xbf16>
    tpu.vector_store %arg4[%c0_4, %c0_5, %c0_6, %c0_7], %8 {strides = array<i32>} : memref<1x8x8x128xbf16, #tpu.memory_space<vmem>>, vector<1x8x8x128xbf16>,
    %cst_8 = arith.constant dense<0.000000e+00> : vector<128xf32>
    %9 = vector.multi_reduction <add>, %3, %cst_8 [0] : vector<64x128xf32> to vector<128xf32>
    %10 = vector.shape_cast %9 : vector<128xf32> to vector<1x128xf32>
    %c0_9 = arith.constant 0 : index
    %c0_10 = arith.constant 0 : index
    %c0_11 = arith.constant 0 : index
    %11 = vector.load %arg6[%c0_9, %c0_10, %c0_11] : memref<1x1x128xf32, #tpu.memory_space<vmem>>, vector<1x1x128xf32>
    %12 = vector.shape_cast %11 : vector<1x1x128xf32> to vector<1x128xf32>
    %13 = vector.shape_cast %10 : vector<1x128xf32> to vector<1x1x128xf32>
    tpu.vector_store %arg6[%c0_9, %c0_10, %c0_11], %13 {strides = array<i32>} : memref<1x1x128xf32, #tpu.memory_space<vmem>>, vector<1x1x128xf32>,
    %14 = arith.mulf %3, %3 : vector<64x128xf32>
    %cst_12 = arith.constant dense<0.000000e+00> : vector<128xf32>
    %15 = vector.multi_reduction <add>, %14, %cst_12 [0] : vector<64x128xf32> to vector<128xf32>
    %16 = vector.shape_cast %15 : vector<128xf32> to vector<1x128xf32>
    %c0_13 = arith.constant 0 : index
    %c0_14 = arith.constant 0 : index
    %c0_15 = arith.constant 0 : index
    %17 = vector.load %arg7[%c0_13, %c0_14, %c0_15] : memref<1x1x128xf32, #tpu.memory_space<vmem>>, vector<1x1x128xf32>
    %18 = vector.shape_cast %17 : vector<1x1x128xf32> to vector<1x128xf32>
    %19 = vector.shape_cast %16 : vector<1x128xf32> to vector<1x1x128xf32>
    tpu.vector_store %arg7[%c0_13, %c0_14, %c0_15], %19 {strides = array<i32>} : memref<1x1x128xf32, #tpu.memory_space<vmem>>, vector<1x1x128xf32>,
    %c0_16 = arith.constant 0 : index
    %c0_17 = arith.constant 0 : index
    %20 = vector.load %arg3[%c0_16, %c0_17] : memref<128x128xbf16, #tpu.memory_space<vmem>>, vector<128x128xbf16>
    %cst_18 = arith.constant dense<0.000000e+00> : vector<64x128xf32>
    %21 = tpu.matmul %1, %20, %cst_18 {dimension_numbers = #tpu.dot_dimension_numbers<[1], [0], [0], [1], [0, 0, 1, 1], [], []>} : vector<64x128xbf16>, vector<128x128xbf16>, vector<64x128xf32> -> vector<64x128xf32>
    %22 = vector.shape_cast %21 : vector<64x128xf32> to vector<8x8x128xf32>
    %23 = arith.truncf %22 : vector<8x8x128xf32> to vector<8x8x128xbf16>
    %c0_19 = arith.constant 0 : index
    %c0_20 = arith.constant 0 : index
    %c0_21 = arith.constant 0 : index
    %c0_22 = arith.constant 0 : index
    %24 = vector.load %arg5[%c0_19, %c0_20, %c0_21, %c0_22] : memref<1x8x8x128xbf16, #tpu.memory_space<vmem>>, vector<1x8x8x128xbf16>
    %25 = vector.shape_cast %24 : vector<1x8x8x128xbf16> to vector<8x8x128xbf16>
    %26 = vector.shape_cast %23 : vector<8x8x128xbf16> to vector<1x8x8x128xbf16>
    tpu.vector_store %arg5[%c0_19, %c0_20, %c0_21, %c0_22], %26 {strides = array<i32>} : memref<1x8x8x128xbf16, #tpu.memory_space<vmem>>, vector<1x8x8x128xbf16>,
    %cst_23 = arith.constant dense<0.000000e+00> : vector<128xf32>
    %27 = vector.multi_reduction <add>, %21, %cst_23 [0] : vector<64x128xf32> to vector<128xf32>
    %28 = vector.shape_cast %27 : vector<128xf32> to vector<1x128xf32>
    %c0_24 = arith.constant 0 : index
    %c0_25 = arith.constant 0 : index
    %c0_26 = arith.constant 0 : index
    %29 = vector.load %arg8[%c0_24, %c0_25, %c0_26] : memref<1x1x128xf32, #tpu.memory_space<vmem>>, vector<1x1x128xf32>
    %30 = vector.shape_cast %29 : vector<1x1x128xf32> to vector<1x128xf32>
    %31 = vector.shape_cast %28 : vector<1x128xf32> to vector<1x1x128xf32>
    tpu.vector_store %arg8[%c0_24, %c0_25, %c0_26], %31 {strides = array<i32>} : memref<1x1x128xf32, #tpu.memory_space<vmem>>, vector<1x1x128xf32>,
    %32 = arith.mulf %21, %21 : vector<64x128xf32>
    %cst_27 = arith.constant dense<0.000000e+00> : vector<128xf32>
    %33 = vector.multi_reduction <add>, %32, %cst_27 [0] : vector<64x128xf32> to vector<128xf32>
    %34 = vector.shape_cast %33 : vector<128xf32> to vector<1x128xf32>
    %c0_28 = arith.constant 0 : index
    %c0_29 = arith.constant 0 : index
    %c0_30 = arith.constant 0 : index
    %35 = vector.load %arg9[%c0_28, %c0_29, %c0_30] : memref<1x1x128xf32, #tpu.memory_space<vmem>>, vector<1x1x128xf32>
    %36 = vector.shape_cast %35 : vector<1x1x128xf32> to vector<1x128xf32>
    %37 = vector.shape_cast %34 : vector<1x128xf32> to vector<1x1x128xf32>
    tpu.vector_store %arg9[%c0_28, %c0_29, %c0_30], %37 {strides = array<i32>} : memref<1x1x128xf32, #tpu.memory_space<vmem>>, vector<1x1x128xf32>,
    return
  }
  func.func @transform_0(%arg0: i32) -> (i32, i32, i32) {
    %c0_i32 = arith.constant 0 : i32
    %c0_i32_0 = arith.constant 0 : i32
    %c0_i32_1 = arith.constant 0 : i32
    return %arg0, %c0_i32, %c0_i32_0 : i32, i32, i32
  }
  func.func @transform_1(%arg0: i32) -> (i32, i32) {
    %c0_i32 = arith.constant 0 : i32
    %c0_i32_0 = arith.constant 0 : i32
    %c0_i32_1 = arith.constant 0 : i32
    return %c0_i32, %c0_i32_0 : i32, i32
  }
  func.func @transform_2(%arg0: i32) -> (i32, i32) {
    %c0_i32 = arith.constant 0 : i32
    %c0_i32_0 = arith.constant 0 : i32
    %c0_i32_1 = arith.constant 0 : i32
    return %c0_i32, %c0_i32_0 : i32, i32
  }
  func.func @transform_3(%arg0: i32) -> (i32, i32, i32, i32) {
    %c0_i32 = arith.constant 0 : i32
    %c0_i32_0 = arith.constant 0 : i32
    %c0_i32_1 = arith.constant 0 : i32
    %c0_i32_2 = arith.constant 0 : i32
    return %arg0, %c0_i32, %c0_i32_0, %c0_i32_1 : i32, i32, i32, i32
  }
  func.func @transform_4(%arg0: i32) -> (i32, i32, i32, i32) {
    %c0_i32 = arith.constant 0 : i32
    %c0_i32_0 = arith.constant 0 : i32
    %c0_i32_1 = arith.constant 0 : i32
    %c0_i32_2 = arith.constant 0 : i32
    return %arg0, %c0_i32, %c0_i32_0, %c0_i32_1 : i32, i32, i32, i32
  }
  func.func @transform_5(%arg0: i32) -> (i32, i32, i32) {
    %c0_i32 = arith.constant 0 : i32
    %c0_i32_0 = arith.constant 0 : i32
    %c0_i32_1 = arith.constant 0 : i32
    return %arg0, %c0_i32, %c0_i32_0 : i32, i32, i32
  }
  func.func @transform_6(%arg0: i32) -> (i32, i32, i32) {
    %c0_i32 = arith.constant 0 : i32
    %c0_i32_0 = arith.constant 0 : i32
    %c0_i32_1 = arith.constant 0 : i32
    return %arg0, %c0_i32, %c0_i32_0 : i32, i32, i32
  }
  func.func @transform_7(%arg0: i32) -> (i32, i32, i32) {
    %c0_i32 = arith.constant 0 : i32
    %c0_i32_0 = arith.constant 0 : i32
    %c0_i32_1 = arith.constant 0 : i32
    return %arg0, %c0_i32, %c0_i32_0 : i32, i32, i32
  }
  func.func @transform_8(%arg0: i32) -> (i32, i32, i32) {
    %c0_i32 = arith.constant 0 : i32
    %c0_i32_0 = arith.constant 0 : i32
    %c0_i32_1 = arith.constant 0 : i32
    return %arg0, %c0_i32, %c0_i32_0 : i32, i32, i32
  }
}

module attributes {stable_mosaic.version = 11 : i64} {
  func.func @_final_proj_kernel(%arg0: i32, %arg1: memref<128x128xbf16, #tpu.memory_space<vmem>>, %arg2: memref<128x128xbf16, #tpu.memory_space<vmem>>, %arg3: memref<1x128xf32, #tpu.memory_space<vmem>>, %arg4: memref<1x128xf32, #tpu.memory_space<vmem>>, %arg5: memref<1x128xf32, #tpu.memory_space<vmem>>, %arg6: memref<1x128xf32, #tpu.memory_space<vmem>>, %arg7: memref<128x128xf32, #tpu.memory_space<vmem>>) attributes {dimension_semantics = [#tpu.dimension_semantics<parallel>], iteration_bounds = array<i64: 1>, scalar_prefetch = 0 : i64, scratch_operands = 0 : i64, tpu.core_type = #tpu.core_type<tc>, window_params = [{transform_indices = @transform_0, window_bounds = array<i64: 128, 128>}, {transform_indices = @transform_1, window_bounds = array<i64: 128, 128>}, {pipeline_mode = #tpu.pipeline_mode<synchronous>, transform_indices = @transform_2, window_bounds = array<i64: 1, 128>}, {pipeline_mode = #tpu.pipeline_mode<synchronous>, transform_indices = @transform_3, window_bounds = array<i64: 1, 128>}, {pipeline_mode = #tpu.pipeline_mode<synchronous>, transform_indices = @transform_4, window_bounds = array<i64: 1, 128>}, {pipeline_mode = #tpu.pipeline_mode<synchronous>, transform_indices = @transform_5, window_bounds = array<i64: 1, 128>}, {transform_indices = @transform_6, window_bounds = array<i64: 128, 128>}]} {
    %c0 = arith.constant 0 : index
    %c0_0 = arith.constant 0 : index
    %0 = vector.load %arg1[%c0, %c0_0] : memref<128x128xbf16, #tpu.memory_space<vmem>>, vector<128x128xbf16>
    %1 = arith.extf %0 : vector<128x128xbf16> to vector<128x128xf32>
    %c0_1 = arith.constant 0 : index
    %c0_2 = arith.constant 0 : index
    %2 = vector.load %arg3[%c0_1, %c0_2] : memref<1x128xf32, #tpu.memory_space<vmem>>, vector<1x128xf32>
    %3 = vector.broadcast %2 : vector<1x128xf32> to vector<128x128xf32>
    %4 = arith.mulf %1, %3 : vector<128x128xf32>
    %c0_3 = arith.constant 0 : index
    %c0_4 = arith.constant 0 : index
    %5 = vector.load %arg4[%c0_3, %c0_4] : memref<1x128xf32, #tpu.memory_space<vmem>>, vector<1x128xf32>
    %6 = vector.broadcast %5 : vector<1x128xf32> to vector<128x128xf32>
    %7 = arith.addf %4, %6 : vector<128x128xf32>
    %c0_5 = arith.constant 0 : index
    %c0_6 = arith.constant 0 : index
    %8 = vector.load %arg2[%c0_5, %c0_6] : memref<128x128xbf16, #tpu.memory_space<vmem>>, vector<128x128xbf16>
    %9 = arith.extf %8 : vector<128x128xbf16> to vector<128x128xf32>
    %c0_7 = arith.constant 0 : index
    %c0_8 = arith.constant 0 : index
    %10 = vector.load %arg5[%c0_7, %c0_8] : memref<1x128xf32, #tpu.memory_space<vmem>>, vector<1x128xf32>
    %11 = vector.broadcast %10 : vector<1x128xf32> to vector<128x128xf32>
    %12 = arith.mulf %9, %11 : vector<128x128xf32>
    %13 = arith.addf %7, %12 : vector<128x128xf32>
    %c0_9 = arith.constant 0 : index
    %c0_10 = arith.constant 0 : index
    %14 = vector.load %arg6[%c0_9, %c0_10] : memref<1x128xf32, #tpu.memory_space<vmem>>, vector<1x128xf32>
    %15 = vector.broadcast %14 : vector<1x128xf32> to vector<128x128xf32>
    %16 = arith.addf %13, %15 : vector<128x128xf32>
    %cst = arith.constant 0.000000e+00 : f32
    %17 = vector.broadcast %cst : f32 to vector<128x128xf32>
    %18 = arith.maximumf %16, %17 : vector<128x128xf32>
    %c0_11 = arith.constant 0 : index
    %c0_12 = arith.constant 0 : index
    %19 = vector.load %arg7[%c0_11, %c0_12] : memref<128x128xf32, #tpu.memory_space<vmem>>, vector<128x128xf32>
    tpu.vector_store %arg7[%c0_11, %c0_12], %18 {strides = array<i32>} : memref<128x128xf32, #tpu.memory_space<vmem>>, vector<128x128xf32>,
    return
  }
  func.func @transform_0(%arg0: i32) -> (i32, i32) {
    %c0_i32 = arith.constant 0 : i32
    %c0_i32_0 = arith.constant 0 : i32
    return %arg0, %c0_i32 : i32, i32
  }
  func.func @transform_1(%arg0: i32) -> (i32, i32) {
    %c0_i32 = arith.constant 0 : i32
    %c0_i32_0 = arith.constant 0 : i32
    return %arg0, %c0_i32 : i32, i32
  }
  func.func @transform_2(%arg0: i32) -> (i32, i32) {
    %c0_i32 = arith.constant 0 : i32
    %c0_i32_0 = arith.constant 0 : i32
    %c0_i32_1 = arith.constant 0 : i32
    return %c0_i32, %c0_i32_0 : i32, i32
  }
  func.func @transform_3(%arg0: i32) -> (i32, i32) {
    %c0_i32 = arith.constant 0 : i32
    %c0_i32_0 = arith.constant 0 : i32
    %c0_i32_1 = arith.constant 0 : i32
    return %c0_i32, %c0_i32_0 : i32, i32
  }
  func.func @transform_4(%arg0: i32) -> (i32, i32) {
    %c0_i32 = arith.constant 0 : i32
    %c0_i32_0 = arith.constant 0 : i32
    %c0_i32_1 = arith.constant 0 : i32
    return %c0_i32, %c0_i32_0 : i32, i32
  }
  func.func @transform_5(%arg0: i32) -> (i32, i32) {
    %c0_i32 = arith.constant 0 : i32
    %c0_i32_0 = arith.constant 0 : i32
    %c0_i32_1 = arith.constant 0 : i32
    return %c0_i32, %c0_i32_0 : i32, i32
  }
  func.func @transform_6(%arg0: i32) -> (i32, i32) {
    %c0_i32 = arith.constant 0 : i32
    %c0_i32_0 = arith.constant 0 : i32
    return %arg0, %c0_i32 : i32, i32
  }
}

</mosaic_0001>

<llo_original>
// kernel: basic_block_forward.3
$region0: #{basic_block_forward.3}
  #allocation0 [shape = 'u32[]', space=smem, size = 0x4, offset = 0x4, fixed_abs, tag = 'smem constant byte address 0x4 - core index']
  #allocation1 [shape = 'u32[144,128]{1,0:T(1,128)}', space=vmem, size = 0x12000, scoped, tag = 'internal scratch']
  %s0 = inlined_call_operand.vmem [shape: bf16[2,64,128], index: 0, kind: input, shape index: {}]
  %s1 = inlined_call_operand.vmem [shape: bf16[128,128], index: 1, kind: input, shape index: {}]
  %s2 = inlined_call_operand.vmem [shape: bf16[128,128], index: 2, kind: input, shape index: {}]
  %s3 = inlined_call_operand.vmem [shape: bf16[2,8,8,128], index: 3, kind: output, shape index: {0}]
  %s4 = inlined_call_operand.vmem [shape: bf16[2,8,8,128], index: 4, kind: output, shape index: {1}]
  %s5 = inlined_call_operand.vmem [shape: f32[2,1,128], index: 5, kind: output, shape index: {2}]
  %s6 = inlined_call_operand.vmem [shape: f32[2,1,128], index: 6, kind: output, shape index: {3}]
  %s7 = inlined_call_operand.vmem [shape: f32[2,1,128], index: 7, kind: output, shape index: {4}]
  %s8 = inlined_call_operand.vmem [shape: f32[2,1,128], index: 8, kind: output, shape index: {5}]
  %9 = xla_tuple %s3, %s4, %s5, %s6, %s7, %s8
  %s10 = sld [smem:[#allocation0]]
  $region85: #{basic_block_forward.3} parent=0
    _
  %s12 = ssub.s32 1, %s10
  %s13 = scalar_select 0, %s12, %s10
  loop: start=0, step=1, limit=4
  $region2: #{basic_block_forward.3} parent=0 // loop_pre_header
    _
  $region3: #{basic_block_forward.3} parent=0 // loop_header
    %s15 = sphi 0, %s19
    %p16 = scmp.ge.s32.totalorder %s15, 4
    %s25 = sphi 0, %s27
    %s28 = sphi 0, %s25
    %s29 = sphi 0, %s28
    %s45 = sphi 0, %s29
    %s49 = sphi 0, %s49
    %s51 = sphi 0, %s49
    %s52 = sphi 0, %s51
    %s66 = sphi 0, %s52
    %s70 = sphi 0, %s70
    %s72 = sphi 0, %s70
    %s73 = sphi 0, %s72
    %s87 = sphi 0, %s73
    %s93 = sphi 0, %s95
    %s96 = sphi 0, %s93
    %s97 = sphi 0, %s96
    %s113 = sphi 0, %s97
    %s119 = sphi 0, %s121
    %s122 = sphi 0, %s119
    %s123 = sphi 0, %s122
    %s139 = sphi 0, %s123
    %s145 = sphi 0, %s147
    %s148 = sphi 0, %s145
    %s149 = sphi 0, %s148
    %s165 = sphi 0, %s149
    %s171 = sphi 0, %s173
    %s174 = sphi 0, %s171
    %s175 = sphi 0, %s174
    %s191 = sphi 0, %s175
    %s197 = sphi 0, %s199
    %s200 = sphi 0, %s197
    %s201 = sphi 0, %s200
    %s217 = sphi 0, %s201
    %s223 = sphi 0, %s225
    %s226 = sphi 0, %s223
    %s227 = sphi 0, %s226
    %s243 = sphi 0, %s227
  $region4: #{basic_block_forward.3} parent=0 // loop_header_branch
    %18 = sbr.rel (%p16) target = $region8
  $region5: #{basic_block_forward.3} parent=0 // loop_body
    %s20 = ssub.s32 %s15, 1
    %s21 = ssub.s32 %s15, 2
    %s22 = sadd.s32 %s15, 1
    %s23 = ssub.s32 %s15, %s22
    %p24 = scmp.eq.s32.totalorder %s23, 0
    %s26 = sadd.s32 %s25, 1
    %s27 = scalar_select %p24, %s25, %s26
    %p30 = pneg %p24
    %p31 = scmp.eq.s32.totalorder %s15, 1
    %p32 = por %p30, %p31
    %p33 = scmp.ne.s32.totalorder %s25, %s28
    %p34 = scmp.eq.s32.totalorder %s15, 0
    %p35 = por %p33, %p34
    %p36 = scmp.ne.s32.totalorder %s25, %s28
    %p37 = scmp.eq.s32.totalorder %s20, 1
    %p38 = por %p36, %p37
    %p39 = scmp.ne.s32.totalorder %s28, %s29
    %p40 = scmp.eq.s32.totalorder %s20, 0
    %p41 = por %p39, %p40
    %p42 = scmp.ne.s32.totalorder %s28, %s29
    %p43 = scmp.eq.s32.totalorder %s21, 1
    %p44 = por %p42, %p43
    %p46 = scmp.ne.s32.totalorder %s29, %s45
    %p47 = scmp.eq.s32.totalorder %s21, 0
    %p48 = por %p46, %p47
    %s50 = sadd.s32 %s49, 1
    %p53 = scmp.eq.s32.totalorder %s15, 1
    %p54 = scmp.ne.s32.totalorder %s49, %s51
    %p55 = scmp.eq.s32.totalorder %s15, 0
    %p56 = por %p54, %p55
    %p57 = scmp.ne.s32.totalorder %s49, %s51
    %p58 = scmp.eq.s32.totalorder %s20, 1
    %p59 = por %p57, %p58
    %p60 = scmp.ne.s32.totalorder %s51, %s52
    %p61 = scmp.eq.s32.totalorder %s20, 0
    %p62 = por %p60, %p61
    %p63 = scmp.ne.s32.totalorder %s51, %s52
    %p64 = scmp.eq.s32.totalorder %s21, 1
    %p65 = por %p63, %p64
    %p67 = scmp.ne.s32.totalorder %s52, %s66
    %p68 = scmp.eq.s32.totalorder %s21, 0
    %p69 = por %p67, %p68
    %s71 = sadd.s32 %s70, 1
    %p74 = scmp.eq.s32.totalorder %s15, 1
    %p75 = scmp.ne.s32.totalorder %s70, %s72
    %p76 = scmp.eq.s32.totalorder %s15, 0
    %p77 = por %p75, %p76
    %p78 = scmp.ne.s32.totalorder %s70, %s72
    %p79 = scmp.eq.s32.totalorder %s20, 1
    %p80 = por %p78, %p79
    %p81 = scmp.ne.s32.totalorder %s72, %s73
    %p82 = scmp.eq.s32.totalorder %s20, 0
    %p83 = por %p81, %p82
    %p84 = scmp.ne.s32.totalorder %s72, %s73
    %p85 = scmp.eq.s32.totalorder %s21, 1
    %p86 = por %p84, %p85
    %p88 = scmp.ne.s32.totalorder %s73, %s87
    %p89 = scmp.eq.s32.totalorder %s21, 0
    %p90 = por %p88, %p89
    %s91 = ssub.s32 %s15, %s22
    %p92 = scmp.eq.s32.totalorder %s91, 0
    %s94 = sadd.s32 %s93, 1
    %s95 = scalar_select %p92, %s93, %s94
    %p98 = pneg %p92
    %p99 = scmp.eq.s32.totalorder %s15, 1
    %p100 = por %p98, %p99
    %p101 = scmp.ne.s32.totalorder %s93, %s96
    %p102 = scmp.eq.s32.totalorder %s15, 0
    %p103 = por %p101, %p102
    %p104 = scmp.ne.s32.totalorder %s93, %s96
    %p105 = scmp.eq.s32.totalorder %s20, 1
    %p106 = por %p104, %p105
    %p107 = scmp.ne.s32.totalorder %s96, %s97
    %p108 = scmp.eq.s32.totalorder %s20, 0
    %p109 = por %p107, %p108
    %p110 = scmp.ne.s32.totalorder %s96, %s97
    %p111 = scmp.eq.s32.totalorder %s21, 1
    %p112 = por %p110, %p111
    %p114 = scmp.ne.s32.totalorder %s97, %s113
    %p115 = scmp.eq.s32.totalorder %s21, 0
    %p116 = por %p114, %p115
    %s117 = ssub.s32 %s15, %s22
    %p118 = scmp.eq.s32.totalorder %s117, 0
    %s120 = sadd.s32 %s119, 1
    %s121 = scalar_select %p118, %s119, %s120
    %p124 = pneg %p118
    %p125 = scmp.eq.s32.totalorder %s15, 1
    %p126 = por %p124, %p125
    %p127 = scmp.ne.s32.totalorder %s119, %s122
    %p128 = scmp.eq.s32.totalorder %s15, 0
    %p129 = por %p127, %p128
    %p130 = scmp.ne.s32.totalorder %s119, %s122
    %p131 = scmp.eq.s32.totalorder %s20, 1
    %p132 = por %p130, %p131
    %p133 = scmp.ne.s32.totalorder %s122, %s123
    %p134 = scmp.eq.s32.totalorder %s20, 0
    %p135 = por %p133, %p134
    %p136 = scmp.ne.s32.totalorder %s122, %s123
    %p137 = scmp.eq.s32.totalorder %s21, 1
    %p138 = por %p136, %p137
    %p140 = scmp.ne.s32.totalorder %s123, %s139
    %p141 = scmp.eq.s32.totalorder %s21, 0
    %p142 = por %p140, %p141
    %s143 = ssub.s32 %s15, %s22
    %p144 = scmp.eq.s32.totalorder %s143, 0
    %s146 = sadd.s32 %s145, 1
    %s147 = scalar_select %p144, %s145, %s146
    %p150 = pneg %p144
    %p151 = scmp.eq.s32.totalorder %s15, 1
    %p152 = por %p150, %p151
    %p153 = scmp.ne.s32.totalorder %s145, %s148
    %p154 = scmp.eq.s32.totalorder %s15, 0
    %p155 = por %p153, %p154
    %p156 = scmp.ne.s32.totalorder %s145, %s148
    %p157 = scmp.eq.s32.totalorder %s20, 1
    %p158 = por %p156, %p157
    %p159 = scmp.ne.s32.totalorder %s148, %s149
    %p160 = scmp.eq.s32.totalorder %s20, 0
    %p161 = por %p159, %p160
    %p162 = scmp.ne.s32.totalorder %s148, %s149
    %p163 = scmp.eq.s32.totalorder %s21, 1
    %p164 = por %p162, %p163
    %p166 = scmp.ne.s32.totalorder %s149, %s165
    %p167 = scmp.eq.s32.totalorder %s21, 0
    %p168 = por %p166, %p167
    %s169 = ssub.s32 %s15, %s22
    %p170 = scmp.eq.s32.totalorder %s169, 0
    %s172 = sadd.s32 %s171, 1
    %s173 = scalar_select %p170, %s171, %s172
    %p176 = pneg %p170
    %p177 = scmp.eq.s32.totalorder %s15, 1
    %p178 = por %p176, %p177
    %p179 = scmp.ne.s32.totalorder %s171, %s174
    %p180 = scmp.eq.s32.totalorder %s15, 0
    %p181 = por %p179, %p180
    %p182 = scmp.ne.s32.totalorder %s171, %s174
    %p183 = scmp.eq.s32.totalorder %s20, 1
    %p184 = por %p182, %p183
    %p185 = scmp.ne.s32.totalorder %s174, %s175
    %p186 = scmp.eq.s32.totalorder %s20, 0
    %p187 = por %p185, %p186
    %p188 = scmp.ne.s32.totalorder %s174, %s175
    %p189 = scmp.eq.s32.totalorder %s21, 1
    %p190 = por %p188, %p189
    %p192 = scmp.ne.s32.totalorder %s175, %s191
    %p193 = scmp.eq.s32.totalorder %s21, 0
    %p194 = por %p192, %p193
    %s195 = ssub.s32 %s15, %s22
    %p196 = scmp.eq.s32.totalorder %s195, 0
    %s198 = sadd.s32 %s197, 1
    %s199 = scalar_select %p196, %s197, %s198
    %p202 = pneg %p196
    %p203 = scmp.eq.s32.totalorder %s15, 1
    %p204 = por %p202, %p203
    %p205 = scmp.ne.s32.totalorder %s197, %s200
    %p206 = scmp.eq.s32.totalorder %s15, 0
    %p207 = por %p205, %p206
    %p208 = scmp.ne.s32.totalorder %s197, %s200
    %p209 = scmp.eq.s32.totalorder %s20, 1
    %p210 = por %p208, %p209
    %p211 = scmp.ne.s32.totalorder %s200, %s201
    %p212 = scmp.eq.s32.totalorder %s20, 0
    %p213 = por %p211, %p212
    %p214 = scmp.ne.s32.totalorder %s200, %s201
    %p215 = scmp.eq.s32.totalorder %s21, 1
    %p216 = por %p214, %p215
    %p218 = scmp.ne.s32.totalorder %s201, %s217
    %p219 = scmp.eq.s32.totalorder %s21, 0
    %p220 = por %p218, %p219
    %s221 = ssub.s32 %s15, %s22
    %p222 = scmp.eq.s32.totalorder %s221, 0
    %s224 = sadd.s32 %s223, 1
    %s225 = scalar_select %p222, %s223, %s224
    %p228 = pneg %p222
    %p229 = scmp.eq.s32.totalorder %s15, 1
    %p230 = por %p228, %p229
    %p231 = scmp.ne.s32.totalorder %s223, %s226
    %p232 = scmp.eq.s32.totalorder %s15, 0
    %p233 = por %p231, %p232
    %p234 = scmp.ne.s32.totalorder %s223, %s226
    %p235 = scmp.eq.s32.totalorder %s20, 1
    %p236 = por %p234, %p235
    %p237 = scmp.ne.s32.totalorder %s226, %s227
    %p238 = scmp.eq.s32.totalorder %s20, 0
    %p239 = por %p237, %p238
    %p240 = scmp.ne.s32.totalorder %s226, %s227
    %p241 = scmp.eq.s32.totalorder %s21, 1
    %p242 = por %p240, %p241
    %p244 = scmp.ne.s32.totalorder %s227, %s243
    %p245 = scmp.eq.s32.totalorder %s21, 0
    %p246 = por %p244, %p245
    %p247 = scmp.le.s32.totalorder 1, %s15
    %p248 = scmp.lt.s32.totalorder %s15, 3
    %p249 = pnand %p247, %p248
    %p250 = pneg %p249
    // Predicated region
    $region9: #{basic_block_forward.3} parent=5 // pred_check
      _
    $region10: #{basic_block_forward.3} parent=5 // pred_check_branch
      %252 = sbr.rel (%p249) target = $region12
    $region11: #{basic_block_forward.3} parent=5 // pred_region
      %s253 = ssub.s32 %s15, 1
      // Predicated region
      $region13: #{basic_block_forward.3} parent=11 // pred_check
        %p254 = pneg %p62
      $region14: #{basic_block_forward.3} parent=11 // pred_check_branch
        %256 = sbr.rel (%p254) target = $region16
      $region15: #{basic_block_forward.3} parent=11 // pred_region
        _
      $region16: #{basic_block_forward.3} parent=11 // pred_fallthru
        _
      // Predicated region
      $region17: #{basic_block_forward.3} parent=11 // pred_check
        %p257 = pneg %p83
      $region18: #{basic_block_forward.3} parent=11 // pred_check_branch
        %259 = sbr.rel (%p257) target = $region20
      $region19: #{basic_block_forward.3} parent=11 // pred_region
        _
      $region20: #{basic_block_forward.3} parent=11 // pred_fallthru
        _
    $region12: #{basic_block_forward.3} parent=5 // pred_fallthru
      _
    %p260 = scmp.lt.s32.totalorder %s15, 2
    // Predicated region
    $region21: #{basic_block_forward.3} parent=5 // pred_check
      %p261 = pneg %p260
    $region22: #{basic_block_forward.3} parent=5 // pred_check_branch
      %263 = sbr.rel (%p261) target = $region24
    $region23: #{basic_block_forward.3} parent=5 // pred_region
      // Predicated region
      $region25: #{basic_block_forward.3} parent=23 // pred_check
        %p264 = pneg %p35
      $region26: #{basic_block_forward.3} parent=23 // pred_check_branch
        %266 = sbr.rel (%p264) target = $region28
      $region27: #{basic_block_forward.3} parent=23 // pred_region
        %p267 = scmp.lt.s32.totalorder %s15, 1
        %s268 = scalar_select %p267, %s15, 1
        %s269 = smul.addr %s268, 8
        %s270 = smul.addr %s269, 4
        %s271 = scalar_lea.vmem %s0, %s270
      $region28: #{basic_block_forward.3} parent=23 // pred_fallthru
        _
    $region24: #{basic_block_forward.3} parent=5 // pred_fallthru
      _
    %p272 = scmp.le.s32.totalorder 1, %s15
    %p273 = scmp.lt.s32.totalorder %s15, 3
    %p274 = pnand %p272, %p273
    %p275 = pneg %p274
    // Predicated region
    $region29: #{basic_block_forward.3} parent=5 // pred_check
      _
    $region30: #{basic_block_forward.3} parent=5 // pred_check_branch
      %277 = sbr.rel (%p274) target = $region32
    $region31: #{basic_block_forward.3} parent=5 // pred_region
      %s278 = ssub.s32 %s15, 1
      %p279 = scmp.lt.s32.totalorder %s20, 1
      %s280 = scalar_select %p279, %s20, 1
      %s281 = smul.addr %s280, 8
      %s282 = smul.addr %s281, 4
      %s283 = scalar_lea.vmem %s0, %s282
      %p284 = pneg %p41
      %p285 = pneg %p38
      %p286 = pneg %p62
      %p287 = pneg %p59
      %p288 = pneg %p83
      %p289 = pneg %p80
      %p290 = pneg %p109
      %p291 = pneg %p106
      %p292 = scmp.lt.s32.totalorder %s20, 1
      %s293 = scalar_select %p292, %s20, 1
      %s294 = smul.addr %s293, 8
      %s295 = smul.addr %s294, 4
      %s296 = scalar_lea.vmem %s3, %s295
      %p297 = pneg %p135
      %p298 = pneg %p132
      %p299 = scmp.lt.s32.totalorder %s20, 1
      %s300 = scalar_select %p299, %s20, 1
      %s301 = smul.addr %s300, 8
      %s302 = smul.addr %s301, 4
      %s303 = scalar_lea.vmem %s4, %s302
      %p304 = pneg %p161
      %p305 = pneg %p158
      %p306 = scmp.lt.s32.totalorder %s20, 1
      %s307 = scalar_select %p306, %s20, 1
      %s308 = scalar_lea.vmem %s5, %s307
      %p309 = pneg %p187
      %p310 = pneg %p184
      %p311 = scmp.lt.s32.totalorder %s20, 1
      %s312 = scalar_select %p311, %s20, 1
      %s313 = scalar_lea.vmem %s6, %s312
      %p314 = pneg %p213
      %p315 = pneg %p210
      %p316 = scmp.lt.s32.totalorder %s20, 1
      %s317 = scalar_select %p316, %s20, 1
      %s318 = scalar_lea.vmem %s7, %s317
      %p319 = pneg %p239
      %p320 = pneg %p236
      %p321 = scmp.lt.s32.totalorder %s20, 1
      %s322 = scalar_select %p321, %s20, 1
      %s323 = scalar_lea.vmem %s8, %s322
      %p324 = scmp.lt.s32.totalorder %s20, 1
      %s325 = scalar_select %p324, %s20, 1
      %s326 = smul.addr %s325, 8
      %s327 = smul.addr %s326, 4
      %s328 = scalar_lea.vmem %s0, %s327
      %p329 = scmp.lt.s32.totalorder %s20, 1
      %s330 = scalar_select %p329, %s20, 1
      %s331 = smul.addr %s330, 8
      %s332 = smul.addr %s331, 4
      %s333 = scalar_lea.vmem %s3, %s332
      %p334 = scmp.lt.s32.totalorder %s20, 1
      %s335 = scalar_select %p334, %s20, 1
      %s336 = smul.addr %s335, 8
      %s337 = smul.addr %s336, 4
      %s338 = scalar_lea.vmem %s4, %s337
      %p339 = scmp.lt.s32.totalorder %s20, 1
      %s340 = scalar_select %p339, %s20, 1
      %s341 = scalar_lea.vmem %s5, %s340
      %p342 = scmp.lt.s32.totalorder %s20, 1
      %s343 = scalar_select %p342, %s20, 1
      %s344 = scalar_lea.vmem %s6, %s343
      %p345 = scmp.lt.s32.totalorder %s20, 1
      %s346 = scalar_select %p345, %s20, 1
      %s347 = scalar_lea.vmem %s7, %s346
      %p348 = scmp.lt.s32.totalorder %s20, 1
      %s349 = scalar_select %p348, %s20, 1
      %s350 = scalar_lea.vmem %s8, %s349
      %v352 = vld [vmem:[%s328] sm:$0xf]
      %v353 = vld [vmem:[%s328 + $0x4] sm:$0xf]
      %v354 = vld [vmem:[%s328 + $0x8] sm:$0xf]
      %v355 = vld [vmem:[%s328 + $0xc] sm:$0xf]
      %v356 = vld [vmem:[%s328 + $0x10] sm:$0xf]
      %v357 = vld [vmem:[%s328 + $0x14] sm:$0xf]
      %v358 = vld [vmem:[%s328 + $0x18] sm:$0xf]
      %v359 = vld [vmem:[%s328 + $0x1c] sm:$0xf]
      %v360 = vld [vmem:[%s1] sm:$0xf]
      %v361 = vld [vmem:[%s1 + $0x4] sm:$0xf]
      %v362 = vld [vmem:[%s1 + $0x8] sm:$0xf]
      %v363 = vld [vmem:[%s1 + $0xc] sm:$0xf]
      %v364 = vld [vmem:[%s1 + $0x10] sm:$0xf]
      %v365 = vld [vmem:[%s1 + $0x14] sm:$0xf]
      %v366 = vld [vmem:[%s1 + $0x18] sm:$0xf]
      %v367 = vld [vmem:[%s1 + $0x1c] sm:$0xf]
      %v368 = vld [vmem:[%s1 + $0x20] sm:$0xf]
      %v369 = vld [vmem:[%s1 + $0x24] sm:$0xf]
      %v370 = vld [vmem:[%s1 + $0x28] sm:$0xf]
      %v371 = vld [vmem:[%s1 + $0x2c] sm:$0xf]
      %v372 = vld [vmem:[%s1 + $0x30] sm:$0xf]
      %v373 = vld [vmem:[%s1 + $0x34] sm:$0xf]
      %v374 = vld [vmem:[%s1 + $0x38] sm:$0xf]
      %v375 = vld [vmem:[%s1 + $0x3c] sm:$0xf]
      %v384 = vunpack.c.l.b16 %v352
      %v385 = vunpack.c.l.b16 %v353
      %v386 = vunpack.c.l.b16 %v354
      %v387 = vunpack.c.l.b16 %v355
      %v388 = vunpack.c.l.b16 %v356
      %v389 = vunpack.c.l.b16 %v357
      %v390 = vunpack.c.l.b16 %v358
      %v391 = vunpack.c.l.b16 %v359
      %v392 = vpack.c.b16 %v385, %v384
      %v393 = vpack.c.b16 %v387, %v386
      %v394 = vpack.c.b16 %v389, %v388
      %v395 = vpack.c.b16 %v391, %v390
      %v416 = vunpack.c.l.b16 %v360
      %v417 = vunpack.c.l.b16 %v361
      %v418 = vunpack.c.l.b16 %v362
      %v419 = vunpack.c.l.b16 %v363
      %v420 = vunpack.c.l.b16 %v364
      %v421 = vunpack.c.l.b16 %v365
      %v422 = vunpack.c.l.b16 %v366
      %v423 = vunpack.c.l.b16 %v367
      %v424 = vunpack.c.l.b16 %v368
      %v425 = vunpack.c.l.b16 %v369
      %v426 = vunpack.c.l.b16 %v370
      %v427 = vunpack.c.l.b16 %v371
      %v428 = vunpack.c.l.b16 %v372
      %v429 = vunpack.c.l.b16 %v373
      %v430 = vunpack.c.l.b16 %v374
      %v431 = vunpack.c.l.b16 %v375
      %v432 = vpack.c.b16 %v417, %v416
      %v433 = vpack.c.b16 %v419, %v418
      %v434 = vpack.c.b16 %v421, %v420
      %v435 = vpack.c.b16 %v423, %v422
      %v436 = vpack.c.b16 %v425, %v424
      %v437 = vpack.c.b16 %v427, %v426
      %v438 = vpack.c.b16 %v429, %v428
      %v439 = vpack.c.b16 %v431, %v430
      %448 = vmatprep.subr.bf16.mxu0 0
      %449 = vmatpush1.bf16.msra.mxu0 %v432
      %450 = vmatprep.subr.bf16.mxu0 0
      %451 = vmatpush1.bf16.msra.mxu0 %v433
      %452 = vmatprep.subr.bf16.mxu0 0
      %453 = vmatpush1.bf16.msra.mxu0 %v434
      %454 = vmatprep.subr.bf16.mxu0 0
      %455 = vmatpush1.bf16.msra.mxu0 %v435
      %456 = vmatprep.subr.bf16.mxu0 0
      %457 = vmatpush1.bf16.msra.mxu0 %v436
      %458 = vmatprep.subr.bf16.mxu0 0
      %459 = vmatpush1.bf16.msra.mxu0 %v437
      %460 = vmatprep.subr.bf16.mxu0 0
      %461 = vmatpush1.bf16.msra.mxu0 %v438
      %462 = vmatprep.subr.bf16.mxu0 0
      %463 = vmatpush1.bf16.msra.mxu0 %v439
      %464 = vmatprep.subr.bf16.mxu0 0
      %465 = vmatpush1.bf16.msra.mxu0 0
      %466 = vmatprep.subr.bf16.mxu0 0
      %467 = vmatpush1.bf16.msra.mxu0 0
      %468 = vmatprep.subr.bf16.mxu0 0
      %469 = vmatpush1.bf16.msra.mxu0 0
      %470 = vmatprep.subr.bf16.mxu0 0
      %471 = vmatpush1.bf16.msra.mxu0 0
      %472 = vmatprep.subr.bf16.mxu0 0
      %473 = vmatpush1.bf16.msra.mxu0 0
      %474 = vmatprep.subr.bf16.mxu0 0
      %475 = vmatpush1.bf16.msra.mxu0 0
      %476 = vmatprep.subr.bf16.mxu0 0
      %477 = vmatpush1.bf16.msra.mxu0 0
      %478 = vmatprep.subr.bf16.mxu0 0
      %479 = vmatpush1.bf16.msra.mxu0 0
      %480 = vmatprep.mubr.bf16.mxu0 0
      %481 = vmatmul.mubr.bf16.gmra.mrb[0].mxu0 %v392
      %v482 = vpop.f32.mrb[0].mxu0
      %v483 = vadd.f32 0.0, %v482
      %v484 = vpop.f32.mrb[0].mxu0
      %v485 = vpop.f32.mrb[0].mxu0
      %v486 = vadd.f32 0.0, %v485
      %v487 = vpop.f32.mrb[0].mxu0
      %488 = vmatprep.mubr.bf16.mxu0 0
      %489 = vmatmul.mubr.bf16.gmra.mrb[0].mxu0 %v393
      %v490 = vpop.f32.mrb[0].mxu0
      %v491 = vadd.f32 0.0, %v490
      %v492 = vpop.f32.mrb[0].mxu0
      %v493 = vpop.f32.mrb[0].mxu0
      %v494 = vadd.f32 0.0, %v493
      %v495 = vpop.f32.mrb[0].mxu0
      %496 = vmatprep.mubr.bf16.mxu0 0
      %497 = vmatmul.mubr.bf16.gmra.mrb[0].mxu0 %v394
      %v498 = vpop.f32.mrb[0].mxu0
      %v499 = vadd.f32 0.0, %v498
      %v500 = vpop.f32.mrb[0].mxu0
      %v501 = vpop.f32.mrb[0].mxu0
      %v502 = vadd.f32 0.0, %v501
      %v503 = vpop.f32.mrb[0].mxu0
      %504 = vmatprep.mubr.bf16.mxu0 0
      %505 = vmatmul.mubr.bf16.gmra.mrb[0].mxu0 %v395
      %v506 = vpop.f32.mrb[0].mxu0
      %v507 = vadd.f32 0.0, %v506
      %v508 = vpop.f32.mrb[0].mxu0
      %v509 = vpop.f32.mrb[0].mxu0
      %v510 = vadd.f32 0.0, %v509
      %v511 = vpop.f32.mrb[0].mxu0
      %512 = vdwg.mxu0
      %v513 = vpack.c.bf16 %v483, %v483
      %v514 = vpack.c.bf16 %v486, %v486
      %v515 = vpack.c.bf16 %v491, %v491
      %v516 = vpack.c.bf16 %v494, %v494
      %v517 = vpack.c.bf16 %v499, %v499
      %v518 = vpack.c.bf16 %v502, %v502
      %v519 = vpack.c.bf16 %v507, %v507
      %v520 = vpack.c.bf16 %v510, %v510
      %521 = vst [vmem:[%s333] sm:$0xf] %v513
      %522 = vst [vmem:[%s333 + $0x4] sm:$0xf] %v514
      %523 = vst [vmem:[%s333 + $0x8] sm:$0xf] %v515
      %524 = vst [vmem:[%s333 + $0xc] sm:$0xf] %v516
      %525 = vst [vmem:[%s333 + $0x10] sm:$0xf] %v517
      %526 = vst [vmem:[%s333 + $0x14] sm:$0xf] %v518
      %527 = vst [vmem:[%s333 + $0x18] sm:$0xf] %v519
      %528 = vst [vmem:[%s333 + $0x1c] sm:$0xf] %v520
      %v529 = vadd.f32 %v483, %v486
      %v530 = vadd.f32 %v529, %v491
      %v531 = vadd.f32 %v530, %v494
      %v532 = vadd.f32 %v531, %v499
      %v533 = vadd.f32 %v532, %v502
      %v534 = vadd.f32 %v533, %v507
      %v535 = vadd.f32 %v534, %v510
      %v536 = vrot.slane %v535, 4
      %v537 = vadd.f32 %v535, %v536
      %v538 = vrot.slane %v537, 2
      %v539 = vadd.f32 %v537, %v538
      %v540 = vrot.slane %v539, 1
      %v541 = vadd.f32 %v539, %v540
      %542 = vst [vmem:[%s341] sm:$0x1] %v541
      %v543 = vmul.f32 %v483, %v483
      %v544 = vmul.f32 %v486, %v486
      %v545 = vmul.f32 %v491, %v491
      %v546 = vmul.f32 %v494, %v494
      %v547 = vmul.f32 %v499, %v499
      %v548 = vmul.f32 %v502, %v502
      %v549 = vmul.f32 %v507, %v507
      %v550 = vmul.f32 %v510, %v510
      %v551 = vadd.f32 %v543, %v544
      %v552 = vadd.f32 %v551, %v545
      %v553 = vadd.f32 %v552, %v546
      %v554 = vadd.f32 %v553, %v547
      %v555 = vadd.f32 %v554, %v548
      %v556 = vadd.f32 %v555, %v549
      %v557 = vadd.f32 %v556, %v550
      %v558 = vrot.slane %v557, 4
      %v559 = vadd.f32 %v557, %v558
      %v560 = vrot.slane %v559, 2
      %v561 = vadd.f32 %v559, %v560
      %v562 = vrot.slane %v561, 1
      %v563 = vadd.f32 %v561, %v562
      %564 = vst [vmem:[%s344] sm:$0x1] %v563
      %v565 = vld [vmem:[%s2] sm:$0xf]
      %v566 = vld [vmem:[%s2 + $0x4] sm:$0xf]
      %v567 = vld [vmem:[%s2 + $0x8] sm:$0xf]
      %v568 = vld [vmem:[%s2 + $0xc] sm:$0xf]
      %v569 = vld [vmem:[%s2 + $0x10] sm:$0xf]
      %v570 = vld [vmem:[%s2 + $0x14] sm:$0xf]
      %v571 = vld [vmem:[%s2 + $0x18] sm:$0xf]
      %v572 = vld [vmem:[%s2 + $0x1c] sm:$0xf]
      %v573 = vld [vmem:[%s2 + $0x20] sm:$0xf]
      %v574 = vld [vmem:[%s2 + $0x24] sm:$0xf]
      %v575 = vld [vmem:[%s2 + $0x28] sm:$0xf]
      %v576 = vld [vmem:[%s2 + $0x2c] sm:$0xf]
      %v577 = vld [vmem:[%s2 + $0x30] sm:$0xf]
      %v578 = vld [vmem:[%s2 + $0x34] sm:$0xf]
      %v579 = vld [vmem:[%s2 + $0x38] sm:$0xf]
      %v580 = vld [vmem:[%s2 + $0x3c] sm:$0xf]
      %v597 = vunpack.c.l.b16 %v565
      %v598 = vunpack.c.l.b16 %v566
      %v599 = vunpack.c.l.b16 %v567
      %v600 = vunpack.c.l.b16 %v568
      %v601 = vunpack.c.l.b16 %v569
      %v602 = vunpack.c.l.b16 %v570
      %v603 = vunpack.c.l.b16 %v571
      %v604 = vunpack.c.l.b16 %v572
      %v605 = vunpack.c.l.b16 %v573
      %v606 = vunpack.c.l.b16 %v574
      %v607 = vunpack.c.l.b16 %v575
      %v608 = vunpack.c.l.b16 %v576
      %v609 = vunpack.c.l.b16 %v577
      %v610 = vunpack.c.l.b16 %v578
      %v611 = vunpack.c.l.b16 %v579
      %v612 = vunpack.c.l.b16 %v580
      %v613 = vpack.c.b16 %v598, %v597
      %v614 = vpack.c.b16 %v600, %v599
      %v615 = vpack.c.b16 %v602, %v601
      %v616 = vpack.c.b16 %v604, %v603
      %v617 = vpack.c.b16 %v606, %v605
      %v618 = vpack.c.b16 %v608, %v607
      %v619 = vpack.c.b16 %v610, %v609
      %v620 = vpack.c.b16 %v612, %v611
      %629 = vmatprep.subr.bf16.mxu0 0
      %630 = vmatpush1.bf16.msra.mxu0 %v613
      %631 = vmatprep.subr.bf16.mxu0 0
      %632 = vmatpush1.bf16.msra.mxu0 %v614
      %633 = vmatprep.subr.bf16.mxu0 0
      %634 = vmatpush1.bf16.msra.mxu0 %v615
      %635 = vmatprep.subr.bf16.mxu0 0
      %636 = vmatpush1.bf16.msra.mxu0 %v616
      %637 = vmatprep.subr.bf16.mxu0 0
      %638 = vmatpush1.bf16.msra.mxu0 %v617
      %639 = vmatprep.subr.bf16.mxu0 0
      %640 = vmatpush1.bf16.msra.mxu0 %v618
      %641 = vmatprep.subr.bf16.mxu0 0
      %642 = vmatpush1.bf16.msra.mxu0 %v619
      %643 = vmatprep.subr.bf16.mxu0 0
      %644 = vmatpush1.bf16.msra.mxu0 %v620
      %645 = vmatprep.subr.bf16.mxu0 0
      %646 = vmatpush1.bf16.msra.mxu0 0
      %647 = vmatprep.subr.bf16.mxu0 0
      %648 = vmatpush1.bf16.msra.mxu0 0
      %649 = vmatprep.subr.bf16.mxu0 0
      %650 = vmatpush1.bf16.msra.mxu0 0
      %651 = vmatprep.subr.bf16.mxu0 0
      %652 = vmatpush1.bf16.msra.mxu0 0
      %653 = vmatprep.subr.bf16.mxu0 0
      %654 = vmatpush1.bf16.msra.mxu0 0
      %655 = vmatprep.subr.bf16.mxu0 0
      %656 = vmatpush1.bf16.msra.mxu0 0
      %657 = vmatprep.subr.bf16.mxu0 0
      %658 = vmatpush1.bf16.msra.mxu0 0
      %659 = vmatprep.subr.bf16.mxu0 0
      %660 = vmatpush1.bf16.msra.mxu0 0
      %661 = vmatprep.mubr.bf16.mxu0 0
      %662 = vmatmul.mubr.bf16.gmra.mrb[0].mxu0 %v392
      %v663 = vpop.f32.mrb[0].mxu0
      %v664 = vadd.f32 0.0, %v663
      %v665 = vpop.f32.mrb[0].mxu0
      %v666 = vpop.f32.mrb[0].mxu0
      %v667 = vadd.f32 0.0, %v666
      %v668 = vpop.f32.mrb[0].mxu0
      %669 = vmatprep.mubr.bf16.mxu0 0
      %670 = vmatmul.mubr.bf16.gmra.mrb[0].mxu0 %v393
      %v671 = vpop.f32.mrb[0].mxu0
      %v672 = vadd.f32 0.0, %v671
      %v673 = vpop.f32.mrb[0].mxu0
      %v674 = vpop.f32.mrb[0].mxu0
      %v675 = vadd.f32 0.0, %v674
      %v676 = vpop.f32.mrb[0].mxu0
      %677 = vmatprep.mubr.bf16.mxu0 0
      %678 = vmatmul.mubr.bf16.gmra.mrb[0].mxu0 %v394
      %v679 = vpop.f32.mrb[0].mxu0
      %v680 = vadd.f32 0.0, %v679
      %v681 = vpop.f32.mrb[0].mxu0
      %v682 = vpop.f32.mrb[0].mxu0
      %v683 = vadd.f32 0.0, %v682
      %v684 = vpop.f32.mrb[0].mxu0
      %685 = vmatprep.mubr.bf16.mxu0 0
      %686 = vmatmul.mubr.bf16.gmra.mrb[0].mxu0 %v395
      %v687 = vpop.f32.mrb[0].mxu0
      %v688 = vadd.f32 0.0, %v687
      %v689 = vpop.f32.mrb[0].mxu0
      %v690 = vpop.f32.mrb[0].mxu0
      %v691 = vadd.f32 0.0, %v690
      %v692 = vpop.f32.mrb[0].mxu0
      %693 = vdwg.mxu0
      %v694 = vpack.c.bf16 %v664, %v664
      %v695 = vpack.c.bf16 %v667, %v667
      %v696 = vpack.c.bf16 %v672, %v672
      %v697 = vpack.c.bf16 %v675, %v675
      %v698 = vpack.c.bf16 %v680, %v680
      %v699 = vpack.c.bf16 %v683, %v683
      %v700 = vpack.c.bf16 %v688, %v688
      %v701 = vpack.c.bf16 %v691, %v691
      %702 = vst [vmem:[%s338] sm:$0xf] %v694
      %703 = vst [vmem:[%s338 + $0x4] sm:$0xf] %v695
      %704 = vst [vmem:[%s338 + $0x8] sm:$0xf] %v696
      %705 = vst [vmem:[%s338 + $0xc] sm:$0xf] %v697
      %706 = vst [vmem:[%s338 + $0x10] sm:$0xf] %v698
      %707 = vst [vmem:[%s338 + $0x14] sm:$0xf] %v699
      %708 = vst [vmem:[%s338 + $0x18] sm:$0xf] %v700
      %709 = vst [vmem:[%s338 + $0x1c] sm:$0xf] %v701
      %v710 = vadd.f32 %v664, %v667
      %v711 = vadd.f32 %v710, %v672
      %v712 = vadd.f32 %v711, %v675
      %v713 = vadd.f32 %v712, %v680
      %v714 = vadd.f32 %v713, %v683
      %v715 = vadd.f32 %v714, %v688
      %v716 = vadd.f32 %v715, %v691
      %v717 = vrot.slane %v716, 4
      %v718 = vadd.f32 %v716, %v717
      %v719 = vrot.slane %v718, 2
      %v720 = vadd.f32 %v718, %v719
      %v721 = vrot.slane %v720, 1
      %v722 = vadd.f32 %v720, %v721
      %723 = vst [vmem:[%s347] sm:$0x1] %v722
      %v724 = vmul.f32 %v664, %v664
      %v725 = vmul.f32 %v667, %v667
      %v726 = vmul.f32 %v672, %v672
      %v727 = vmul.f32 %v675, %v675
      %v728 = vmul.f32 %v680, %v680
      %v729 = vmul.f32 %v683, %v683
      %v730 = vmul.f32 %v688, %v688
      %v731 = vmul.f32 %v691, %v691
      %v732 = vadd.f32 %v724, %v725
      %v733 = vadd.f32 %v732, %v726
      %v734 = vadd.f32 %v733, %v727
      %v735 = vadd.f32 %v734, %v728
      %v736 = vadd.f32 %v735, %v729
      %v737 = vadd.f32 %v736, %v730
      %v738 = vadd.f32 %v737, %v731
      %v739 = vrot.slane %v738, 4
      %v740 = vadd.f32 %v738, %v739
      %v741 = vrot.slane %v740, 2
      %v742 = vadd.f32 %v740, %v741
      %v743 = vrot.slane %v742, 1
      %v744 = vadd.f32 %v742, %v743
      %745 = vst [vmem:[%s350] sm:$0x1] %v744
      %p746 = scmp.lt.s32.totalorder %s20, 1
      %s747 = scalar_select %p746, %s20, 1
      %s748 = smul.addr %s747, 8
      %s749 = smul.addr %s748, 4
      %s750 = scalar_lea.vmem %s3, %s749
      %p751 = scmp.lt.s32.totalorder %s20, 1
      %s752 = scalar_select %p751, %s20, 1
      %s753 = smul.addr %s752, 8
      %s754 = smul.addr %s753, 4
      %s755 = scalar_lea.vmem %s4, %s754
      %p756 = scmp.lt.s32.totalorder %s20, 1
      %s757 = scalar_select %p756, %s20, 1
      %s758 = scalar_lea.vmem %s5, %s757
      %p759 = scmp.lt.s32.totalorder %s20, 1
      %s760 = scalar_select %p759, %s20, 1
      %s761 = scalar_lea.vmem %s6, %s760
      %p762 = scmp.lt.s32.totalorder %s20, 1
      %s763 = scalar_select %p762, %s20, 1
      %s764 = scalar_lea.vmem %s7, %s763
      %p765 = scmp.lt.s32.totalorder %s20, 1
      %s766 = scalar_select %p765, %s20, 1
      %s767 = scalar_lea.vmem %s8, %s766
      // Predicated region
      $region33: #{basic_block_forward.3} parent=31 // pred_check
        %p768 = pneg %p106
      $region34: #{basic_block_forward.3} parent=31 // pred_check_branch
        %770 = sbr.rel (%p768) target = $region36
      $region35: #{basic_block_forward.3} parent=31 // pred_region
        _
      $region36: #{basic_block_forward.3} parent=31 // pred_fallthru
        _
      // Predicated region
      $region37: #{basic_block_forward.3} parent=31 // pred_check
        %p771 = pneg %p132
      $region38: #{basic_block_forward.3} parent=31 // pred_check_branch
        %773 = sbr.rel (%p771) target = $region40
      $region39: #{basic_block_forward.3} parent=31 // pred_region
        _
      $region40: #{basic_block_forward.3} parent=31 // pred_fallthru
        _
      // Predicated region
      $region41: #{basic_block_forward.3} parent=31 // pred_check
        %p774 = pneg %p158
      $region42: #{basic_block_forward.3} parent=31 // pred_check_branch
        %776 = sbr.rel (%p774) target = $region44
      $region43: #{basic_block_forward.3} parent=31 // pred_region
        _
      $region44: #{basic_block_forward.3} parent=31 // pred_fallthru
        _
      // Predicated region
      $region45: #{basic_block_forward.3} parent=31 // pred_check
        %p777 = pneg %p184
      $region46: #{basic_block_forward.3} parent=31 // pred_check_branch
        %779 = sbr.rel (%p777) target = $region48
      $region47: #{basic_block_forward.3} parent=31 // pred_region
        _
      $region48: #{basic_block_forward.3} parent=31 // pred_fallthru
        _
      // Predicated region
      $region49: #{basic_block_forward.3} parent=31 // pred_check
        %p780 = pneg %p210
      $region50: #{basic_block_forward.3} parent=31 // pred_check_branch
        %782 = sbr.rel (%p780) target = $region52
      $region51: #{basic_block_forward.3} parent=31 // pred_region
        _
      $region52: #{basic_block_forward.3} parent=31 // pred_fallthru
        _
      // Predicated region
      $region53: #{basic_block_forward.3} parent=31 // pred_check
        %p783 = pneg %p236
      $region54: #{basic_block_forward.3} parent=31 // pred_check_branch
        %785 = sbr.rel (%p783) target = $region56
      $region55: #{basic_block_forward.3} parent=31 // pred_region
        _
      $region56: #{basic_block_forward.3} parent=31 // pred_fallthru
        _
    $region32: #{basic_block_forward.3} parent=5 // pred_fallthru
      _
    %p786 = scmp.le.s32.totalorder 2, %s15
    // Predicated region
    $region57: #{basic_block_forward.3} parent=5 // pred_check
      %p787 = pneg %p786
    $region58: #{basic_block_forward.3} parent=5 // pred_check_branch
      %789 = sbr.rel (%p787) target = $region60
    $region59: #{basic_block_forward.3} parent=5 // pred_region
      %s790 = ssub.s32 %s15, 2
      // Predicated region
      $region61: #{basic_block_forward.3} parent=59 // pred_check
        %p791 = pneg %p112
      $region62: #{basic_block_forward.3} parent=59 // pred_check_branch
        %793 = sbr.rel (%p791) target = $region64
      $region63: #{basic_block_forward.3} parent=59 // pred_region
        %p794 = scmp.lt.s32.totalorder %s21, 1
        %s795 = scalar_select %p794, %s21, 1
        %s796 = smul.addr %s795, 8
        %s797 = smul.addr %s796, 4
        %s798 = scalar_lea.vmem %s3, %s797
      $region64: #{basic_block_forward.3} parent=59 // pred_fallthru
        _
      // Predicated region
      $region65: #{basic_block_forward.3} parent=59 // pred_check
        %p799 = pneg %p138
      $region66: #{basic_block_forward.3} parent=59 // pred_check_branch
        %801 = sbr.rel (%p799) target = $region68
      $region67: #{basic_block_forward.3} parent=59 // pred_region
        %p802 = scmp.lt.s32.totalorder %s21, 1
        %s803 = scalar_select %p802, %s21, 1
        %s804 = smul.addr %s803, 8
        %s805 = smul.addr %s804, 4
        %s806 = scalar_lea.vmem %s4, %s805
      $region68: #{basic_block_forward.3} parent=59 // pred_fallthru
        _
      // Predicated region
      $region69: #{basic_block_forward.3} parent=59 // pred_check
        %p807 = pneg %p164
      $region70: #{basic_block_forward.3} parent=59 // pred_check_branch
        %809 = sbr.rel (%p807) target = $region72
      $region71: #{basic_block_forward.3} parent=59 // pred_region
        %p810 = scmp.lt.s32.totalorder %s21, 1
        %s811 = scalar_select %p810, %s21, 1
        %s812 = scalar_lea.vmem %s5, %s811
      $region72: #{basic_block_forward.3} parent=59 // pred_fallthru
        _
      // Predicated region
      $region73: #{basic_block_forward.3} parent=59 // pred_check
        %p813 = pneg %p190
      $region74: #{basic_block_forward.3} parent=59 // pred_check_branch
        %815 = sbr.rel (%p813) target = $region76
      $region75: #{basic_block_forward.3} parent=59 // pred_region
        %p816 = scmp.lt.s32.totalorder %s21, 1
        %s817 = scalar_select %p816, %s21, 1
        %s818 = scalar_lea.vmem %s6, %s817
      $region76: #{basic_block_forward.3} parent=59 // pred_fallthru
        _
      // Predicated region
      $region77: #{basic_block_forward.3} parent=59 // pred_check
        %p819 = pneg %p216
      $region78: #{basic_block_forward.3} parent=59 // pred_check_branch
        %821 = sbr.rel (%p819) target = $region80
      $region79: #{basic_block_forward.3} parent=59 // pred_region
        %p822 = scmp.lt.s32.totalorder %s21, 1
        %s823 = scalar_select %p822, %s21, 1
        %s824 = scalar_lea.vmem %s7, %s823
      $region80: #{basic_block_forward.3} parent=59 // pred_fallthru
        _
      // Predicated region
      $region81: #{basic_block_forward.3} parent=59 // pred_check
        %p825 = pneg %p242
      $region82: #{basic_block_forward.3} parent=59 // pred_check_branch
        %827 = sbr.rel (%p825) target = $region84
      $region83: #{basic_block_forward.3} parent=59 // pred_region
        %p828 = scmp.lt.s32.totalorder %s21, 1
        %s829 = scalar_select %p828, %s21, 1
        %s830 = scalar_lea.vmem %s8, %s829
      $region84: #{basic_block_forward.3} parent=59 // pred_fallthru
        _
    $region60: #{basic_block_forward.3} parent=5 // pred_fallthru
      _
  $region6: #{basic_block_forward.3} parent=0 // loop_footer
    %s19 = sadd.s32 1, %s15
  $region7: #{basic_block_forward.3} parent=0 // loop_footer_branch
    %14 = sbr.rel target = $region3
  $region8: #{basic_block_forward.3} parent=0 // loop_exit
    _

// kernel: basic_block_forward.5
$region0: #{basic_block_forward.5}
  #allocation0 [shape = 'u32[]', space=smem, size = 0x4, offset = 0x4, fixed_abs, tag = 'smem constant byte address 0x4 - core index']
  #allocation1 [shape = 'u32[144,128]{1,0:T(1,128)}', space=vmem, size = 0x12000, scoped, tag = 'internal scratch']
  %s0 = inlined_call_operand.vmem [shape: bf16[128,128], index: 0, kind: input, shape index: {}]
  %s1 = inlined_call_operand.vmem [shape: bf16[128,128], index: 1, kind: input, shape index: {}]
  %s2 = inlined_call_operand.vmem [shape: f32[1,128], index: 2, kind: input, shape index: {}]
  %s3 = inlined_call_operand.vmem [shape: f32[1,128], index: 3, kind: input, shape index: {}]
  %s4 = inlined_call_operand.vmem [shape: f32[1,128], index: 4, kind: input, shape index: {}]
  %s5 = inlined_call_operand.vmem [shape: f32[1,128], index: 5, kind: input, shape index: {}]
  %s6 = inlined_call_operand.vmem [shape: f32[128,128], index: 6, kind: output, shape index: {}]
  %s7 = sld [smem:[#allocation0]]
  $region34: #{basic_block_forward.5} parent=0
    _
  %s9 = ssub.s32 1, %s7
  %s10 = scalar_select 0, %s9, %s7
  // Predicated region
  $region2: #{basic_block_forward.5} parent=0 // pred_check
    _
  $region3: #{basic_block_forward.5} parent=0 // pred_check_branch
    %12 = sbr.rel (0) target = $region5
  $region4: #{basic_block_forward.5} parent=0 // pred_region
    _
  $region5: #{basic_block_forward.5} parent=0 // pred_fallthru
    _
  // Predicated region
  $region6: #{basic_block_forward.5} parent=0 // pred_check
    _
  $region7: #{basic_block_forward.5} parent=0 // pred_check_branch
    %14 = sbr.rel (0) target = $region9
  $region8: #{basic_block_forward.5} parent=0 // pred_region
    _
  $region9: #{basic_block_forward.5} parent=0 // pred_fallthru
    _
  // Predicated region
  $region10: #{basic_block_forward.5} parent=0 // pred_check
    _
  $region11: #{basic_block_forward.5} parent=0 // pred_check_branch
    %16 = sbr.rel (0) target = $region13
  $region12: #{basic_block_forward.5} parent=0 // pred_region
    _
  $region13: #{basic_block_forward.5} parent=0 // pred_fallthru
    _
  // Predicated region
  $region14: #{basic_block_forward.5} parent=0 // pred_check
    _
  $region15: #{basic_block_forward.5} parent=0 // pred_check_branch
    %18 = sbr.rel (0) target = $region17
  $region16: #{basic_block_forward.5} parent=0 // pred_region
    _
  $region17: #{basic_block_forward.5} parent=0 // pred_fallthru
    _
  // Predicated region
  $region18: #{basic_block_forward.5} parent=0 // pred_check
    _
  $region19: #{basic_block_forward.5} parent=0 // pred_check_branch
    %20 = sbr.rel (0) target = $region21
  $region20: #{basic_block_forward.5} parent=0 // pred_region
    _
  $region21: #{basic_block_forward.5} parent=0 // pred_fallthru
    _
  // Predicated region
  $region22: #{basic_block_forward.5} parent=0 // pred_check
    _
  $region23: #{basic_block_forward.5} parent=0 // pred_check_branch
    %22 = sbr.rel (0) target = $region25
  $region24: #{basic_block_forward.5} parent=0 // pred_region
    _
  $region25: #{basic_block_forward.5} parent=0 // pred_fallthru
    _
  %v23 = vld [vmem:[%s0] sm:$0xf]
  %v24 = vld [vmem:[%s0 + $0x4] sm:$0xf]
  %v25 = vld [vmem:[%s0 + $0x8] sm:$0xf]
  %v26 = vld [vmem:[%s0 + $0xc] sm:$0xf]
  %v27 = vld [vmem:[%s0 + $0x10] sm:$0xf]
  %v28 = vld [vmem:[%s0 + $0x14] sm:$0xf]
  %v29 = vld [vmem:[%s0 + $0x18] sm:$0xf]
  %v30 = vld [vmem:[%s0 + $0x1c] sm:$0xf]
  %v31 = vld [vmem:[%s0 + $0x20] sm:$0xf]
  %v32 = vld [vmem:[%s0 + $0x24] sm:$0xf]
  %v33 = vld [vmem:[%s0 + $0x28] sm:$0xf]
  %v34 = vld [vmem:[%s0 + $0x2c] sm:$0xf]
  %v35 = vld [vmem:[%s0 + $0x30] sm:$0xf]
  %v36 = vld [vmem:[%s0 + $0x34] sm:$0xf]
  %v37 = vld [vmem:[%s0 + $0x38] sm:$0xf]
  %v38 = vld [vmem:[%s0 + $0x3c] sm:$0xf]
  %v39 = vunpack.c.l.bf16 %v23
  %v40 = vunpack.c.l.bf16 %v24
  %v41 = vunpack.c.l.bf16 %v25
  %v42 = vunpack.c.l.bf16 %v26
  %v43 = vunpack.c.l.bf16 %v27
  %v44 = vunpack.c.l.bf16 %v28
  %v45 = vunpack.c.l.bf16 %v29
  %v46 = vunpack.c.l.bf16 %v30
  %v47 = vunpack.c.l.bf16 %v31
  %v48 = vunpack.c.l.bf16 %v32
  %v49 = vunpack.c.l.bf16 %v33
  %v50 = vunpack.c.l.bf16 %v34
  %v51 = vunpack.c.l.bf16 %v35
  %v52 = vunpack.c.l.bf16 %v36
  %v53 = vunpack.c.l.bf16 %v37
  %v54 = vunpack.c.l.bf16 %v38
  %v55 = vld [vmem:[%s2] sm:$0x1]
  %v57 = vlaneseq
  %v58 = vshrl.u32 %v57, 7
  %v59 = vsub.s32 0, %v58
  %v60 = vrot.slane %v55, %v59
  %v62 = vmul.f32 %v39, %v60
  %v63 = vmul.f32 %v40, %v60
  %v64 = vmul.f32 %v41, %v60
  %v65 = vmul.f32 %v42, %v60
  %v66 = vmul.f32 %v43, %v60
  %v67 = vmul.f32 %v44, %v60
  %v68 = vmul.f32 %v45, %v60
  %v69 = vmul.f32 %v46, %v60
  %v70 = vmul.f32 %v47, %v60
  %v71 = vmul.f32 %v48, %v60
  %v72 = vmul.f32 %v49, %v60
  %v73 = vmul.f32 %v50, %v60
  %v74 = vmul.f32 %v51, %v60
  %v75 = vmul.f32 %v52, %v60
  %v76 = vmul.f32 %v53, %v60
  %v77 = vmul.f32 %v54, %v60
  %v78 = vld [vmem:[%s3] sm:$0x1]
  %v80 = vlaneseq
  %v81 = vshrl.u32 %v80, 7
  %v82 = vsub.s32 0, %v81
  %v83 = vrot.slane %v78, %v82
  %v85 = vadd.f32 %v62, %v83
  %v86 = vadd.f32 %v63, %v83
  %v87 = vadd.f32 %v64, %v83
  %v88 = vadd.f32 %v65, %v83
  %v89 = vadd.f32 %v66, %v83
  %v90 = vadd.f32 %v67, %v83
  %v91 = vadd.f32 %v68, %v83
  %v92 = vadd.f32 %v69, %v83
  %v93 = vadd.f32 %v70, %v83
  %v94 = vadd.f32 %v71, %v83
  %v95 = vadd.f32 %v72, %v83
  %v96 = vadd.f32 %v73, %v83
  %v97 = vadd.f32 %v74, %v83
  %v98 = vadd.f32 %v75, %v83
  %v99 = vadd.f32 %v76, %v83
  %v100 = vadd.f32 %v77, %v83
  %v101 = vld [vmem:[%s1] sm:$0xf]
  %v102 = vld [vmem:[%s1 + $0x4] sm:$0xf]
  %v103 = vld [vmem:[%s1 + $0x8] sm:$0xf]
  %v104 = vld [vmem:[%s1 + $0xc] sm:$0xf]
  %v105 = vld [vmem:[%s1 + $0x10] sm:$0xf]
  %v106 = vld [vmem:[%s1 + $0x14] sm:$0xf]
  %v107 = vld [vmem:[%s1 + $0x18] sm:$0xf]
  %v108 = vld [vmem:[%s1 + $0x1c] sm:$0xf]
  %v109 = vld [vmem:[%s1 + $0x20] sm:$0xf]
  %v110 = vld [vmem:[%s1 + $0x24] sm:$0xf]
  %v111 = vld [vmem:[%s1 + $0x28] sm:$0xf]
  %v112 = vld [vmem:[%s1 + $0x2c] sm:$0xf]
  %v113 = vld [vmem:[%s1 + $0x30] sm:$0xf]
  %v114 = vld [vmem:[%s1 + $0x34] sm:$0xf]
  %v115 = vld [vmem:[%s1 + $0x38] sm:$0xf]
  %v116 = vld [vmem:[%s1 + $0x3c] sm:$0xf]
  %v117 = vunpack.c.l.bf16 %v101
  %v118 = vunpack.c.l.bf16 %v102
  %v119 = vunpack.c.l.bf16 %v103
  %v120 = vunpack.c.l.bf16 %v104
  %v121 = vunpack.c.l.bf16 %v105
  %v122 = vunpack.c.l.bf16 %v106
  %v123 = vunpack.c.l.bf16 %v107
  %v124 = vunpack.c.l.bf16 %v108
  %v125 = vunpack.c.l.bf16 %v109
  %v126 = vunpack.c.l.bf16 %v110
  %v127 = vunpack.c.l.bf16 %v111
  %v128 = vunpack.c.l.bf16 %v112
  %v129 = vunpack.c.l.bf16 %v113
  %v130 = vunpack.c.l.bf16 %v114
  %v131 = vunpack.c.l.bf16 %v115
  %v132 = vunpack.c.l.bf16 %v116
  %v133 = vld [vmem:[%s4] sm:$0x1]
  %v135 = vlaneseq
  %v136 = vshrl.u32 %v135, 7
  %v137 = vsub.s32 0, %v136
  %v138 = vrot.slane %v133, %v137
  %v140 = vmul.f32 %v117, %v138
  %v141 = vmul.f32 %v118, %v138
  %v142 = vmul.f32 %v119, %v138
  %v143 = vmul.f32 %v120, %v138
  %v144 = vmul.f32 %v121, %v138
  %v145 = vmul.f32 %v122, %v138
  %v146 = vmul.f32 %v123, %v138
  %v147 = vmul.f32 %v124, %v138
  %v148 = vmul.f32 %v125, %v138
  %v149 = vmul.f32 %v126, %v138
  %v150 = vmul.f32 %v127, %v138
  %v151 = vmul.f32 %v128, %v138
  %v152 = vmul.f32 %v129, %v138
  %v153 = vmul.f32 %v130, %v138
  %v154 = vmul.f32 %v131, %v138
  %v155 = vmul.f32 %v132, %v138
  %v156 = vadd.f32 %v85, %v140
  %v157 = vadd.f32 %v86, %v141
  %v158 = vadd.f32 %v87, %v142
  %v159 = vadd.f32 %v88, %v143
  %v160 = vadd.f32 %v89, %v144
  %v161 = vadd.f32 %v90, %v145
  %v162 = vadd.f32 %v91, %v146
  %v163 = vadd.f32 %v92, %v147
  %v164 = vadd.f32 %v93, %v148
  %v165 = vadd.f32 %v94, %v149
  %v166 = vadd.f32 %v95, %v150
  %v167 = vadd.f32 %v96, %v151
  %v168 = vadd.f32 %v97, %v152
  %v169 = vadd.f32 %v98, %v153
  %v170 = vadd.f32 %v99, %v154
  %v171 = vadd.f32 %v100, %v155
  %v172 = vld [vmem:[%s5] sm:$0x1]
  %v174 = vlaneseq
  %v175 = vshrl.u32 %v174, 7
  %v176 = vsub.s32 0, %v175
  %v177 = vrot.slane %v172, %v176
  %v179 = vadd.f32 %v156, %v177
  %v180 = vadd.f32 %v157, %v177
  %v181 = vadd.f32 %v158, %v177
  %v182 = vadd.f32 %v159, %v177
  %v183 = vadd.f32 %v160, %v177
  %v184 = vadd.f32 %v161, %v177
  %v185 = vadd.f32 %v162, %v177
  %v186 = vadd.f32 %v163, %v177
  %v187 = vadd.f32 %v164, %v177
  %v188 = vadd.f32 %v165, %v177
  %v189 = vadd.f32 %v166, %v177
  %v190 = vadd.f32 %v167, %v177
  %v191 = vadd.f32 %v168, %v177
  %v192 = vadd.f32 %v169, %v177
  %v193 = vadd.f32 %v170, %v177
  %v194 = vadd.f32 %v171, %v177
  %v195 = vmax.f32 %v179, 0.0
  %v196 = vmax.f32 %v180, 0.0
  %v197 = vmax.f32 %v181, 0.0
  %v198 = vmax.f32 %v182, 0.0
  %v199 = vmax.f32 %v183, 0.0
  %v200 = vmax.f32 %v184, 0.0
  %v201 = vmax.f32 %v185, 0.0
  %v202 = vmax.f32 %v186, 0.0
  %v203 = vmax.f32 %v187, 0.0
  %v204 = vmax.f32 %v188, 0.0
  %v205 = vmax.f32 %v189, 0.0
  %v206 = vmax.f32 %v190, 0.0
  %v207 = vmax.f32 %v191, 0.0
  %v208 = vmax.f32 %v192, 0.0
  %v209 = vmax.f32 %v193, 0.0
  %v210 = vmax.f32 %v194, 0.0
  %211 = vst [vmem:[%s6] sm:$0xff] %v195
  %212 = vst [vmem:[%s6 + $0x8] sm:$0xff] %v196
  %213 = vst [vmem:[%s6 + $0x10] sm:$0xff] %v197
  %214 = vst [vmem:[%s6 + $0x18] sm:$0xff] %v198
  %215 = vst [vmem:[%s6 + $0x20] sm:$0xff] %v199
  %216 = vst [vmem:[%s6 + $0x28] sm:$0xff] %v200
  %217 = vst [vmem:[%s6 + $0x30] sm:$0xff] %v201
  %218 = vst [vmem:[%s6 + $0x38] sm:$0xff] %v202
  %219 = vst [vmem:[%s6 + $0x40] sm:$0xff] %v203
  %220 = vst [vmem:[%s6 + $0x48] sm:$0xff] %v204
  %221 = vst [vmem:[%s6 + $0x50] sm:$0xff] %v205
  %222 = vst [vmem:[%s6 + $0x58] sm:$0xff] %v206
  %223 = vst [vmem:[%s6 + $0x60] sm:$0xff] %v207
  %224 = vst [vmem:[%s6 + $0x68] sm:$0xff] %v208
  %225 = vst [vmem:[%s6 + $0x70] sm:$0xff] %v209
  %226 = vst [vmem:[%s6 + $0x78] sm:$0xff] %v210
  // Predicated region
  $region26: #{basic_block_forward.5} parent=0 // pred_check
    _
  $region27: #{basic_block_forward.5} parent=0 // pred_check_branch
    %228 = sbr.rel (0) target = $region29
  $region28: #{basic_block_forward.5} parent=0 // pred_region
    _
  $region29: #{basic_block_forward.5} parent=0 // pred_fallthru
    _
  // Predicated region
  $region30: #{basic_block_forward.5} parent=0 // pred_check
    _
  $region31: #{basic_block_forward.5} parent=0 // pred_check_branch
    %230 = sbr.rel (0) target = $region33
  $region32: #{basic_block_forward.5} parent=0 // pred_region
    _
  $region33: #{basic_block_forward.5} parent=0 // pred_fallthru
    _

// kernel: basic_block_forward.4
$region0: #{basic_block_forward.4}
  #allocation0 [shape = 'u32[]', space=smem, size = 0x4, offset = 0x4, fixed_abs, tag = 'smem constant byte address 0x4 - core index']
  #allocation1 [shape = 'u32[144,128]{1,0:T(1,128)}', space=vmem, size = 0x12000, scoped, tag = 'internal scratch']
  #allocation2 [shape = 'bf16[10,10,128]{2,1,0:T(8,128)(2,1)}', space=vmem, size = 0xa000, scoped, tag = 'scratch operand']
  %s0 = inlined_call_operand.vmem [shape: bf16[2,8,8,128], index: 0, kind: input, shape index: {}]
  %s1 = inlined_call_operand.vmem [shape: f32[1,128], index: 1, kind: input, shape index: {}]
  %s2 = inlined_call_operand.vmem [shape: f32[1,128], index: 2, kind: input, shape index: {}]
  %s3 = inlined_call_operand.vmem [shape: bf16[9,128,128], index: 3, kind: input, shape index: {}]
  %s4 = inlined_call_operand.vmem [shape: bf16[2,8,8,128], index: 4, kind: output, shape index: {0}]
  %s5 = inlined_call_operand.vmem [shape: f32[2,1,128], index: 5, kind: output, shape index: {1}]
  %s6 = inlined_call_operand.vmem [shape: f32[2,1,128], index: 6, kind: output, shape index: {2}]
  %7 = xla_tuple %s4, %s5, %s6
  %s8 = sld [smem:[#allocation0]]
  $region65: #{basic_block_forward.4} parent=0
    _
  %s10 = ssub.s32 1, %s8
  %s11 = scalar_select 0, %s10, %s8
  loop: start=0, step=1, limit=4
  $region2: #{basic_block_forward.4} parent=0 // loop_pre_header
    _
  $region3: #{basic_block_forward.4} parent=0 // loop_header
    %s13 = sphi 0, %s17
    %p14 = scmp.ge.s32.totalorder %s13, 4
    %s23 = sphi 0, %s25
    %s26 = sphi 0, %s23
    %s27 = sphi 0, %s26
    %s43 = sphi 0, %s27
    %s47 = sphi 0, %s47
    %s49 = sphi 0, %s47
    %s50 = sphi 0, %s49
    %s64 = sphi 0, %s50
    %s68 = sphi 0, %s68
    %s70 = sphi 0, %s68
    %s71 = sphi 0, %s70
    %s85 = sphi 0, %s71
    %s89 = sphi 0, %s89
    %s91 = sphi 0, %s89
    %s92 = sphi 0, %s91
    %s106 = sphi 0, %s92
    %s112 = sphi 0, %s114
    %s115 = sphi 0, %s112
    %s116 = sphi 0, %s115
    %s132 = sphi 0, %s116
    %s138 = sphi 0, %s140
    %s141 = sphi 0, %s138
    %s142 = sphi 0, %s141
    %s158 = sphi 0, %s142
    %s164 = sphi 0, %s166
    %s167 = sphi 0, %s164
    %s168 = sphi 0, %s167
    %s184 = sphi 0, %s168
  $region4: #{basic_block_forward.4} parent=0 // loop_header_branch
    %16 = sbr.rel (%p14) target = $region8
  $region5: #{basic_block_forward.4} parent=0 // loop_body
    %s18 = ssub.s32 %s13, 1
    %s19 = ssub.s32 %s13, 2
    %s20 = sadd.s32 %s13, 1
    %s21 = ssub.s32 %s13, %s20
    %p22 = scmp.eq.s32.totalorder %s21, 0
    %s24 = sadd.s32 %s23, 1
    %s25 = scalar_select %p22, %s23, %s24
    %p28 = pneg %p22
    %p29 = scmp.eq.s32.totalorder %s13, 1
    %p30 = por %p28, %p29
    %p31 = scmp.ne.s32.totalorder %s23, %s26
    %p32 = scmp.eq.s32.totalorder %s13, 0
    %p33 = por %p31, %p32
    %p34 = scmp.ne.s32.totalorder %s23, %s26
    %p35 = scmp.eq.s32.totalorder %s18, 1
    %p36 = por %p34, %p35
    %p37 = scmp.ne.s32.totalorder %s26, %s27
    %p38 = scmp.eq.s32.totalorder %s18, 0
    %p39 = por %p37, %p38
    %p40 = scmp.ne.s32.totalorder %s26, %s27
    %p41 = scmp.eq.s32.totalorder %s19, 1
    %p42 = por %p40, %p41
    %p44 = scmp.ne.s32.totalorder %s27, %s43
    %p45 = scmp.eq.s32.totalorder %s19, 0
    %p46 = por %p44, %p45
    %s48 = sadd.s32 %s47, 1
    %p51 = scmp.eq.s32.totalorder %s13, 1
    %p52 = scmp.ne.s32.totalorder %s47, %s49
    %p53 = scmp.eq.s32.totalorder %s13, 0
    %p54 = por %p52, %p53
    %p55 = scmp.ne.s32.totalorder %s47, %s49
    %p56 = scmp.eq.s32.totalorder %s18, 1
    %p57 = por %p55, %p56
    %p58 = scmp.ne.s32.totalorder %s49, %s50
    %p59 = scmp.eq.s32.totalorder %s18, 0
    %p60 = por %p58, %p59
    %p61 = scmp.ne.s32.totalorder %s49, %s50
    %p62 = scmp.eq.s32.totalorder %s19, 1
    %p63 = por %p61, %p62
    %p65 = scmp.ne.s32.totalorder %s50, %s64
    %p66 = scmp.eq.s32.totalorder %s19, 0
    %p67 = por %p65, %p66
    %s69 = sadd.s32 %s68, 1
    %p72 = scmp.eq.s32.totalorder %s13, 1
    %p73 = scmp.ne.s32.totalorder %s68, %s70
    %p74 = scmp.eq.s32.totalorder %s13, 0
    %p75 = por %p73, %p74
    %p76 = scmp.ne.s32.totalorder %s68, %s70
    %p77 = scmp.eq.s32.totalorder %s18, 1
    %p78 = por %p76, %p77
    %p79 = scmp.ne.s32.totalorder %s70, %s71
    %p80 = scmp.eq.s32.totalorder %s18, 0
    %p81 = por %p79, %p80
    %p82 = scmp.ne.s32.totalorder %s70, %s71
    %p83 = scmp.eq.s32.totalorder %s19, 1
    %p84 = por %p82, %p83
    %p86 = scmp.ne.s32.totalorder %s71, %s85
    %p87 = scmp.eq.s32.totalorder %s19, 0
    %p88 = por %p86, %p87
    %s90 = sadd.s32 %s89, 1
    %p93 = scmp.eq.s32.totalorder %s13, 1
    %p94 = scmp.ne.s32.totalorder %s89, %s91
    %p95 = scmp.eq.s32.totalorder %s13, 0
    %p96 = por %p94, %p95
    %p97 = scmp.ne.s32.totalorder %s89, %s91
    %p98 = scmp.eq.s32.totalorder %s18, 1
    %p99 = por %p97, %p98
    %p100 = scmp.ne.s32.totalorder %s91, %s92
    %p101 = scmp.eq.s32.totalorder %s18, 0
    %p102 = por %p100, %p101
    %p103 = scmp.ne.s32.totalorder %s91, %s92
    %p104 = scmp.eq.s32.totalorder %s19, 1
    %p105 = por %p103, %p104
    %p107 = scmp.ne.s32.totalorder %s92, %s106
    %p108 = scmp.eq.s32.totalorder %s19, 0
    %p109 = por %p107, %p108
    %s110 = ssub.s32 %s13, %s20
    %p111 = scmp.eq.s32.totalorder %s110, 0
    %s113 = sadd.s32 %s112, 1
    %s114 = scalar_select %p111, %s112, %s113
    %p117 = pneg %p111
    %p118 = scmp.eq.s32.totalorder %s13, 1
    %p119 = por %p117, %p118
    %p120 = scmp.ne.s32.totalorder %s112, %s115
    %p121 = scmp.eq.s32.totalorder %s13, 0
    %p122 = por %p120, %p121
    %p123 = scmp.ne.s32.totalorder %s112, %s115
    %p124 = scmp.eq.s32.totalorder %s18, 1
    %p125 = por %p123, %p124
    %p126 = scmp.ne.s32.totalorder %s115, %s116
    %p127 = scmp.eq.s32.totalorder %s18, 0
    %p128 = por %p126, %p127
    %p129 = scmp.ne.s32.totalorder %s115, %s116
    %p130 = scmp.eq.s32.totalorder %s19, 1
    %p131 = por %p129, %p130
    %p133 = scmp.ne.s32.totalorder %s116, %s132
    %p134 = scmp.eq.s32.totalorder %s19, 0
    %p135 = por %p133, %p134
    %s136 = ssub.s32 %s13, %s20
    %p137 = scmp.eq.s32.totalorder %s136, 0
    %s139 = sadd.s32 %s138, 1
    %s140 = scalar_select %p137, %s138, %s139
    %p143 = pneg %p137
    %p144 = scmp.eq.s32.totalorder %s13, 1
    %p145 = por %p143, %p144
    %p146 = scmp.ne.s32.totalorder %s138, %s141
    %p147 = scmp.eq.s32.totalorder %s13, 0
    %p148 = por %p146, %p147
    %p149 = scmp.ne.s32.totalorder %s138, %s141
    %p150 = scmp.eq.s32.totalorder %s18, 1
    %p151 = por %p149, %p150
    %p152 = scmp.ne.s32.totalorder %s141, %s142
    %p153 = scmp.eq.s32.totalorder %s18, 0
    %p154 = por %p152, %p153
    %p155 = scmp.ne.s32.totalorder %s141, %s142
    %p156 = scmp.eq.s32.totalorder %s19, 1
    %p157 = por %p155, %p156
    %p159 = scmp.ne.s32.totalorder %s142, %s158
    %p160 = scmp.eq.s32.totalorder %s19, 0
    %p161 = por %p159, %p160
    %s162 = ssub.s32 %s13, %s20
    %p163 = scmp.eq.s32.totalorder %s162, 0
    %s165 = sadd.s32 %s164, 1
    %s166 = scalar_select %p163, %s164, %s165
    %p169 = pneg %p163
    %p170 = scmp.eq.s32.totalorder %s13, 1
    %p171 = por %p169, %p170
    %p172 = scmp.ne.s32.totalorder %s164, %s167
    %p173 = scmp.eq.s32.totalorder %s13, 0
    %p174 = por %p172, %p173
    %p175 = scmp.ne.s32.totalorder %s164, %s167
    %p176 = scmp.eq.s32.totalorder %s18, 1
    %p177 = por %p175, %p176
    %p178 = scmp.ne.s32.totalorder %s167, %s168
    %p179 = scmp.eq.s32.totalorder %s18, 0
    %p180 = por %p178, %p179
    %p181 = scmp.ne.s32.totalorder %s167, %s168
    %p182 = scmp.eq.s32.totalorder %s19, 1
    %p183 = por %p181, %p182
    %p185 = scmp.ne.s32.totalorder %s168, %s184
    %p186 = scmp.eq.s32.totalorder %s19, 0
    %p187 = por %p185, %p186
    %p188 = scmp.le.s32.totalorder 1, %s13
    %p189 = scmp.lt.s32.totalorder %s13, 3
    %p190 = pnand %p188, %p189
    %p191 = pneg %p190
    // Predicated region
    $region9: #{basic_block_forward.4} parent=5 // pred_check
      _
    $region10: #{basic_block_forward.4} parent=5 // pred_check_branch
      %193 = sbr.rel (%p190) target = $region12
    $region11: #{basic_block_forward.4} parent=5 // pred_region
      %s194 = ssub.s32 %s13, 1
      // Predicated region
      $region13: #{basic_block_forward.4} parent=11 // pred_check
        %p195 = pneg %p60
      $region14: #{basic_block_forward.4} parent=11 // pred_check_branch
        %197 = sbr.rel (%p195) target = $region16
      $region15: #{basic_block_forward.4} parent=11 // pred_region
        _
      $region16: #{basic_block_forward.4} parent=11 // pred_fallthru
        _
      // Predicated region
      $region17: #{basic_block_forward.4} parent=11 // pred_check
        %p198 = pneg %p81
      $region18: #{basic_block_forward.4} parent=11 // pred_check_branch
        %200 = sbr.rel (%p198) target = $region20
      $region19: #{basic_block_forward.4} parent=11 // pred_region
        _
      $region20: #{basic_block_forward.4} parent=11 // pred_fallthru
        _
      // Predicated region
      $region21: #{basic_block_forward.4} parent=11 // pred_check
        %p201 = pneg %p102
      $region22: #{basic_block_forward.4} parent=11 // pred_check_branch
        %203 = sbr.rel (%p201) target = $region24
      $region23: #{basic_block_forward.4} parent=11 // pred_region
        _
      $region24: #{basic_block_forward.4} parent=11 // pred_fallthru
        _
    $region12: #{basic_block_forward.4} parent=5 // pred_fallthru
      _
    %p204 = scmp.lt.s32.totalorder %s13, 2
    // Predicated region
    $region25: #{basic_block_forward.4} parent=5 // pred_check
      %p205 = pneg %p204
    $region26: #{basic_block_forward.4} parent=5 // pred_check_branch
      %207 = sbr.rel (%p205) target = $region28
    $region27: #{basic_block_forward.4} parent=5 // pred_region
      // Predicated region
      $region29: #{basic_block_forward.4} parent=27 // pred_check
        %p208 = pneg %p33
      $region30: #{basic_block_forward.4} parent=27 // pred_check_branch
        %210 = sbr.rel (%p208) target = $region32
      $region31: #{basic_block_forward.4} parent=27 // pred_region
        %p211 = scmp.lt.s32.totalorder %s13, 1
        %s212 = scalar_select %p211, %s13, 1
        %s213 = smul.addr %s212, 8
        %s214 = smul.addr %s213, 4
        %s215 = scalar_lea.vmem %s0, %s214
      $region32: #{basic_block_forward.4} parent=27 // pred_fallthru
        _
    $region28: #{basic_block_forward.4} parent=5 // pred_fallthru
      _
    %p216 = scmp.le.s32.totalorder 1, %s13
    %p217 = scmp.lt.s32.totalorder %s13, 3
    %p218 = pnand %p216, %p217
    %p219 = pneg %p218
    // Predicated region
    $region33: #{basic_block_forward.4} parent=5 // pred_check
      _
    $region34: #{basic_block_forward.4} parent=5 // pred_check_branch
      %221 = sbr.rel (%p218) target = $region36
    $region35: #{basic_block_forward.4} parent=5 // pred_region
      %s222 = ssub.s32 %s13, 1
      %p223 = scmp.lt.s32.totalorder %s18, 1
      %s224 = scalar_select %p223, %s18, 1
      %s225 = smul.addr %s224, 8
      %s226 = smul.addr %s225, 4
      %s227 = scalar_lea.vmem %s0, %s226
      %p228 = pneg %p39
      %p229 = pneg %p36
      %p230 = pneg %p60
      %p231 = pneg %p57
      %p232 = pneg %p81
      %p233 = pneg %p78
      %p234 = pneg %p102
      %p235 = pneg %p99
      %p236 = pneg %p128
      %p237 = pneg %p125
      %p238 = scmp.lt.s32.totalorder %s18, 1
      %s239 = scalar_select %p238, %s18, 1
      %s240 = smul.addr %s239, 8
      %s241 = smul.addr %s240, 4
      %s242 = scalar_lea.vmem %s4, %s241
      %p243 = pneg %p154
      %p244 = pneg %p151
      %p245 = scmp.lt.s32.totalorder %s18, 1
      %s246 = scalar_select %p245, %s18, 1
      %s247 = scalar_lea.vmem %s5, %s246
      %p248 = pneg %p180
      %p249 = pneg %p177
      %p250 = scmp.lt.s32.totalorder %s18, 1
      %s251 = scalar_select %p250, %s18, 1
      %s252 = scalar_lea.vmem %s6, %s251
      %p253 = scmp.lt.s32.totalorder %s18, 1
      %s254 = scalar_select %p253, %s18, 1
      %s255 = smul.addr %s254, 8
      %s256 = smul.addr %s255, 4
      %s257 = scalar_lea.vmem %s0, %s256
      %p258 = scmp.lt.s32.totalorder %s18, 1
      %s259 = scalar_select %p258, %s18, 1
      %s260 = smul.addr %s259, 8
      %s261 = smul.addr %s260, 4
      %s262 = scalar_lea.vmem %s4, %s261
      %p263 = scmp.lt.s32.totalorder %s18, 1
      %s264 = scalar_select %p263, %s18, 1
      %s265 = scalar_lea.vmem %s5, %s264
      %p266 = scmp.lt.s32.totalorder %s18, 1
      %s267 = scalar_select %p266, %s18, 1
      %s268 = scalar_lea.vmem %s6, %s267
      %v270 = vld [vmem:[%s257] sm:$0xf]
      %v271 = vld [vmem:[%s257 + $0x4] sm:$0xf]
      %v272 = vld [vmem:[%s257 + $0x8] sm:$0xf]
      %v273 = vld [vmem:[%s257 + $0xc] sm:$0xf]
      %v274 = vld [vmem:[%s257 + $0x10] sm:$0xf]
      %v275 = vld [vmem:[%s257 + $0x14] sm:$0xf]
      %v276 = vld [vmem:[%s257 + $0x18] sm:$0xf]
      %v277 = vld [vmem:[%s257 + $0x1c] sm:$0xf]
      %v278 = vunpack.c.l.bf16 %v270
      %v279 = vunpack.c.l.bf16 %v271
      %v280 = vunpack.c.l.bf16 %v272
      %v281 = vunpack.c.l.bf16 %v273
      %v282 = vunpack.c.l.bf16 %v274
      %v283 = vunpack.c.l.bf16 %v275
      %v284 = vunpack.c.l.bf16 %v276
      %v285 = vunpack.c.l.bf16 %v277
      %v286 = vld [vmem:[%s1] sm:$0x1]
      %v288 = vlaneseq
      %v289 = vshrl.u32 %v288, 7
      %v290 = vsub.s32 0, %v289
      %v291 = vrot.slane %v286, %v290
      %v293 = vmul.f32 %v278, %v291
      %v294 = vmul.f32 %v279, %v291
      %v295 = vmul.f32 %v280, %v291
      %v296 = vmul.f32 %v281, %v291
      %v297 = vmul.f32 %v282, %v291
      %v298 = vmul.f32 %v283, %v291
      %v299 = vmul.f32 %v284, %v291
      %v300 = vmul.f32 %v285, %v291
      %v301 = vld [vmem:[%s2] sm:$0x1]
      %v303 = vlaneseq
      %v304 = vshrl.u32 %v303, 7
      %v305 = vsub.s32 0, %v304
      %v306 = vrot.slane %v301, %v305
      %v308 = vadd.f32 %v293, %v306
      %v309 = vadd.f32 %v294, %v306
      %v310 = vadd.f32 %v295, %v306
      %v311 = vadd.f32 %v296, %v306
      %v312 = vadd.f32 %v297, %v306
      %v313 = vadd.f32 %v298, %v306
      %v314 = vadd.f32 %v299, %v306
      %v315 = vadd.f32 %v300, %v306
      %v316 = vmax.f32 %v308, 0.0
      %v317 = vmax.f32 %v309, 0.0
      %v318 = vmax.f32 %v310, 0.0
      %v319 = vmax.f32 %v311, 0.0
      %v320 = vmax.f32 %v312, 0.0
      %v321 = vmax.f32 %v313, 0.0
      %v322 = vmax.f32 %v314, 0.0
      %v323 = vmax.f32 %v315, 0.0
      %324 = vst [vmem:[#allocation2] sm:$0xf] 0
      %325 = vst [vmem:[#allocation2 + $0x4] sm:$0x1] 0
      %s326 = scalar_lea.vmem [#allocation2], 72
      %327 = vst [vmem:[%s326] sm:$0xf] 0
      %328 = vst [vmem:[%s326 + $0x4] sm:$0x1] 0
      %vm329 = vcmask 1040384
      %vm330 = vsmask.f32 256
      %vm331 = vmand %vm329, %vm330
      %v332 = vld [vmem:[#allocation2] sm:$0x1]
      %v333 = vsel %vm331, 0, %v332
      %334 = vst [vmem:[#allocation2] sm:$0x1] %v333
      %v335 = vld [vmem:[#allocation2 + $0x8] sm:$0x1]
      %v336 = vsel %vm331, 0, %v335
      %337 = vst [vmem:[#allocation2 + $0x8] sm:$0x1] %v336
      %v338 = vld [vmem:[#allocation2 + $0x10] sm:$0x1]
      %v339 = vsel %vm331, 0, %v338
      %340 = vst [vmem:[#allocation2 + $0x10] sm:$0x1] %v339
      %v341 = vld [vmem:[#allocation2 + $0x18] sm:$0x1]
      %v342 = vsel %vm331, 0, %v341
      %343 = vst [vmem:[#allocation2 + $0x18] sm:$0x1] %v342
      %v344 = vld [vmem:[#allocation2 + $0x20] sm:$0x1]
      %v345 = vsel %vm331, 0, %v344
      %346 = vst [vmem:[#allocation2 + $0x20] sm:$0x1] %v345
      %v347 = vld [vmem:[#allocation2 + $0x28] sm:$0x1]
      %v348 = vsel %vm331, 0, %v347
      %349 = vst [vmem:[#allocation2 + $0x28] sm:$0x1] %v348
      %v350 = vld [vmem:[#allocation2 + $0x30] sm:$0x1]
      %v351 = vsel %vm331, 0, %v350
      %352 = vst [vmem:[#allocation2 + $0x30] sm:$0x1] %v351
      %v353 = vld [vmem:[#allocation2 + $0x38] sm:$0x1]
      %v354 = vsel %vm331, 0, %v353
      %355 = vst [vmem:[#allocation2 + $0x38] sm:$0x1] %v354
      %v356 = vld [vmem:[#allocation2 + $0x40] sm:$0x1]
      %v357 = vsel %vm331, 0, %v356
      %358 = vst [vmem:[#allocation2 + $0x40] sm:$0x1] %v357
      %v359 = vld [vmem:[#allocation2 + $0x48] sm:$0x1]
      %v360 = vsel %vm331, 0, %v359
      %361 = vst [vmem:[#allocation2 + $0x48] sm:$0x1] %v360
      %vm362 = vsmask.f32 7938
      %vm363 = vmand %vm329, %vm362
      %v364 = vld [vmem:[#allocation2 + $0x4] sm:$0x1]
      %v365 = vsel %vm363, 0, %v364
      %366 = vst [vmem:[#allocation2 + $0x4] sm:$0x1] %v365
      %v367 = vld [vmem:[#allocation2 + $0xc] sm:$0x1]
      %v368 = vsel %vm363, 0, %v367
      %369 = vst [vmem:[#allocation2 + $0xc] sm:$0x1] %v368
      %v370 = vld [vmem:[#allocation2 + $0x14] sm:$0x1]
      %v371 = vsel %vm363, 0, %v370
      %372 = vst [vmem:[#allocation2 + $0x14] sm:$0x1] %v371
      %v373 = vld [vmem:[#allocation2 + $0x1c] sm:$0x1]
      %v374 = vsel %vm363, 0, %v373
      %375 = vst [vmem:[#allocation2 + $0x1c] sm:$0x1] %v374
      %v376 = vld [vmem:[#allocation2 + $0x24] sm:$0x1]
      %v377 = vsel %vm363, 0, %v376
      %378 = vst [vmem:[#allocation2 + $0x24] sm:$0x1] %v377
      %v379 = vld [vmem:[#allocation2 + $0x2c] sm:$0x1]
      %v380 = vsel %vm363, 0, %v379
      %381 = vst [vmem:[#allocation2 + $0x2c] sm:$0x1] %v380
      %v382 = vld [vmem:[#allocation2 + $0x34] sm:$0x1]
      %v383 = vsel %vm363, 0, %v382
      %384 = vst [vmem:[#allocation2 + $0x34] sm:$0x1] %v383
      %v385 = vld [vmem:[#allocation2 + $0x3c] sm:$0x1]
      %v386 = vsel %vm363, 0, %v385
      %387 = vst [vmem:[#allocation2 + $0x3c] sm:$0x1] %v386
      %v388 = vld [vmem:[#allocation2 + $0x44] sm:$0x1]
      %v389 = vsel %vm363, 0, %v388
      %390 = vst [vmem:[#allocation2 + $0x44] sm:$0x1] %v389
      %v391 = vld [vmem:[#allocation2 + $0x4c] sm:$0x1]
      %v392 = vsel %vm363, 0, %v391
      %393 = vst [vmem:[#allocation2 + $0x4c] sm:$0x1] %v392
      %v394 = vpack.c.bf16 %v316, %v316
      %v395 = vpack.c.bf16 %v317, %v317
      %v396 = vpack.c.bf16 %v318, %v318
      %v397 = vpack.c.bf16 %v319, %v319
      %v398 = vpack.c.bf16 %v320, %v320
      %v399 = vpack.c.bf16 %v321, %v321
      %v400 = vpack.c.bf16 %v322, %v322
      %v401 = vpack.c.bf16 %v323, %v323
      %v410 = vunpack.c.l.b16 %v394
      %v411 = vunpack.c.l.b16 %v395
      %v412 = vunpack.c.l.b16 %v396
      %v413 = vunpack.c.l.b16 %v397
      %v414 = vunpack.c.l.b16 %v398
      %v415 = vunpack.c.l.b16 %v399
      %v416 = vunpack.c.l.b16 %v400
      %v417 = vunpack.c.l.b16 %v401
      %v418 = vpack.c.b16 %v410, %v410
      %v419 = vpack.c.b16 %v411, %v411
      %v420 = vpack.c.b16 %v412, %v412
      %v421 = vpack.c.b16 %v413, %v413
      %v422 = vpack.c.b16 %v414, %v414
      %v423 = vpack.c.b16 %v415, %v415
      %v424 = vpack.c.b16 %v416, %v416
      %v425 = vpack.c.b16 %v417, %v417
      %v427 = vshrl.u32 %v418, 16
      %v429 = vrot.slane %v427, 7
      %v430 = vshll.u32 %v418, 16
      %v432 = vor.u32 %v429, %v430
      %v433 = vrot.slane %v429, 4
      %v435 = vshrl.u32 %v419, 16
      %v437 = vrot.slane %v435, 7
      %v438 = vshll.u32 %v419, 16
      %v440 = vor.u32 %v437, %v438
      %v441 = vrot.slane %v437, 4
      %v443 = vshrl.u32 %v420, 16
      %v445 = vrot.slane %v443, 7
      %v446 = vshll.u32 %v420, 16
      %v448 = vor.u32 %v445, %v446
      %v449 = vrot.slane %v445, 4
      %v451 = vshrl.u32 %v421, 16
      %v453 = vrot.slane %v451, 7
      %v454 = vshll.u32 %v421, 16
      %v456 = vor.u32 %v453, %v454
      %v457 = vrot.slane %v453, 4
      %v459 = vshrl.u32 %v422, 16
      %v461 = vrot.slane %v459, 7
      %v462 = vshll.u32 %v422, 16
      %v464 = vor.u32 %v461, %v462
      %v465 = vrot.slane %v461, 4
      %v467 = vshrl.u32 %v423, 16
      %v469 = vrot.slane %v467, 7
      %v470 = vshll.u32 %v423, 16
      %v472 = vor.u32 %v469, %v470
      %v473 = vrot.slane %v469, 4
      %v475 = vshrl.u32 %v424, 16
      %v477 = vrot.slane %v475, 7
      %v478 = vshll.u32 %v424, 16
      %v480 = vor.u32 %v477, %v478
      %v481 = vrot.slane %v477, 4
      %v483 = vshrl.u32 %v425, 16
      %v485 = vrot.slane %v483, 7
      %v486 = vshll.u32 %v425, 16
      %v488 = vor.u32 %v485, %v486
      %v489 = vrot.slane %v485, 4
      %s506 = scalar_lea.vmem [#allocation2], 8
      %vm507 = vcmask 1043456
      %vm508 = vmand %vm507, %vm362
      %v509 = vld [vmem:[%s506] sm:$0xf]
      %v510 = vsel %vm508, %v432, %v509
      %511 = vst [vmem:[%s506] sm:$0xf] %v510
      %v512 = vld [vmem:[%s506 + $0x4] sm:$0x1]
      %v513 = vsel %vm331, %v433, %v512
      %514 = vst [vmem:[%s506 + $0x4] sm:$0x1] %v513
      %v515 = vld [vmem:[%s506 + $0x8] sm:$0xf]
      %v516 = vsel %vm508, %v440, %v515
      %517 = vst [vmem:[%s506 + $0x8] sm:$0xf] %v516
      %v518 = vld [vmem:[%s506 + $0xc] sm:$0x1]
      %v519 = vsel %vm331, %v441, %v518
      %520 = vst [vmem:[%s506 + $0xc] sm:$0x1] %v519
      %v521 = vld [vmem:[%s506 + $0x10] sm:$0xf]
      %v522 = vsel %vm508, %v448, %v521
      %523 = vst [vmem:[%s506 + $0x10] sm:$0xf] %v522
      %v524 = vld [vmem:[%s506 + $0x14] sm:$0x1]
      %v525 = vsel %vm331, %v449, %v524
      %526 = vst [vmem:[%s506 + $0x14] sm:$0x1] %v525
      %v527 = vld [vmem:[%s506 + $0x18] sm:$0xf]
      %v528 = vsel %vm508, %v456, %v527
      %529 = vst [vmem:[%s506 + $0x18] sm:$0xf] %v528
      %v530 = vld [vmem:[%s506 + $0x1c] sm:$0x1]
      %v531 = vsel %vm331, %v457, %v530
      %532 = vst [vmem:[%s506 + $0x1c] sm:$0x1] %v531
      %v533 = vld [vmem:[%s506 + $0x20] sm:$0xf]
      %v534 = vsel %vm508, %v464, %v533
      %535 = vst [vmem:[%s506 + $0x20] sm:$0xf] %v534
      %v536 = vld [vmem:[%s506 + $0x24] sm:$0x1]
      %v537 = vsel %vm331, %v465, %v536
      %538 = vst [vmem:[%s506 + $0x24] sm:$0x1] %v537
      %v539 = vld [vmem:[%s506 + $0x28] sm:$0xf]
      %v540 = vsel %vm508, %v472, %v539
      %541 = vst [vmem:[%s506 + $0x28] sm:$0xf] %v540
      %v542 = vld [vmem:[%s506 + $0x2c] sm:$0x1]
      %v543 = vsel %vm331, %v473, %v542
      %544 = vst [vmem:[%s506 + $0x2c] sm:$0x1] %v543
      %v545 = vld [vmem:[%s506 + $0x30] sm:$0xf]
      %v546 = vsel %vm508, %v480, %v545
      %547 = vst [vmem:[%s506 + $0x30] sm:$0xf] %v546
      %v548 = vld [vmem:[%s506 + $0x34] sm:$0x1]
      %v549 = vsel %vm331, %v481, %v548
      %550 = vst [vmem:[%s506 + $0x34] sm:$0x1] %v549
      %v551 = vld [vmem:[%s506 + $0x38] sm:$0xf]
      %v552 = vsel %vm508, %v488, %v551
      %553 = vst [vmem:[%s506 + $0x38] sm:$0xf] %v552
      %v554 = vld [vmem:[%s506 + $0x3c] sm:$0x1]
      %v555 = vsel %vm331, %v489, %v554
      %556 = vst [vmem:[%s506 + $0x3c] sm:$0x1] %v555
      %s557 = smul.u32 0, 2
      %s558 = smul.addr %s557, 4
      %s559 = scalar_lea.vmem [#allocation2], %s558
      %v560 = vld [vmem:[%s559] sm:$0xf]
      %v561 = vld [vmem:[%s559 + $0x8] sm:$0xf]
      %v562 = vld [vmem:[%s559 + $0x10] sm:$0xf]
      %v563 = vld [vmem:[%s559 + $0x18] sm:$0xf]
      %v564 = vld [vmem:[%s559 + $0x20] sm:$0xf]
      %v565 = vld [vmem:[%s559 + $0x28] sm:$0xf]
      %v566 = vld [vmem:[%s559 + $0x30] sm:$0xf]
      %v567 = vld [vmem:[%s559 + $0x38] sm:$0xf]
      %v568 = vld [vmem:[%s3] sm:$0xf]
      %v569 = vld [vmem:[%s3 + $0x4] sm:$0xf]
      %v570 = vld [vmem:[%s3 + $0x8] sm:$0xf]
      %v571 = vld [vmem:[%s3 + $0xc] sm:$0xf]
      %v572 = vld [vmem:[%s3 + $0x10] sm:$0xf]
      %v573 = vld [vmem:[%s3 + $0x14] sm:$0xf]
      %v574 = vld [vmem:[%s3 + $0x18] sm:$0xf]
      %v575 = vld [vmem:[%s3 + $0x1c] sm:$0xf]
      %v576 = vld [vmem:[%s3 + $0x20] sm:$0xf]
      %v577 = vld [vmem:[%s3 + $0x24] sm:$0xf]
      %v578 = vld [vmem:[%s3 + $0x28] sm:$0xf]
      %v579 = vld [vmem:[%s3 + $0x2c] sm:$0xf]
      %v580 = vld [vmem:[%s3 + $0x30] sm:$0xf]
      %v581 = vld [vmem:[%s3 + $0x34] sm:$0xf]
      %v582 = vld [vmem:[%s3 + $0x38] sm:$0xf]
      %v583 = vld [vmem:[%s3 + $0x3c] sm:$0xf]
      %v584 = vld [vmem:[%s559 + $0x4] sm:$0x1]
      %v585 = vld [vmem:[%s559 + $0xc] sm:$0x1]
      %v586 = vld [vmem:[%s559 + $0x14] sm:$0x1]
      %v587 = vld [vmem:[%s559 + $0x1c] sm:$0x1]
      %v588 = vld [vmem:[%s559 + $0x24] sm:$0x1]
      %v589 = vld [vmem:[%s559 + $0x2c] sm:$0x1]
      %v590 = vld [vmem:[%s559 + $0x34] sm:$0x1]
      %v591 = vld [vmem:[%s559 + $0x3c] sm:$0x1]
      %vm592 = vsmask.f32 3328
      %vm593 = vsmask.f32 7440
      %vm594 = vmor %vm592, %vm593
      %v596 = vshrl.u32 %v560, 16
      %v598 = vrot.slane %v596, 4
      %v599 = vshll.u32 %v560, 16
      %v601 = vrot.slane %v599, 5
      %v602 = vor.u32 %v598, %v601
      %v603 = vrot.slane %v602, 4
      %v605 = vshll.u32 %v584, 16
      %v607 = vrot.slane %v605, 5
      %v608 = vsel %vm594, %v603, %v607
      %v610 = vshrl.u32 %v561, 16
      %v612 = vrot.slane %v610, 4
      %v613 = vshll.u32 %v561, 16
      %v615 = vrot.slane %v613, 5
      %v616 = vor.u32 %v612, %v615
      %v617 = vrot.slane %v616, 4
      %v619 = vshll.u32 %v585, 16
      %v621 = vrot.slane %v619, 5
      %v622 = vsel %vm594, %v617, %v621
      %v624 = vshrl.u32 %v562, 16
      %v626 = vrot.slane %v624, 4
      %v627 = vshll.u32 %v562, 16
      %v629 = vrot.slane %v627, 5
      %v630 = vor.u32 %v626, %v629
      %v631 = vrot.slane %v630, 4
      %v633 = vshll.u32 %v586, 16
      %v635 = vrot.slane %v633, 5
      %v636 = vsel %vm594, %v631, %v635
      %v638 = vshrl.u32 %v563, 16
      %v640 = vrot.slane %v638, 4
      %v641 = vshll.u32 %v563, 16
      %v643 = vrot.slane %v641, 5
      %v644 = vor.u32 %v640, %v643
      %v645 = vrot.slane %v644, 4
      %v647 = vshll.u32 %v587, 16
      %v649 = vrot.slane %v647, 5
      %v650 = vsel %vm594, %v645, %v649
      %v652 = vshrl.u32 %v564, 16
      %v654 = vrot.slane %v652, 4
      %v655 = vshll.u32 %v564, 16
      %v657 = vrot.slane %v655, 5
      %v658 = vor.u32 %v654, %v657
      %v659 = vrot.slane %v658, 4
      %v661 = vshll.u32 %v588, 16
      %v663 = vrot.slane %v661, 5
      %v664 = vsel %vm594, %v659, %v663
      %v666 = vshrl.u32 %v565, 16
      %v668 = vrot.slane %v666, 4
      %v669 = vshll.u32 %v565, 16
      %v671 = vrot.slane %v669, 5
      %v672 = vor.u32 %v668, %v671
      %v673 = vrot.slane %v672, 4
      %v675 = vshll.u32 %v589, 16
      %v677 = vrot.slane %v675, 5
      %v678 = vsel %vm594, %v673, %v677
      %v680 = vshrl.u32 %v566, 16
      %v682 = vrot.slane %v680, 4
      %v683 = vshll.u32 %v566, 16
      %v685 = vrot.slane %v683, 5
      %v686 = vor.u32 %v682, %v685
      %v687 = vrot.slane %v686, 4
      %v689 = vshll.u32 %v590, 16
      %v691 = vrot.slane %v689, 5
      %v692 = vsel %vm594, %v687, %v691
      %v694 = vshrl.u32 %v567, 16
      %v696 = vrot.slane %v694, 4
      %v697 = vshll.u32 %v567, 16
      %v699 = vrot.slane %v697, 5
      %v700 = vor.u32 %v696, %v699
      %v701 = vrot.slane %v700, 4
      %v703 = vshll.u32 %v591, 16
      %v705 = vrot.slane %v703, 5
      %v706 = vsel %vm594, %v701, %v705
      %s707 = scalar_lea.vmem %s3, 64
      %v708 = vld [vmem:[%s707] sm:$0xf]
      %v709 = vld [vmem:[%s707 + $0x4] sm:$0xf]
      %v710 = vld [vmem:[%s707 + $0x8] sm:$0xf]
      %v711 = vld [vmem:[%s707 + $0xc] sm:$0xf]
      %v712 = vld [vmem:[%s707 + $0x10] sm:$0xf]
      %v713 = vld [vmem:[%s707 + $0x14] sm:$0xf]
      %v714 = vld [vmem:[%s707 + $0x18] sm:$0xf]
      %v715 = vld [vmem:[%s707 + $0x1c] sm:$0xf]
      %v716 = vld [vmem:[%s707 + $0x20] sm:$0xf]
      %v717 = vld [vmem:[%s707 + $0x24] sm:$0xf]
      %v718 = vld [vmem:[%s707 + $0x28] sm:$0xf]
      %v719 = vld [vmem:[%s707 + $0x2c] sm:$0xf]
      %v720 = vld [vmem:[%s707 + $0x30] sm:$0xf]
      %v721 = vld [vmem:[%s707 + $0x34] sm:$0xf]
      %v722 = vld [vmem:[%s707 + $0x38] sm:$0xf]
      %v723 = vld [vmem:[%s707 + $0x3c] sm:$0xf]
      %v724 = vunpack.c.l.b16 %v608
      %v725 = vunpack.c.l.b16 %v622
      %v726 = vunpack.c.l.b16 %v636
      %v727 = vunpack.c.l.b16 %v650
      %v728 = vunpack.c.l.b16 %v664
      %v729 = vunpack.c.l.b16 %v678
      %v730 = vunpack.c.l.b16 %v692
      %v731 = vunpack.c.l.b16 %v706
      %v732 = vpack.c.b16 %v725, %v724
      %v733 = vpack.c.b16 %v727, %v726
      %v734 = vpack.c.b16 %v729, %v728
      %v735 = vpack.c.b16 %v731, %v730
      %v756 = vunpack.c.l.b16 %v708
      %v757 = vunpack.c.l.b16 %v709
      %v758 = vunpack.c.l.b16 %v710
      %v759 = vunpack.c.l.b16 %v711
      %v760 = vunpack.c.l.b16 %v712
      %v761 = vunpack.c.l.b16 %v713
      %v762 = vunpack.c.l.b16 %v714
      %v763 = vunpack.c.l.b16 %v715
      %v764 = vunpack.c.l.b16 %v716
      %v765 = vunpack.c.l.b16 %v717
      %v766 = vunpack.c.l.b16 %v718
      %v767 = vunpack.c.l.b16 %v719
      %v768 = vunpack.c.l.b16 %v720
      %v769 = vunpack.c.l.b16 %v721
      %v770 = vunpack.c.l.b16 %v722
      %v771 = vunpack.c.l.b16 %v723
      %v772 = vpack.c.b16 %v757, %v756
      %v773 = vpack.c.b16 %v759, %v758
      %v774 = vpack.c.b16 %v761, %v760
      %v775 = vpack.c.b16 %v763, %v762
      %v776 = vpack.c.b16 %v765, %v764
      %v777 = vpack.c.b16 %v767, %v766
      %v778 = vpack.c.b16 %v769, %v768
      %v779 = vpack.c.b16 %v771, %v770
      %788 = vmatprep.subr.bf16.mxu0 0
      %789 = vmatpush1.bf16.msra.mxu0 %v772
      %790 = vmatprep.subr.bf16.mxu0 0
      %791 = vmatpush1.bf16.msra.mxu0 %v773
      %792 = vmatprep.subr.bf16.mxu0 0
      %793 = vmatpush1.bf16.msra.mxu0 %v774
      %794 = vmatprep.subr.bf16.mxu0 0
      %795 = vmatpush1.bf16.msra.mxu0 %v775
      %796 = vmatprep.subr.bf16.mxu0 0
      %797 = vmatpush1.bf16.msra.mxu0 %v776
      %798 = vmatprep.subr.bf16.mxu0 0
      %799 = vmatpush1.bf16.msra.mxu0 %v777
      %800 = vmatprep.subr.bf16.mxu0 0
      %801 = vmatpush1.bf16.msra.mxu0 %v778
      %802 = vmatprep.subr.bf16.mxu0 0
      %803 = vmatpush1.bf16.msra.mxu0 %v779
      %804 = vmatprep.subr.bf16.mxu0 0
      %805 = vmatpush1.bf16.msra.mxu0 0
      %806 = vmatprep.subr.bf16.mxu0 0
      %807 = vmatpush1.bf16.msra.mxu0 0
      %808 = vmatprep.subr.bf16.mxu0 0
      %809 = vmatpush1.bf16.msra.mxu0 0
      %810 = vmatprep.subr.bf16.mxu0 0
      %811 = vmatpush1.bf16.msra.mxu0 0
      %812 = vmatprep.subr.bf16.mxu0 0
      %813 = vmatpush1.bf16.msra.mxu0 0
      %814 = vmatprep.subr.bf16.mxu0 0
      %815 = vmatpush1.bf16.msra.mxu0 0
      %816 = vmatprep.subr.bf16.mxu0 0
      %817 = vmatpush1.bf16.msra.mxu0 0
      %818 = vmatprep.subr.bf16.mxu0 0
      %819 = vmatpush1.bf16.msra.mxu0 0
      %820 = vmatprep.mubr.bf16.mxu0 0
      %821 = vmatmul.mubr.bf16.gmra.mrb[0].mxu0 %v732
      %v822 = vpop.f32.mrb[0].mxu0
      %v823 = vadd.f32 0.0, %v822
      %v824 = vpop.f32.mrb[0].mxu0
      %v825 = vpop.f32.mrb[0].mxu0
      %v826 = vadd.f32 0.0, %v825
      %v827 = vpop.f32.mrb[0].mxu0
      %828 = vmatprep.mubr.bf16.mxu0 0
      %829 = vmatmul.mubr.bf16.gmra.mrb[0].mxu0 %v733
      %v830 = vpop.f32.mrb[0].mxu0
      %v831 = vadd.f32 0.0, %v830
      %v832 = vpop.f32.mrb[0].mxu0
      %v833 = vpop.f32.mrb[0].mxu0
      %v834 = vadd.f32 0.0, %v833
      %v835 = vpop.f32.mrb[0].mxu0
      %836 = vmatprep.mubr.bf16.mxu0 0
      %837 = vmatmul.mubr.bf16.gmra.mrb[0].mxu0 %v734
      %v838 = vpop.f32.mrb[0].mxu0
      %v839 = vadd.f32 0.0, %v838
      %v840 = vpop.f32.mrb[0].mxu0
      %v841 = vpop.f32.mrb[0].mxu0
      %v842 = vadd.f32 0.0, %v841
      %v843 = vpop.f32.mrb[0].mxu0
      %844 = vmatprep.mubr.bf16.mxu0 0
      %845 = vmatmul.mubr.bf16.gmra.mrb[0].mxu0 %v735
      %v846 = vpop.f32.mrb[0].mxu0
      %v847 = vadd.f32 0.0, %v846
      %v848 = vpop.f32.mrb[0].mxu0
      %v849 = vpop.f32.mrb[0].mxu0
      %v850 = vadd.f32 0.0, %v849
      %v851 = vpop.f32.mrb[0].mxu0
      %852 = vdwg.mxu0
      %v861 = vunpack.c.l.b16 %v560
      %v862 = vunpack.c.l.b16 %v561
      %v863 = vunpack.c.l.b16 %v562
      %v864 = vunpack.c.l.b16 %v563
      %v865 = vunpack.c.l.b16 %v564
      %v866 = vunpack.c.l.b16 %v565
      %v867 = vunpack.c.l.b16 %v566
      %v868 = vunpack.c.l.b16 %v567
      %v869 = vpack.c.b16 %v862, %v861
      %v870 = vpack.c.b16 %v864, %v863
      %v871 = vpack.c.b16 %v866, %v865
      %v872 = vpack.c.b16 %v868, %v867
      %v893 = vunpack.c.l.b16 %v568
      %v894 = vunpack.c.l.b16 %v569
      %v895 = vunpack.c.l.b16 %v570
      %v896 = vunpack.c.l.b16 %v571
      %v897 = vunpack.c.l.b16 %v572
      %v898 = vunpack.c.l.b16 %v573
      %v899 = vunpack.c.l.b16 %v574
      %v900 = vunpack.c.l.b16 %v575
      %v901 = vunpack.c.l.b16 %v576
      %v902 = vunpack.c.l.b16 %v577
      %v903 = vunpack.c.l.b16 %v578
      %v904 = vunpack.c.l.b16 %v579
      %v905 = vunpack.c.l.b16 %v580
      %v906 = vunpack.c.l.b16 %v581
      %v907 = vunpack.c.l.b16 %v582
      %v908 = vunpack.c.l.b16 %v583
      %v909 = vpack.c.b16 %v894, %v893
      %v910 = vpack.c.b16 %v896, %v895
      %v911 = vpack.c.b16 %v898, %v897
      %v912 = vpack.c.b16 %v900, %v899
      %v913 = vpack.c.b16 %v902, %v901
      %v914 = vpack.c.b16 %v904, %v903
      %v915 = vpack.c.b16 %v906, %v905
      %v916 = vpack.c.b16 %v908, %v907
      %925 = vmatprep.subr.bf16.mxu0 0
      %926 = vmatpush1.bf16.msra.mxu0 %v909
      %927 = vmatprep.subr.bf16.mxu0 0
      %928 = vmatpush1.bf16.msra.mxu0 %v910
      %929 = vmatprep.subr.bf16.mxu0 0
      %930 = vmatpush1.bf16.msra.mxu0 %v911
      %931 = vmatprep.subr.bf16.mxu0 0
      %932 = vmatpush1.bf16.msra.mxu0 %v912
      %933 = vmatprep.subr.bf16.mxu0 0
      %934 = vmatpush1.bf16.msra.mxu0 %v913
      %935 = vmatprep.subr.bf16.mxu0 0
      %936 = vmatpush1.bf16.msra.mxu0 %v914
      %937 = vmatprep.subr.bf16.mxu0 0
      %938 = vmatpush1.bf16.msra.mxu0 %v915
      %939 = vmatprep.subr.bf16.mxu0 0
      %940 = vmatpush1.bf16.msra.mxu0 %v916
      %941 = vmatprep.subr.bf16.mxu0 0
      %942 = vmatpush1.bf16.msra.mxu0 0
      %943 = vmatprep.subr.bf16.mxu0 0
      %944 = vmatpush1.bf16.msra.mxu0 0
      %945 = vmatprep.subr.bf16.mxu0 0
      %946 = vmatpush1.bf16.msra.mxu0 0
      %947 = vmatprep.subr.bf16.mxu0 0
      %948 = vmatpush1.bf16.msra.mxu0 0
      %949 = vmatprep.subr.bf16.mxu0 0
      %950 = vmatpush1.bf16.msra.mxu0 0
      %951 = vmatprep.subr.bf16.mxu0 0
      %952 = vmatpush1.bf16.msra.mxu0 0
      %953 = vmatprep.subr.bf16.mxu0 0
      %954 = vmatpush1.bf16.msra.mxu0 0
      %955 = vmatprep.subr.bf16.mxu0 0
      %956 = vmatpush1.bf16.msra.mxu0 0
      %957 = vmatprep.mubr.bf16.mxu0 0
      %958 = vmatmul.mubr.bf16.gmra.mrb[0].mxu0 %v869
      %v959 = vpop.f32.mrb[0].mxu0
      %v960 = vadd.f32 %v823, %v959
      %v961 = vpop.f32.mrb[0].mxu0
      %v962 = vpop.f32.mrb[0].mxu0
      %v963 = vadd.f32 %v826, %v962
      %v964 = vpop.f32.mrb[0].mxu0
      %965 = vmatprep.mubr.bf16.mxu0 0
      %966 = vmatmul.mubr.bf16.gmra.mrb[0].mxu0 %v870
      %v967 = vpop.f32.mrb[0].mxu0
      %v968 = vadd.f32 %v831, %v967
      %v969 = vpop.f32.mrb[0].mxu0
      %v970 = vpop.f32.mrb[0].mxu0
      %v971 = vadd.f32 %v834, %v970
      %v972 = vpop.f32.mrb[0].mxu0
      %973 = vmatprep.mubr.bf16.mxu0 0
      %974 = vmatmul.mubr.bf16.gmra.mrb[0].mxu0 %v871
      %v975 = vpop.f32.mrb[0].mxu0
      %v976 = vadd.f32 %v839, %v975
      %v977 = vpop.f32.mrb[0].mxu0
      %v978 = vpop.f32.mrb[0].mxu0
      %v979 = vadd.f32 %v842, %v978
      %v980 = vpop.f32.mrb[0].mxu0
      %981 = vmatprep.mubr.bf16.mxu0 0
      %982 = vmatmul.mubr.bf16.gmra.mrb[0].mxu0 %v872
      %v983 = vpop.f32.mrb[0].mxu0
      %v984 = vadd.f32 %v847, %v983
      %v985 = vpop.f32.mrb[0].mxu0
      %v986 = vpop.f32.mrb[0].mxu0
      %v987 = vadd.f32 %v850, %v986
      %v988 = vpop.f32.mrb[0].mxu0
      %989 = vdwg.mxu0
      %v990 = vld [vmem:[%s559] sm:$0xe]
      %v991 = vld [vmem:[%s559 + $0x8] sm:$0xe]
      %v992 = vld [vmem:[%s559 + $0x10] sm:$0xe]
      %v993 = vld [vmem:[%s559 + $0x18] sm:$0xe]
      %v994 = vld [vmem:[%s559 + $0x20] sm:$0xe]
      %v995 = vld [vmem:[%s559 + $0x28] sm:$0xe]
      %v996 = vld [vmem:[%s559 + $0x30] sm:$0xe]
      %v997 = vld [vmem:[%s559 + $0x38] sm:$0xe]
      %vm1014 = vcmask 1042432
      %vm1015 = vcmask 1046532
      %vm1016 = vmor %vm1014, %vm1015
      %v1017 = vrot.slane %v990, 5
      %v1018 = vrot.slane %v1017, 4
      %v1019 = vrot.slane %v584, 5
      %v1020 = vsel %vm1016, %v1018, %v1019
      %v1021 = vrot.slane %v991, 5
      %v1022 = vrot.slane %v1021, 4
      %v1023 = vrot.slane %v585, 5
      %v1024 = vsel %vm1016, %v1022, %v1023
      %v1025 = vrot.slane %v992, 5
      %v1026 = vrot.slane %v1025, 4
      %v1027 = vrot.slane %v586, 5
      %v1028 = vsel %vm1016, %v1026, %v1027
      %v1029 = vrot.slane %v993, 5
      %v1030 = vrot.slane %v1029, 4
      %v1031 = vrot.slane %v587, 5
      %v1032 = vsel %vm1016, %v1030, %v1031
      %v1033 = vrot.slane %v994, 5
      %v1034 = vrot.slane %v1033, 4
      %v1035 = vrot.slane %v588, 5
      %v1036 = vsel %vm1016, %v1034, %v1035
      %v1037 = vrot.slane %v995, 5
      %v1038 = vrot.slane %v1037, 4
      %v1039 = vrot.slane %v589, 5
      %v1040 = vsel %vm1016, %v1038, %v1039
      %v1041 = vrot.slane %v996, 5
      %v1042 = vrot.slane %v1041, 4
      %v1043 = vrot.slane %v590, 5
      %v1044 = vsel %vm1016, %v1042, %v1043
      %v1045 = vrot.slane %v997, 5
      %v1046 = vrot.slane %v1045, 4
      %v1047 = vrot.slane %v591, 5
      %v1048 = vsel %vm1016, %v1046, %v1047
      %s1049 = scalar_lea.vmem %s3, 128
      %v1050 = vld [vmem:[%s1049] sm:$0xf]
      %v1051 = vld [vmem:[%s1049 + $0x4] sm:$0xf]
      %v1052 = vld [vmem:[%s1049 + $0x8] sm:$0xf]
      %v1053 = vld [vmem:[%s1049 + $0xc] sm:$0xf]
      %v1054 = vld [vmem:[%s1049 + $0x10] sm:$0xf]
      %v1055 = vld [vmem:[%s1049 + $0x14] sm:$0xf]
      %v1056 = vld [vmem:[%s1049 + $0x18] sm:$0xf]
      %v1057 = vld [vmem:[%s1049 + $0x1c] sm:$0xf]
      %v1058 = vld [vmem:[%s1049 + $0x20] sm:$0xf]
      %v1059 = vld [vmem:[%s1049 + $0x24] sm:$0xf]
      %v1060 = vld [vmem:[%s1049 + $0x28] sm:$0xf]
      %v1061 = vld [vmem:[%s1049 + $0x2c] sm:$0xf]
      %v1062 = vld [vmem:[%s1049 + $0x30] sm:$0xf]
      %v1063 = vld [vmem:[%s1049 + $0x34] sm:$0xf]
      %v1064 = vld [vmem:[%s1049 + $0x38] sm:$0xf]
      %v1065 = vld [vmem:[%s1049 + $0x3c] sm:$0xf]
      %v1066 = vunpack.c.l.b16 %v1020
      %v1067 = vunpack.c.l.b16 %v1024
      %v1068 = vunpack.c.l.b16 %v1028
      %v1069 = vunpack.c.l.b16 %v1032
      %v1070 = vunpack.c.l.b16 %v1036
      %v1071 = vunpack.c.l.b16 %v1040
      %v1072 = vunpack.c.l.b16 %v1044
      %v1073 = vunpack.c.l.b16 %v1048
      %v1074 = vpack.c.b16 %v1067, %v1066
      %v1075 = vpack.c.b16 %v1069, %v1068
      %v1076 = vpack.c.b16 %v1071, %v1070
      %v1077 = vpack.c.b16 %v1073, %v1072
      %v1098 = vunpack.c.l.b16 %v1050
      %v1099 = vunpack.c.l.b16 %v1051
      %v1100 = vunpack.c.l.b16 %v1052
      %v1101 = vunpack.c.l.b16 %v1053
      %v1102 = vunpack.c.l.b16 %v1054
      %v1103 = vunpack.c.l.b16 %v1055
      %v1104 = vunpack.c.l.b16 %v1056
      %v1105 = vunpack.c.l.b16 %v1057
      %v1106 = vunpack.c.l.b16 %v1058
      %v1107 = vunpack.c.l.b16 %v1059
      %v1108 = vunpack.c.l.b16 %v1060
      %v1109 = vunpack.c.l.b16 %v1061
      %v1110 = vunpack.c.l.b16 %v1062
      %v1111 = vunpack.c.l.b16 %v1063
      %v1112 = vunpack.c.l.b16 %v1064
      %v1113 = vunpack.c.l.b16 %v1065
      %v1114 = vpack.c.b16 %v1099, %v1098
      %v1115 = vpack.c.b16 %v1101, %v1100
      %v1116 = vpack.c.b16 %v1103, %v1102
      %v1117 = vpack.c.b16 %v1105, %v1104
      %v1118 = vpack.c.b16 %v1107, %v1106
      %v1119 = vpack.c.b16 %v1109, %v1108
      %v1120 = vpack.c.b16 %v1111, %v1110
      %v1121 = vpack.c.b16 %v1113, %v1112
      %1130 = vmatprep.subr.bf16.mxu0 0
      %1131 = vmatpush1.bf16.msra.mxu0 %v1114
      %1132 = vmatprep.subr.bf16.mxu0 0
      %1133 = vmatpush1.bf16.msra.mxu0 %v1115
      %1134 = vmatprep.subr.bf16.mxu0 0
      %1135 = vmatpush1.bf16.msra.mxu0 %v1116
      %1136 = vmatprep.subr.bf16.mxu0 0
      %1137 = vmatpush1.bf16.msra.mxu0 %v1117
      %1138 = vmatprep.subr.bf16.mxu0 0
      %1139 = vmatpush1.bf16.msra.mxu0 %v1118
      %1140 = vmatprep.subr.bf16.mxu0 0
      %1141 = vmatpush1.bf16.msra.mxu0 %v1119
      %1142 = vmatprep.subr.bf16.mxu0 0
      %1143 = vmatpush1.bf16.msra.mxu0 %v1120
      %1144 = vmatprep.subr.bf16.mxu0 0
      %1145 = vmatpush1.bf16.msra.mxu0 %v1121
      %1146 = vmatprep.subr.bf16.mxu0 0
      %1147 = vmatpush1.bf16.msra.mxu0 0
      %1148 = vmatprep.subr.bf16.mxu0 0
      %1149 = vmatpush1.bf16.msra.mxu0 0
      %1150 = vmatprep.subr.bf16.mxu0 0
      %1151 = vmatpush1.bf16.msra.mxu0 0
      %1152 = vmatprep.subr.bf16.mxu0 0
      %1153 = vmatpush1.bf16.msra.mxu0 0
      %1154 = vmatprep.subr.bf16.mxu0 0
      %1155 = vmatpush1.bf16.msra.mxu0 0
      %1156 = vmatprep.subr.bf16.mxu0 0
      %1157 = vmatpush1.bf16.msra.mxu0 0
      %1158 = vmatprep.subr.bf16.mxu0 0
      %1159 = vmatpush1.bf16.msra.mxu0 0
      %1160 = vmatprep.subr.bf16.mxu0 0
      %1161 = vmatpush1.bf16.msra.mxu0 0
      %1162 = vmatprep.mubr.bf16.mxu0 0
      %1163 = vmatmul.mubr.bf16.gmra.mrb[0].mxu0 %v1074
      %v1164 = vpop.f32.mrb[0].mxu0
      %v1165 = vadd.f32 0.0, %v1164
      %v1166 = vpop.f32.mrb[0].mxu0
      %v1167 = vpop.f32.mrb[0].mxu0
      %v1168 = vadd.f32 0.0, %v1167
      %v1169 = vpop.f32.mrb[0].mxu0
      %1170 = vmatprep.mubr.bf16.mxu0 0
      %1171 = vmatmul.mubr.bf16.gmra.mrb[0].mxu0 %v1075
      %v1172 = vpop.f32.mrb[0].mxu0
      %v1173 = vadd.f32 0.0, %v1172
      %v1174 = vpop.f32.mrb[0].mxu0
      %v1175 = vpop.f32.mrb[0].mxu0
      %v1176 = vadd.f32 0.0, %v1175
      %v1177 = vpop.f32.mrb[0].mxu0
      %1178 = vmatprep.mubr.bf16.mxu0 0
      %1179 = vmatmul.mubr.bf16.gmra.mrb[0].mxu0 %v1076
      %v1180 = vpop.f32.mrb[0].mxu0
      %v1181 = vadd.f32 0.0, %v1180
      %v1182 = vpop.f32.mrb[0].mxu0
      %v1183 = vpop.f32.mrb[0].mxu0
      %v1184 = vadd.f32 0.0, %v1183
      %v1185 = vpop.f32.mrb[0].mxu0
      %1186 = vmatprep.mubr.bf16.mxu0 0
      %1187 = vmatmul.mubr.bf16.gmra.mrb[0].mxu0 %v1077
      %v1188 = vpop.f32.mrb[0].mxu0
      %v1189 = vadd.f32 0.0, %v1188
      %v1190 = vpop.f32.mrb[0].mxu0
      %v1191 = vpop.f32.mrb[0].mxu0
      %v1192 = vadd.f32 0.0, %v1191
      %v1193 = vpop.f32.mrb[0].mxu0
      %1194 = vdwg.mxu0
      %v1195 = vadd.f32 %v960, %v1165
      %v1196 = vadd.f32 %v963, %v1168
      %v1197 = vadd.f32 %v968, %v1173
      %v1198 = vadd.f32 %v971, %v1176
      %v1199 = vadd.f32 %v976, %v1181
      %v1200 = vadd.f32 %v979, %v1184
      %v1201 = vadd.f32 %v984, %v1189
      %v1202 = vadd.f32 %v987, %v1192
      %s1203 = sadd.s32 0, 1
      %s1204 = smul.u32 %s1203, 2
      %s1205 = smul.addr %s1204, 4
      %s1206 = scalar_lea.vmem [#allocation2], %s1205
      %v1207 = vld [vmem:[%s1206] sm:$0xf]
      %v1208 = vld [vmem:[%s1206 + $0x8] sm:$0xf]
      %v1209 = vld [vmem:[%s1206 + $0x10] sm:$0xf]
      %v1210 = vld [vmem:[%s1206 + $0x18] sm:$0xf]
      %v1211 = vld [vmem:[%s1206 + $0x20] sm:$0xf]
      %v1212 = vld [vmem:[%s1206 + $0x28] sm:$0xf]
      %v1213 = vld [vmem:[%s1206 + $0x30] sm:$0xf]
      %v1214 = vld [vmem:[%s1206 + $0x38] sm:$0xf]
      %s1215 = scalar_lea.vmem %s3, 192
      %v1216 = vld [vmem:[%s1215] sm:$0xf]
      %v1217 = vld [vmem:[%s1215 + $0x4] sm:$0xf]
      %v1218 = vld [vmem:[%s1215 + $0x8] sm:$0xf]
      %v1219 = vld [vmem:[%s1215 + $0xc] sm:$0xf]
      %v1220 = vld [vmem:[%s1215 + $0x10] sm:$0xf]
      %v1221 = vld [vmem:[%s1215 + $0x14] sm:$0xf]
      %v1222 = vld [vmem:[%s1215 + $0x18] sm:$0xf]
      %v1223 = vld [vmem:[%s1215 + $0x1c] sm:$0xf]
      %v1224 = vld [vmem:[%s1215 + $0x20] sm:$0xf]
      %v1225 = vld [vmem:[%s1215 + $0x24] sm:$0xf]
      %v1226 = vld [vmem:[%s1215 + $0x28] sm:$0xf]
      %v1227 = vld [vmem:[%s1215 + $0x2c] sm:$0xf]
      %v1228 = vld [vmem:[%s1215 + $0x30] sm:$0xf]
      %v1229 = vld [vmem:[%s1215 + $0x34] sm:$0xf]
      %v1230 = vld [vmem:[%s1215 + $0x38] sm:$0xf]
      %v1231 = vld [vmem:[%s1215 + $0x3c] sm:$0xf]
      %v1240 = vunpack.c.l.b16 %v1207
      %v1241 = vunpack.c.l.b16 %v1208
      %v1242 = vunpack.c.l.b16 %v1209
      %v1243 = vunpack.c.l.b16 %v1210
      %v1244 = vunpack.c.l.b16 %v1211
      %v1245 = vunpack.c.l.b16 %v1212
      %v1246 = vunpack.c.l.b16 %v1213
      %v1247 = vunpack.c.l.b16 %v1214
      %v1248 = vpack.c.b16 %v1241, %v1240
      %v1249 = vpack.c.b16 %v1243, %v1242
      %v1250 = vpack.c.b16 %v1245, %v1244
      %v1251 = vpack.c.b16 %v1247, %v1246
      %v1272 = vunpack.c.l.b16 %v1216
      %v1273 = vunpack.c.l.b16 %v1217
      %v1274 = vunpack.c.l.b16 %v1218
      %v1275 = vunpack.c.l.b16 %v1219
      %v1276 = vunpack.c.l.b16 %v1220
      %v1277 = vunpack.c.l.b16 %v1221
      %v1278 = vunpack.c.l.b16 %v1222
      %v1279 = vunpack.c.l.b16 %v1223
      %v1280 = vunpack.c.l.b16 %v1224
      %v1281 = vunpack.c.l.b16 %v1225
      %v1282 = vunpack.c.l.b16 %v1226
      %v1283 = vunpack.c.l.b16 %v1227
      %v1284 = vunpack.c.l.b16 %v1228
      %v1285 = vunpack.c.l.b16 %v1229
      %v1286 = vunpack.c.l.b16 %v1230
      %v1287 = vunpack.c.l.b16 %v1231
      %v1288 = vpack.c.b16 %v1273, %v1272
      %v1289 = vpack.c.b16 %v1275, %v1274
      %v1290 = vpack.c.b16 %v1277, %v1276
      %v1291 = vpack.c.b16 %v1279, %v1278
      %v1292 = vpack.c.b16 %v1281, %v1280
      %v1293 = vpack.c.b16 %v1283, %v1282
      %v1294 = vpack.c.b16 %v1285, %v1284
      %v1295 = vpack.c.b16 %v1287, %v1286
      %1304 = vmatprep.subr.bf16.mxu0 0
      %1305 = vmatpush1.bf16.msra.mxu0 %v1288
      %1306 = vmatprep.subr.bf16.mxu0 0
      %1307 = vmatpush1.bf16.msra.mxu0 %v1289
      %1308 = vmatprep.subr.bf16.mxu0 0
      %1309 = vmatpush1.bf16.msra.mxu0 %v1290
      %1310 = vmatprep.subr.bf16.mxu0 0
      %1311 = vmatpush1.bf16.msra.mxu0 %v1291
      %1312 = vmatprep.subr.bf16.mxu0 0
      %1313 = vmatpush1.bf16.msra.mxu0 %v1292
      %1314 = vmatprep.subr.bf16.mxu0 0
      %1315 = vmatpush1.bf16.msra.mxu0 %v1293
      %1316 = vmatprep.subr.bf16.mxu0 0
      %1317 = vmatpush1.bf16.msra.mxu0 %v1294
      %1318 = vmatprep.subr.bf16.mxu0 0
      %1319 = vmatpush1.bf16.msra.mxu0 %v1295
      %1320 = vmatprep.subr.bf16.mxu0 0
      %1321 = vmatpush1.bf16.msra.mxu0 0
      %1322 = vmatprep.subr.bf16.mxu0 0
      %1323 = vmatpush1.bf16.msra.mxu0 0
      %1324 = vmatprep.subr.bf16.mxu0 0
      %1325 = vmatpush1.bf16.msra.mxu0 0
      %1326 = vmatprep.subr.bf16.mxu0 0
      %1327 = vmatpush1.bf16.msra.mxu0 0
      %1328 = vmatprep.subr.bf16.mxu0 0
      %1329 = vmatpush1.bf16.msra.mxu0 0
      %1330 = vmatprep.subr.bf16.mxu0 0
      %1331 = vmatpush1.bf16.msra.mxu0 0
      %1332 = vmatprep.subr.bf16.mxu0 0
      %1333 = vmatpush1.bf16.msra.mxu0 0
      %1334 = vmatprep.subr.bf16.mxu0 0
      %1335 = vmatpush1.bf16.msra.mxu0 0
      %1336 = vmatprep.mubr.bf16.mxu0 0
      %1337 = vmatmul.mubr.bf16.gmra.mrb[0].mxu0 %v1248
      %v1338 = vpop.f32.mrb[0].mxu0
      %v1339 = vadd.f32 0.0, %v1338
      %v1340 = vpop.f32.mrb[0].mxu0
      %v1341 = vpop.f32.mrb[0].mxu0
      %v1342 = vadd.f32 0.0, %v1341
      %v1343 = vpop.f32.mrb[0].mxu0
      %1344 = vmatprep.mubr.bf16.mxu0 0
      %1345 = vmatmul.mubr.bf16.gmra.mrb[0].mxu0 %v1249
      %v1346 = vpop.f32.mrb[0].mxu0
      %v1347 = vadd.f32 0.0, %v1346
      %v1348 = vpop.f32.mrb[0].mxu0
      %v1349 = vpop.f32.mrb[0].mxu0
      %v1350 = vadd.f32 0.0, %v1349
      %v1351 = vpop.f32.mrb[0].mxu0
      %1352 = vmatprep.mubr.bf16.mxu0 0
      %1353 = vmatmul.mubr.bf16.gmra.mrb[0].mxu0 %v1250
      %v1354 = vpop.f32.mrb[0].mxu0
      %v1355 = vadd.f32 0.0, %v1354
      %v1356 = vpop.f32.mrb[0].mxu0
      %v1357 = vpop.f32.mrb[0].mxu0
      %v1358 = vadd.f32 0.0, %v1357
      %v1359 = vpop.f32.mrb[0].mxu0
      %1360 = vmatprep.mubr.bf16.mxu0 0
      %1361 = vmatmul.mubr.bf16.gmra.mrb[0].mxu0 %v1251
      %v1362 = vpop.f32.mrb[0].mxu0
      %v1363 = vadd.f32 0.0, %v1362
      %v1364 = vpop.f32.mrb[0].mxu0
      %v1365 = vpop.f32.mrb[0].mxu0
      %v1366 = vadd.f32 0.0, %v1365
      %v1367 = vpop.f32.mrb[0].mxu0
      %1368 = vdwg.mxu0
      %v1369 = vadd.f32 %v1195, %v1339
      %v1370 = vadd.f32 %v1196, %v1342
      %v1371 = vadd.f32 %v1197, %v1347
      %v1372 = vadd.f32 %v1198, %v1350
      %v1373 = vadd.f32 %v1199, %v1355
      %v1374 = vadd.f32 %v1200, %v1358
      %v1375 = vadd.f32 %v1201, %v1363
      %v1376 = vadd.f32 %v1202, %v1366
      %v1377 = vld [vmem:[%s1206] sm:$0xf]
      %v1378 = vld [vmem:[%s1206 + $0x4] sm:$0x1]
      %v1379 = vld [vmem:[%s1206 + $0x8] sm:$0xf]
      %v1380 = vld [vmem:[%s1206 + $0xc] sm:$0x1]
      %v1381 = vld [vmem:[%s1206 + $0x10] sm:$0xf]
      %v1382 = vld [vmem:[%s1206 + $0x14] sm:$0x1]
      %v1383 = vld [vmem:[%s1206 + $0x18] sm:$0xf]
      %v1384 = vld [vmem:[%s1206 + $0x1c] sm:$0x1]
      %v1385 = vld [vmem:[%s1206 + $0x20] sm:$0xf]
      %v1386 = vld [vmem:[%s1206 + $0x24] sm:$0x1]
      %v1387 = vld [vmem:[%s1206 + $0x28] sm:$0xf]
      %v1388 = vld [vmem:[%s1206 + $0x2c] sm:$0x1]
      %v1389 = vld [vmem:[%s1206 + $0x30] sm:$0xf]
      %v1390 = vld [vmem:[%s1206 + $0x34] sm:$0x1]
      %v1391 = vld [vmem:[%s1206 + $0x38] sm:$0xf]
      %v1392 = vld [vmem:[%s1206 + $0x3c] sm:$0x1]
      %v1394 = vshrl.u32 %v1377, 16
      %v1396 = vrot.slane %v1394, 4
      %v1397 = vshll.u32 %v1377, 16
      %v1399 = vrot.slane %v1397, 5
      %v1400 = vor.u32 %v1396, %v1399
      %v1401 = vrot.slane %v1400, 4
      %v1403 = vshll.u32 %v1378, 16
      %v1405 = vrot.slane %v1403, 5
      %v1406 = vsel %vm594, %v1401, %v1405
      %v1408 = vshrl.u32 %v1379, 16
      %v1410 = vrot.slane %v1408, 4
      %v1411 = vshll.u32 %v1379, 16
      %v1413 = vrot.slane %v1411, 5
      %v1414 = vor.u32 %v1410, %v1413
      %v1415 = vrot.slane %v1414, 4
      %v1417 = vshll.u32 %v1380, 16
      %v1419 = vrot.slane %v1417, 5
      %v1420 = vsel %vm594, %v1415, %v1419
      %v1422 = vshrl.u32 %v1381, 16
      %v1424 = vrot.slane %v1422, 4
      %v1425 = vshll.u32 %v1381, 16
      %v1427 = vrot.slane %v1425, 5
      %v1428 = vor.u32 %v1424, %v1427
      %v1429 = vrot.slane %v1428, 4
      %v1431 = vshll.u32 %v1382, 16
      %v1433 = vrot.slane %v1431, 5
      %v1434 = vsel %vm594, %v1429, %v1433
      %v1436 = vshrl.u32 %v1383, 16
      %v1438 = vrot.slane %v1436, 4
      %v1439 = vshll.u32 %v1383, 16
      %v1441 = vrot.slane %v1439, 5
      %v1442 = vor.u32 %v1438, %v1441
      %v1443 = vrot.slane %v1442, 4
      %v1445 = vshll.u32 %v1384, 16
      %v1447 = vrot.slane %v1445, 5
      %v1448 = vsel %vm594, %v1443, %v1447
      %v1450 = vshrl.u32 %v1385, 16
      %v1452 = vrot.slane %v1450, 4
      %v1453 = vshll.u32 %v1385, 16
      %v1455 = vrot.slane %v1453, 5
      %v1456 = vor.u32 %v1452, %v1455
      %v1457 = vrot.slane %v1456, 4
      %v1459 = vshll.u32 %v1386, 16
      %v1461 = vrot.slane %v1459, 5
      %v1462 = vsel %vm594, %v1457, %v1461
      %v1464 = vshrl.u32 %v1387, 16
      %v1466 = vrot.slane %v1464, 4
      %v1467 = vshll.u32 %v1387, 16
      %v1469 = vrot.slane %v1467, 5
      %v1470 = vor.u32 %v1466, %v1469
      %v1471 = vrot.slane %v1470, 4
      %v1473 = vshll.u32 %v1388, 16
      %v1475 = vrot.slane %v1473, 5
      %v1476 = vsel %vm594, %v1471, %v1475
      %v1478 = vshrl.u32 %v1389, 16
      %v1480 = vrot.slane %v1478, 4
      %v1481 = vshll.u32 %v1389, 16
      %v1483 = vrot.slane %v1481, 5
      %v1484 = vor.u32 %v1480, %v1483
      %v1485 = vrot.slane %v1484, 4
      %v1487 = vshll.u32 %v1390, 16
      %v1489 = vrot.slane %v1487, 5
      %v1490 = vsel %vm594, %v1485, %v1489
      %v1492 = vshrl.u32 %v1391, 16
      %v1494 = vrot.slane %v1492, 4
      %v1495 = vshll.u32 %v1391, 16
      %v1497 = vrot.slane %v1495, 5
      %v1498 = vor.u32 %v1494, %v1497
      %v1499 = vrot.slane %v1498, 4
      %v1501 = vshll.u32 %v1392, 16
      %v1503 = vrot.slane %v1501, 5
      %v1504 = vsel %vm594, %v1499, %v1503
      %s1505 = scalar_lea.vmem %s3, 256
      %v1506 = vld [vmem:[%s1505] sm:$0xf]
      %v1507 = vld [vmem:[%s1505 + $0x4] sm:$0xf]
      %v1508 = vld [vmem:[%s1505 + $0x8] sm:$0xf]
      %v1509 = vld [vmem:[%s1505 + $0xc] sm:$0xf]
      %v1510 = vld [vmem:[%s1505 + $0x10] sm:$0xf]
      %v1511 = vld [vmem:[%s1505 + $0x14] sm:$0xf]
      %v1512 = vld [vmem:[%s1505 + $0x18] sm:$0xf]
      %v1513 = vld [vmem:[%s1505 + $0x1c] sm:$0xf]
      %v1514 = vld [vmem:[%s1505 + $0x20] sm:$0xf]
      %v1515 = vld [vmem:[%s1505 + $0x24] sm:$0xf]
      %v1516 = vld [vmem:[%s1505 + $0x28] sm:$0xf]
      %v1517 = vld [vmem:[%s1505 + $0x2c] sm:$0xf]
      %v1518 = vld [vmem:[%s1505 + $0x30] sm:$0xf]
      %v1519 = vld [vmem:[%s1505 + $0x34] sm:$0xf]
      %v1520 = vld [vmem:[%s1505 + $0x38] sm:$0xf]
      %v1521 = vld [vmem:[%s1505 + $0x3c] sm:$0xf]
      %v1522 = vunpack.c.l.b16 %v1406
      %v1523 = vunpack.c.l.b16 %v1420
      %v1524 = vunpack.c.l.b16 %v1434
      %v1525 = vunpack.c.l.b16 %v1448
      %v1526 = vunpack.c.l.b16 %v1462
      %v1527 = vunpack.c.l.b16 %v1476
      %v1528 = vunpack.c.l.b16 %v1490
      %v1529 = vunpack.c.l.b16 %v1504
      %v1530 = vpack.c.b16 %v1523, %v1522
      %v1531 = vpack.c.b16 %v1525, %v1524
      %v1532 = vpack.c.b16 %v1527, %v1526
      %v1533 = vpack.c.b16 %v1529, %v1528
      %v1554 = vunpack.c.l.b16 %v1506
      %v1555 = vunpack.c.l.b16 %v1507
      %v1556 = vunpack.c.l.b16 %v1508
      %v1557 = vunpack.c.l.b16 %v1509
      %v1558 = vunpack.c.l.b16 %v1510
      %v1559 = vunpack.c.l.b16 %v1511
      %v1560 = vunpack.c.l.b16 %v1512
      %v1561 = vunpack.c.l.b16 %v1513
      %v1562 = vunpack.c.l.b16 %v1514
      %v1563 = vunpack.c.l.b16 %v1515
      %v1564 = vunpack.c.l.b16 %v1516
      %v1565 = vunpack.c.l.b16 %v1517
      %v1566 = vunpack.c.l.b16 %v1518
      %v1567 = vunpack.c.l.b16 %v1519
      %v1568 = vunpack.c.l.b16 %v1520
      %v1569 = vunpack.c.l.b16 %v1521
      %v1570 = vpack.c.b16 %v1555, %v1554
      %v1571 = vpack.c.b16 %v1557, %v1556
      %v1572 = vpack.c.b16 %v1559, %v1558
      %v1573 = vpack.c.b16 %v1561, %v1560
      %v1574 = vpack.c.b16 %v1563, %v1562
      %v1575 = vpack.c.b16 %v1565, %v1564
      %v1576 = vpack.c.b16 %v1567, %v1566
      %v1577 = vpack.c.b16 %v1569, %v1568
      %1586 = vmatprep.subr.bf16.mxu0 0
      %1587 = vmatpush1.bf16.msra.mxu0 %v1570
      %1588 = vmatprep.subr.bf16.mxu0 0
      %1589 = vmatpush1.bf16.msra.mxu0 %v1571
      %1590 = vmatprep.subr.bf16.mxu0 0
      %1591 = vmatpush1.bf16.msra.mxu0 %v1572
      %1592 = vmatprep.subr.bf16.mxu0 0
      %1593 = vmatpush1.bf16.msra.mxu0 %v1573
      %1594 = vmatprep.subr.bf16.mxu0 0
      %1595 = vmatpush1.bf16.msra.mxu0 %v1574
      %1596 = vmatprep.subr.bf16.mxu0 0
      %1597 = vmatpush1.bf16.msra.mxu0 %v1575
      %1598 = vmatprep.subr.bf16.mxu0 0
      %1599 = vmatpush1.bf16.msra.mxu0 %v1576
      %1600 = vmatprep.subr.bf16.mxu0 0
      %1601 = vmatpush1.bf16.msra.mxu0 %v1577
      %1602 = vmatprep.subr.bf16.mxu0 0
      %1603 = vmatpush1.bf16.msra.mxu0 0
      %1604 = vmatprep.subr.bf16.mxu0 0
      %1605 = vmatpush1.bf16.msra.mxu0 0
      %1606 = vmatprep.subr.bf16.mxu0 0
      %1607 = vmatpush1.bf16.msra.mxu0 0
      %1608 = vmatprep.subr.bf16.mxu0 0
      %1609 = vmatpush1.bf16.msra.mxu0 0
      %1610 = vmatprep.subr.bf16.mxu0 0
      %1611 = vmatpush1.bf16.msra.mxu0 0
      %1612 = vmatprep.subr.bf16.mxu0 0
      %1613 = vmatpush1.bf16.msra.mxu0 0
      %1614 = vmatprep.subr.bf16.mxu0 0
      %1615 = vmatpush1.bf16.msra.mxu0 0
      %1616 = vmatprep.subr.bf16.mxu0 0
      %1617 = vmatpush1.bf16.msra.mxu0 0
      %1618 = vmatprep.mubr.bf16.mxu0 0
      %1619 = vmatmul.mubr.bf16.gmra.mrb[0].mxu0 %v1530
      %v1620 = vpop.f32.mrb[0].mxu0
      %v1621 = vadd.f32 0.0, %v1620
      %v1622 = vpop.f32.mrb[0].mxu0
      %v1623 = vpop.f32.mrb[0].mxu0
      %v1624 = vadd.f32 0.0, %v1623
      %v1625 = vpop.f32.mrb[0].mxu0
      %1626 = vmatprep.mubr.bf16.mxu0 0
      %1627 = vmatmul.mubr.bf16.gmra.mrb[0].mxu0 %v1531
      %v1628 = vpop.f32.mrb[0].mxu0
      %v1629 = vadd.f32 0.0, %v1628
      %v1630 = vpop.f32.mrb[0].mxu0
      %v1631 = vpop.f32.mrb[0].mxu0
      %v1632 = vadd.f32 0.0, %v1631
      %v1633 = vpop.f32.mrb[0].mxu0
      %1634 = vmatprep.mubr.bf16.mxu0 0
      %1635 = vmatmul.mubr.bf16.gmra.mrb[0].mxu0 %v1532
      %v1636 = vpop.f32.mrb[0].mxu0
      %v1637 = vadd.f32 0.0, %v1636
      %v1638 = vpop.f32.mrb[0].mxu0
      %v1639 = vpop.f32.mrb[0].mxu0
      %v1640 = vadd.f32 0.0, %v1639
      %v1641 = vpop.f32.mrb[0].mxu0
      %1642 = vmatprep.mubr.bf16.mxu0 0
      %1643 = vmatmul.mubr.bf16.gmra.mrb[0].mxu0 %v1533
      %v1644 = vpop.f32.mrb[0].mxu0
      %v1645 = vadd.f32 0.0, %v1644
      %v1646 = vpop.f32.mrb[0].mxu0
      %v1647 = vpop.f32.mrb[0].mxu0
      %v1648 = vadd.f32 0.0, %v1647
      %v1649 = vpop.f32.mrb[0].mxu0
      %1650 = vdwg.mxu0
      %v1651 = vadd.f32 %v1369, %v1621
      %v1652 = vadd.f32 %v1370, %v1624
      %v1653 = vadd.f32 %v1371, %v1629
      %v1654 = vadd.f32 %v1372, %v1632
      %v1655 = vadd.f32 %v1373, %v1637
      %v1656 = vadd.f32 %v1374, %v1640
      %v1657 = vadd.f32 %v1375, %v1645
      %v1658 = vadd.f32 %v1376, %v1648
      %v1659 = vld [vmem:[%s1206] sm:$0xe]
      %v1660 = vld [vmem:[%s1206 + $0x8] sm:$0xe]
      %v1661 = vld [vmem:[%s1206 + $0x10] sm:$0xe]
      %v1662 = vld [vmem:[%s1206 + $0x18] sm:$0xe]
      %v1663 = vld [vmem:[%s1206 + $0x20] sm:$0xe]
      %v1664 = vld [vmem:[%s1206 + $0x28] sm:$0xe]
      %v1665 = vld [vmem:[%s1206 + $0x30] sm:$0xe]
      %v1666 = vld [vmem:[%s1206 + $0x38] sm:$0xe]
      %v1683 = vrot.slane %v1659, 5
      %v1684 = vrot.slane %v1683, 4
      %v1685 = vrot.slane %v1378, 5
      %v1686 = vsel %vm1016, %v1684, %v1685
      %v1687 = vrot.slane %v1660, 5
      %v1688 = vrot.slane %v1687, 4
      %v1689 = vrot.slane %v1380, 5
      %v1690 = vsel %vm1016, %v1688, %v1689
      %v1691 = vrot.slane %v1661, 5
      %v1692 = vrot.slane %v1691, 4
      %v1693 = vrot.slane %v1382, 5
      %v1694 = vsel %vm1016, %v1692, %v1693
      %v1695 = vrot.slane %v1662, 5
      %v1696 = vrot.slane %v1695, 4
      %v1697 = vrot.slane %v1384, 5
      %v1698 = vsel %vm1016, %v1696, %v1697
      %v1699 = vrot.slane %v1663, 5
      %v1700 = vrot.slane %v1699, 4
      %v1701 = vrot.slane %v1386, 5
      %v1702 = vsel %vm1016, %v1700, %v1701
      %v1703 = vrot.slane %v1664, 5
      %v1704 = vrot.slane %v1703, 4
      %v1705 = vrot.slane %v1388, 5
      %v1706 = vsel %vm1016, %v1704, %v1705
      %v1707 = vrot.slane %v1665, 5
      %v1708 = vrot.slane %v1707, 4
      %v1709 = vrot.slane %v1390, 5
      %v1710 = vsel %vm1016, %v1708, %v1709
      %v1711 = vrot.slane %v1666, 5
      %v1712 = vrot.slane %v1711, 4
      %v1713 = vrot.slane %v1392, 5
      %v1714 = vsel %vm1016, %v1712, %v1713
      %s1715 = scalar_lea.vmem %s3, 320
      %v1716 = vld [vmem:[%s1715] sm:$0xf]
      %v1717 = vld [vmem:[%s1715 + $0x4] sm:$0xf]
      %v1718 = vld [vmem:[%s1715 + $0x8] sm:$0xf]
      %v1719 = vld [vmem:[%s1715 + $0xc] sm:$0xf]
      %v1720 = vld [vmem:[%s1715 + $0x10] sm:$0xf]
      %v1721 = vld [vmem:[%s1715 + $0x14] sm:$0xf]
      %v1722 = vld [vmem:[%s1715 + $0x18] sm:$0xf]
      %v1723 = vld [vmem:[%s1715 + $0x1c] sm:$0xf]
      %v1724 = vld [vmem:[%s1715 + $0x20] sm:$0xf]
      %v1725 = vld [vmem:[%s1715 + $0x24] sm:$0xf]
      %v1726 = vld [vmem:[%s1715 + $0x28] sm:$0xf]
      %v1727 = vld [vmem:[%s1715 + $0x2c] sm:$0xf]
      %v1728 = vld [vmem:[%s1715 + $0x30] sm:$0xf]
      %v1729 = vld [vmem:[%s1715 + $0x34] sm:$0xf]
      %v1730 = vld [vmem:[%s1715 + $0x38] sm:$0xf]
      %v1731 = vld [vmem:[%s1715 + $0x3c] sm:$0xf]
      %v1732 = vunpack.c.l.b16 %v1686
      %v1733 = vunpack.c.l.b16 %v1690
      %v1734 = vunpack.c.l.b16 %v1694
      %v1735 = vunpack.c.l.b16 %v1698
      %v1736 = vunpack.c.l.b16 %v1702
      %v1737 = vunpack.c.l.b16 %v1706
      %v1738 = vunpack.c.l.b16 %v1710
      %v1739 = vunpack.c.l.b16 %v1714
      %v1740 = vpack.c.b16 %v1733, %v1732
      %v1741 = vpack.c.b16 %v1735, %v1734
      %v1742 = vpack.c.b16 %v1737, %v1736
      %v1743 = vpack.c.b16 %v1739, %v1738
      %v1764 = vunpack.c.l.b16 %v1716
      %v1765 = vunpack.c.l.b16 %v1717
      %v1766 = vunpack.c.l.b16 %v1718
      %v1767 = vunpack.c.l.b16 %v1719
      %v1768 = vunpack.c.l.b16 %v1720
      %v1769 = vunpack.c.l.b16 %v1721
      %v1770 = vunpack.c.l.b16 %v1722
      %v1771 = vunpack.c.l.b16 %v1723
      %v1772 = vunpack.c.l.b16 %v1724
      %v1773 = vunpack.c.l.b16 %v1725
      %v1774 = vunpack.c.l.b16 %v1726
      %v1775 = vunpack.c.l.b16 %v1727
      %v1776 = vunpack.c.l.b16 %v1728
      %v1777 = vunpack.c.l.b16 %v1729
      %v1778 = vunpack.c.l.b16 %v1730
      %v1779 = vunpack.c.l.b16 %v1731
      %v1780 = vpack.c.b16 %v1765, %v1764
      %v1781 = vpack.c.b16 %v1767, %v1766
      %v1782 = vpack.c.b16 %v1769, %v1768
      %v1783 = vpack.c.b16 %v1771, %v1770
      %v1784 = vpack.c.b16 %v1773, %v1772
      %v1785 = vpack.c.b16 %v1775, %v1774
      %v1786 = vpack.c.b16 %v1777, %v1776
      %v1787 = vpack.c.b16 %v1779, %v1778
      %1796 = vmatprep.subr.bf16.mxu0 0
      %1797 = vmatpush1.bf16.msra.mxu0 %v1780
      %1798 = vmatprep.subr.bf16.mxu0 0
      %1799 = vmatpush1.bf16.msra.mxu0 %v1781
      %1800 = vmatprep.subr.bf16.mxu0 0
      %1801 = vmatpush1.bf16.msra.mxu0 %v1782
      %1802 = vmatprep.subr.bf16.mxu0 0
      %1803 = vmatpush1.bf16.msra.mxu0 %v1783
      %1804 = vmatprep.subr.bf16.mxu0 0
      %1805 = vmatpush1.bf16.msra.mxu0 %v1784
      %1806 = vmatprep.subr.bf16.mxu0 0
      %1807 = vmatpush1.bf16.msra.mxu0 %v1785
      %1808 = vmatprep.subr.bf16.mxu0 0
      %1809 = vmatpush1.bf16.msra.mxu0 %v1786
      %1810 = vmatprep.subr.bf16.mxu0 0
      %1811 = vmatpush1.bf16.msra.mxu0 %v1787
      %1812 = vmatprep.subr.bf16.mxu0 0
      %1813 = vmatpush1.bf16.msra.mxu0 0
      %1814 = vmatprep.subr.bf16.mxu0 0
      %1815 = vmatpush1.bf16.msra.mxu0 0
      %1816 = vmatprep.subr.bf16.mxu0 0
      %1817 = vmatpush1.bf16.msra.mxu0 0
      %1818 = vmatprep.subr.bf16.mxu0 0
      %1819 = vmatpush1.bf16.msra.mxu0 0
      %1820 = vmatprep.subr.bf16.mxu0 0
      %1821 = vmatpush1.bf16.msra.mxu0 0
      %1822 = vmatprep.subr.bf16.mxu0 0
      %1823 = vmatpush1.bf16.msra.mxu0 0
      %1824 = vmatprep.subr.bf16.mxu0 0
      %1825 = vmatpush1.bf16.msra.mxu0 0
      %1826 = vmatprep.subr.bf16.mxu0 0
      %1827 = vmatpush1.bf16.msra.mxu0 0
      %1828 = vmatprep.mubr.bf16.mxu0 0
      %1829 = vmatmul.mubr.bf16.gmra.mrb[0].mxu0 %v1740
      %v1830 = vpop.f32.mrb[0].mxu0
      %v1831 = vadd.f32 0.0, %v1830
      %v1832 = vpop.f32.mrb[0].mxu0
      %v1833 = vpop.f32.mrb[0].mxu0
      %v1834 = vadd.f32 0.0, %v1833
      %v1835 = vpop.f32.mrb[0].mxu0
      %1836 = vmatprep.mubr.bf16.mxu0 0
      %1837 = vmatmul.mubr.bf16.gmra.mrb[0].mxu0 %v1741
      %v1838 = vpop.f32.mrb[0].mxu0
      %v1839 = vadd.f32 0.0, %v1838
      %v1840 = vpop.f32.mrb[0].mxu0
      %v1841 = vpop.f32.mrb[0].mxu0
      %v1842 = vadd.f32 0.0, %v1841
      %v1843 = vpop.f32.mrb[0].mxu0
      %1844 = vmatprep.mubr.bf16.mxu0 0
      %1845 = vmatmul.mubr.bf16.gmra.mrb[0].mxu0 %v1742
      %v1846 = vpop.f32.mrb[0].mxu0
      %v1847 = vadd.f32 0.0, %v1846
      %v1848 = vpop.f32.mrb[0].mxu0
      %v1849 = vpop.f32.mrb[0].mxu0
      %v1850 = vadd.f32 0.0, %v1849
      %v1851 = vpop.f32.mrb[0].mxu0
      %1852 = vmatprep.mubr.bf16.mxu0 0
      %1853 = vmatmul.mubr.bf16.gmra.mrb[0].mxu0 %v1743
      %v1854 = vpop.f32.mrb[0].mxu0
      %v1855 = vadd.f32 0.0, %v1854
      %v1856 = vpop.f32.mrb[0].mxu0
      %v1857 = vpop.f32.mrb[0].mxu0
      %v1858 = vadd.f32 0.0, %v1857
      %v1859 = vpop.f32.mrb[0].mxu0
      %1860 = vdwg.mxu0
      %v1861 = vadd.f32 %v1651, %v1831
      %v1862 = vadd.f32 %v1652, %v1834
      %v1863 = vadd.f32 %v1653, %v1839
      %v1864 = vadd.f32 %v1654, %v1842
      %v1865 = vadd.f32 %v1655, %v1847
      %v1866 = vadd.f32 %v1656, %v1850
      %v1867 = vadd.f32 %v1657, %v1855
      %v1868 = vadd.f32 %v1658, %v1858
      %s1869 = sadd.s32 0, 2
      %s1870 = smul.u32 %s1869, 2
      %s1871 = smul.addr %s1870, 4
      %s1872 = scalar_lea.vmem [#allocation2], %s1871
      %v1873 = vld [vmem:[%s1872] sm:$0xf]
      %v1874 = vld [vmem:[%s1872 + $0x8] sm:$0xf]
      %v1875 = vld [vmem:[%s1872 + $0x10] sm:$0xf]
      %v1876 = vld [vmem:[%s1872 + $0x18] sm:$0xf]
      %v1877 = vld [vmem:[%s1872 + $0x20] sm:$0xf]
      %v1878 = vld [vmem:[%s1872 + $0x28] sm:$0xf]
      %v1879 = vld [vmem:[%s1872 + $0x30] sm:$0xf]
      %v1880 = vld [vmem:[%s1872 + $0x38] sm:$0xf]
      %s1881 = scalar_lea.vmem %s3, 384
      %v1882 = vld [vmem:[%s1881] sm:$0xf]
      %v1883 = vld [vmem:[%s1881 + $0x4] sm:$0xf]
      %v1884 = vld [vmem:[%s1881 + $0x8] sm:$0xf]
      %v1885 = vld [vmem:[%s1881 + $0xc] sm:$0xf]
      %v1886 = vld [vmem:[%s1881 + $0x10] sm:$0xf]
      %v1887 = vld [vmem:[%s1881 + $0x14] sm:$0xf]
      %v1888 = vld [vmem:[%s1881 + $0x18] sm:$0xf]
      %v1889 = vld [vmem:[%s1881 + $0x1c] sm:$0xf]
      %v1890 = vld [vmem:[%s1881 + $0x20] sm:$0xf]
      %v1891 = vld [vmem:[%s1881 + $0x24] sm:$0xf]
      %v1892 = vld [vmem:[%s1881 + $0x28] sm:$0xf]
      %v1893 = vld [vmem:[%s1881 + $0x2c] sm:$0xf]
      %v1894 = vld [vmem:[%s1881 + $0x30] sm:$0xf]
      %v1895 = vld [vmem:[%s1881 + $0x34] sm:$0xf]
      %v1896 = vld [vmem:[%s1881 + $0x38] sm:$0xf]
      %v1897 = vld [vmem:[%s1881 + $0x3c] sm:$0xf]
      %v1906 = vunpack.c.l.b16 %v1873
      %v1907 = vunpack.c.l.b16 %v1874
      %v1908 = vunpack.c.l.b16 %v1875
      %v1909 = vunpack.c.l.b16 %v1876
      %v1910 = vunpack.c.l.b16 %v1877
      %v1911 = vunpack.c.l.b16 %v1878
      %v1912 = vunpack.c.l.b16 %v1879
      %v1913 = vunpack.c.l.b16 %v1880
      %v1914 = vpack.c.b16 %v1907, %v1906
      %v1915 = vpack.c.b16 %v1909, %v1908
      %v1916 = vpack.c.b16 %v1911, %v1910
      %v1917 = vpack.c.b16 %v1913, %v1912
      %v1938 = vunpack.c.l.b16 %v1882
      %v1939 = vunpack.c.l.b16 %v1883
      %v1940 = vunpack.c.l.b16 %v1884
      %v1941 = vunpack.c.l.b16 %v1885
      %v1942 = vunpack.c.l.b16 %v1886
      %v1943 = vunpack.c.l.b16 %v1887
      %v1944 = vunpack.c.l.b16 %v1888
      %v1945 = vunpack.c.l.b16 %v1889
      %v1946 = vunpack.c.l.b16 %v1890
      %v1947 = vunpack.c.l.b16 %v1891
      %v1948 = vunpack.c.l.b16 %v1892
      %v1949 = vunpack.c.l.b16 %v1893
      %v1950 = vunpack.c.l.b16 %v1894
      %v1951 = vunpack.c.l.b16 %v1895
      %v1952 = vunpack.c.l.b16 %v1896
      %v1953 = vunpack.c.l.b16 %v1897
      %v1954 = vpack.c.b16 %v1939, %v1938
      %v1955 = vpack.c.b16 %v1941, %v1940
      %v1956 = vpack.c.b16 %v1943, %v1942
      %v1957 = vpack.c.b16 %v1945, %v1944
      %v1958 = vpack.c.b16 %v1947, %v1946
      %v1959 = vpack.c.b16 %v1949, %v1948
      %v1960 = vpack.c.b16 %v1951, %v1950
      %v1961 = vpack.c.b16 %v1953, %v1952
      %1970 = vmatprep.subr.bf16.mxu0 0
      %1971 = vmatpush1.bf16.msra.mxu0 %v1954
      %1972 = vmatprep.subr.bf16.mxu0 0
      %1973 = vmatpush1.bf16.msra.mxu0 %v1955
      %1974 = vmatprep.subr.bf16.mxu0 0
      %1975 = vmatpush1.bf16.msra.mxu0 %v1956
      %1976 = vmatprep.subr.bf16.mxu0 0
      %1977 = vmatpush1.bf16.msra.mxu0 %v1957
      %1978 = vmatprep.subr.bf16.mxu0 0
      %1979 = vmatpush1.bf16.msra.mxu0 %v1958
      %1980 = vmatprep.subr.bf16.mxu0 0
      %1981 = vmatpush1.bf16.msra.mxu0 %v1959
      %1982 = vmatprep.subr.bf16.mxu0 0
      %1983 = vmatpush1.bf16.msra.mxu0 %v1960
      %1984 = vmatprep.subr.bf16.mxu0 0
      %1985 = vmatpush1.bf16.msra.mxu0 %v1961
      %1986 = vmatprep.subr.bf16.mxu0 0
      %1987 = vmatpush1.bf16.msra.mxu0 0
      %1988 = vmatprep.subr.bf16.mxu0 0
      %1989 = vmatpush1.bf16.msra.mxu0 0
      %1990 = vmatprep.subr.bf16.mxu0 0
      %1991 = vmatpush1.bf16.msra.mxu0 0
      %1992 = vmatprep.subr.bf16.mxu0 0
      %1993 = vmatpush1.bf16.msra.mxu0 0
      %1994 = vmatprep.subr.bf16.mxu0 0
      %1995 = vmatpush1.bf16.msra.mxu0 0
      %1996 = vmatprep.subr.bf16.mxu0 0
      %1997 = vmatpush1.bf16.msra.mxu0 0
      %1998 = vmatprep.subr.bf16.mxu0 0
      %1999 = vmatpush1.bf16.msra.mxu0 0
      %2000 = vmatprep.subr.bf16.mxu0 0
      %2001 = vmatpush1.bf16.msra.mxu0 0
      %2002 = vmatprep.mubr.bf16.mxu0 0
      %2003 = vmatmul.mubr.bf16.gmra.mrb[0].mxu0 %v1914
      %v2004 = vpop.f32.mrb[0].mxu0
      %v2005 = vadd.f32 0.0, %v2004
      %v2006 = vpop.f32.mrb[0].mxu0
      %v2007 = vpop.f32.mrb[0].mxu0
      %v2008 = vadd.f32 0.0, %v2007
      %v2009 = vpop.f32.mrb[0].mxu0
      %2010 = vmatprep.mubr.bf16.mxu0 0
      %2011 = vmatmul.mubr.bf16.gmra.mrb[0].mxu0 %v1915
      %v2012 = vpop.f32.mrb[0].mxu0
      %v2013 = vadd.f32 0.0, %v2012
      %v2014 = vpop.f32.mrb[0].mxu0
      %v2015 = vpop.f32.mrb[0].mxu0
      %v2016 = vadd.f32 0.0, %v2015
      %v2017 = vpop.f32.mrb[0].mxu0
      %2018 = vmatprep.mubr.bf16.mxu0 0
      %2019 = vmatmul.mubr.bf16.gmra.mrb[0].mxu0 %v1916
      %v2020 = vpop.f32.mrb[0].mxu0
      %v2021 = vadd.f32 0.0, %v2020
      %v2022 = vpop.f32.mrb[0].mxu0
      %v2023 = vpop.f32.mrb[0].mxu0
      %v2024 = vadd.f32 0.0, %v2023
      %v2025 = vpop.f32.mrb[0].mxu0
      %2026 = vmatprep.mubr.bf16.mxu0 0
      %2027 = vmatmul.mubr.bf16.gmra.mrb[0].mxu0 %v1917
      %v2028 = vpop.f32.mrb[0].mxu0
      %v2029 = vadd.f32 0.0, %v2028
      %v2030 = vpop.f32.mrb[0].mxu0
      %v2031 = vpop.f32.mrb[0].mxu0
      %v2032 = vadd.f32 0.0, %v2031
      %v2033 = vpop.f32.mrb[0].mxu0
      %2034 = vdwg.mxu0
      %v2035 = vadd.f32 %v1861, %v2005
      %v2036 = vadd.f32 %v1862, %v2008
      %v2037 = vadd.f32 %v1863, %v2013
      %v2038 = vadd.f32 %v1864, %v2016
      %v2039 = vadd.f32 %v1865, %v2021
      %v2040 = vadd.f32 %v1866, %v2024
      %v2041 = vadd.f32 %v1867, %v2029
      %v2042 = vadd.f32 %v1868, %v2032
      %v2043 = vld [vmem:[%s1872] sm:$0xf]
      %v2044 = vld [vmem:[%s1872 + $0x4] sm:$0x1]
      %v2045 = vld [vmem:[%s1872 + $0x8] sm:$0xf]
      %v2046 = vld [vmem:[%s1872 + $0xc] sm:$0x1]
      %v2047 = vld [vmem:[%s1872 + $0x10] sm:$0xf]
      %v2048 = vld [vmem:[%s1872 + $0x14] sm:$0x1]
      %v2049 = vld [vmem:[%s1872 + $0x18] sm:$0xf]
      %v2050 = vld [vmem:[%s1872 + $0x1c] sm:$0x1]
      %v2051 = vld [vmem:[%s1872 + $0x20] sm:$0xf]
      %v2052 = vld [vmem:[%s1872 + $0x24] sm:$0x1]
      %v2053 = vld [vmem:[%s1872 + $0x28] sm:$0xf]
      %v2054 = vld [vmem:[%s1872 + $0x2c] sm:$0x1]
      %v2055 = vld [vmem:[%s1872 + $0x30] sm:$0xf]
      %v2056 = vld [vmem:[%s1872 + $0x34] sm:$0x1]
      %v2057 = vld [vmem:[%s1872 + $0x38] sm:$0xf]
      %v2058 = vld [vmem:[%s1872 + $0x3c] sm:$0x1]
      %v2060 = vshrl.u32 %v2043, 16
      %v2062 = vrot.slane %v2060, 4
      %v2063 = vshll.u32 %v2043, 16
      %v2065 = vrot.slane %v2063, 5
      %v2066 = vor.u32 %v2062, %v2065
      %v2067 = vrot.slane %v2066, 4
      %v2069 = vshll.u32 %v2044, 16
      %v2071 = vrot.slane %v2069, 5
      %v2072 = vsel %vm594, %v2067, %v2071
      %v2074 = vshrl.u32 %v2045, 16
      %v2076 = vrot.slane %v2074, 4
      %v2077 = vshll.u32 %v2045, 16
      %v2079 = vrot.slane %v2077, 5
      %v2080 = vor.u32 %v2076, %v2079
      %v2081 = vrot.slane %v2080, 4
      %v2083 = vshll.u32 %v2046, 16
      %v2085 = vrot.slane %v2083, 5
      %v2086 = vsel %vm594, %v2081, %v2085
      %v2088 = vshrl.u32 %v2047, 16
      %v2090 = vrot.slane %v2088, 4
      %v2091 = vshll.u32 %v2047, 16
      %v2093 = vrot.slane %v2091, 5
      %v2094 = vor.u32 %v2090, %v2093
      %v2095 = vrot.slane %v2094, 4
      %v2097 = vshll.u32 %v2048, 16
      %v2099 = vrot.slane %v2097, 5
      %v2100 = vsel %vm594, %v2095, %v2099
      %v2102 = vshrl.u32 %v2049, 16
      %v2104 = vrot.slane %v2102, 4
      %v2105 = vshll.u32 %v2049, 16
      %v2107 = vrot.slane %v2105, 5
      %v2108 = vor.u32 %v2104, %v2107
      %v2109 = vrot.slane %v2108, 4
      %v2111 = vshll.u32 %v2050, 16
      %v2113 = vrot.slane %v2111, 5
      %v2114 = vsel %vm594, %v2109, %v2113
      %v2116 = vshrl.u32 %v2051, 16
      %v2118 = vrot.slane %v2116, 4
      %v2119 = vshll.u32 %v2051, 16
      %v2121 = vrot.slane %v2119, 5
      %v2122 = vor.u32 %v2118, %v2121
      %v2123 = vrot.slane %v2122, 4
      %v2125 = vshll.u32 %v2052, 16
      %v2127 = vrot.slane %v2125, 5
      %v2128 = vsel %vm594, %v2123, %v2127
      %v2130 = vshrl.u32 %v2053, 16
      %v2132 = vrot.slane %v2130, 4
      %v2133 = vshll.u32 %v2053, 16
      %v2135 = vrot.slane %v2133, 5
      %v2136 = vor.u32 %v2132, %v2135
      %v2137 = vrot.slane %v2136, 4
      %v2139 = vshll.u32 %v2054, 16
      %v2141 = vrot.slane %v2139, 5
      %v2142 = vsel %vm594, %v2137, %v2141
      %v2144 = vshrl.u32 %v2055, 16
      %v2146 = vrot.slane %v2144, 4
      %v2147 = vshll.u32 %v2055, 16
      %v2149 = vrot.slane %v2147, 5
      %v2150 = vor.u32 %v2146, %v2149
      %v2151 = vrot.slane %v2150, 4
      %v2153 = vshll.u32 %v2056, 16
      %v2155 = vrot.slane %v2153, 5
      %v2156 = vsel %vm594, %v2151, %v2155
      %v2158 = vshrl.u32 %v2057, 16
      %v2160 = vrot.slane %v2158, 4
      %v2161 = vshll.u32 %v2057, 16
      %v2163 = vrot.slane %v2161, 5
      %v2164 = vor.u32 %v2160, %v2163
      %v2165 = vrot.slane %v2164, 4
      %v2167 = vshll.u32 %v2058, 16
      %v2169 = vrot.slane %v2167, 5
      %v2170 = vsel %vm594, %v2165, %v2169
      %s2171 = scalar_lea.vmem %s3, 448
      %v2172 = vld [vmem:[%s2171] sm:$0xf]
      %v2173 = vld [vmem:[%s2171 + $0x4] sm:$0xf]
      %v2174 = vld [vmem:[%s2171 + $0x8] sm:$0xf]
      %v2175 = vld [vmem:[%s2171 + $0xc] sm:$0xf]
      %v2176 = vld [vmem:[%s2171 + $0x10] sm:$0xf]
      %v2177 = vld [vmem:[%s2171 + $0x14] sm:$0xf]
      %v2178 = vld [vmem:[%s2171 + $0x18] sm:$0xf]
      %v2179 = vld [vmem:[%s2171 + $0x1c] sm:$0xf]
      %v2180 = vld [vmem:[%s2171 + $0x20] sm:$0xf]
      %v2181 = vld [vmem:[%s2171 + $0x24] sm:$0xf]
      %v2182 = vld [vmem:[%s2171 + $0x28] sm:$0xf]
      %v2183 = vld [vmem:[%s2171 + $0x2c] sm:$0xf]
      %v2184 = vld [vmem:[%s2171 + $0x30] sm:$0xf]
      %v2185 = vld [vmem:[%s2171 + $0x34] sm:$0xf]
      %v2186 = vld [vmem:[%s2171 + $0x38] sm:$0xf]
      %v2187 = vld [vmem:[%s2171 + $0x3c] sm:$0xf]
      %v2188 = vunpack.c.l.b16 %v2072
      %v2189 = vunpack.c.l.b16 %v2086
      %v2190 = vunpack.c.l.b16 %v2100
      %v2191 = vunpack.c.l.b16 %v2114
      %v2192 = vunpack.c.l.b16 %v2128
      %v2193 = vunpack.c.l.b16 %v2142
      %v2194 = vunpack.c.l.b16 %v2156
      %v2195 = vunpack.c.l.b16 %v2170
      %v2196 = vpack.c.b16 %v2189, %v2188
      %v2197 = vpack.c.b16 %v2191, %v2190
      %v2198 = vpack.c.b16 %v2193, %v2192
      %v2199 = vpack.c.b16 %v2195, %v2194
      %v2220 = vunpack.c.l.b16 %v2172
      %v2221 = vunpack.c.l.b16 %v2173
      %v2222 = vunpack.c.l.b16 %v2174
      %v2223 = vunpack.c.l.b16 %v2175
      %v2224 = vunpack.c.l.b16 %v2176
      %v2225 = vunpack.c.l.b16 %v2177
      %v2226 = vunpack.c.l.b16 %v2178
      %v2227 = vunpack.c.l.b16 %v2179
      %v2228 = vunpack.c.l.b16 %v2180
      %v2229 = vunpack.c.l.b16 %v2181
      %v2230 = vunpack.c.l.b16 %v2182
      %v2231 = vunpack.c.l.b16 %v2183
      %v2232 = vunpack.c.l.b16 %v2184
      %v2233 = vunpack.c.l.b16 %v2185
      %v2234 = vunpack.c.l.b16 %v2186
      %v2235 = vunpack.c.l.b16 %v2187
      %v2236 = vpack.c.b16 %v2221, %v2220
      %v2237 = vpack.c.b16 %v2223, %v2222
      %v2238 = vpack.c.b16 %v2225, %v2224
      %v2239 = vpack.c.b16 %v2227, %v2226
      %v2240 = vpack.c.b16 %v2229, %v2228
      %v2241 = vpack.c.b16 %v2231, %v2230
      %v2242 = vpack.c.b16 %v2233, %v2232
      %v2243 = vpack.c.b16 %v2235, %v2234
      %2252 = vmatprep.subr.bf16.mxu0 0
      %2253 = vmatpush1.bf16.msra.mxu0 %v2236
      %2254 = vmatprep.subr.bf16.mxu0 0
      %2255 = vmatpush1.bf16.msra.mxu0 %v2237
      %2256 = vmatprep.subr.bf16.mxu0 0
      %2257 = vmatpush1.bf16.msra.mxu0 %v2238
      %2258 = vmatprep.subr.bf16.mxu0 0
      %2259 = vmatpush1.bf16.msra.mxu0 %v2239
      %2260 = vmatprep.subr.bf16.mxu0 0
      %2261 = vmatpush1.bf16.msra.mxu0 %v2240
      %2262 = vmatprep.subr.bf16.mxu0 0
      %2263 = vmatpush1.bf16.msra.mxu0 %v2241
      %2264 = vmatprep.subr.bf16.mxu0 0
      %2265 = vmatpush1.bf16.msra.mxu0 %v2242
      %2266 = vmatprep.subr.bf16.mxu0 0
      %2267 = vmatpush1.bf16.msra.mxu0 %v2243
      %2268 = vmatprep.subr.bf16.mxu0 0
      %2269 = vmatpush1.bf16.msra.mxu0 0
      %2270 = vmatprep.subr.bf16.mxu0 0
      %2271 = vmatpush1.bf16.msra.mxu0 0
      %2272 = vmatprep.subr.bf16.mxu0 0
      %2273 = vmatpush1.bf16.msra.mxu0 0
      %2274 = vmatprep.subr.bf16.mxu0 0
      %2275 = vmatpush1.bf16.msra.mxu0 0
      %2276 = vmatprep.subr.bf16.mxu0 0
      %2277 = vmatpush1.bf16.msra.mxu0 0
      %2278 = vmatprep.subr.bf16.mxu0 0
      %2279 = vmatpush1.bf16.msra.mxu0 0
      %2280 = vmatprep.subr.bf16.mxu0 0
      %2281 = vmatpush1.bf16.msra.mxu0 0
      %2282 = vmatprep.subr.bf16.mxu0 0
      %2283 = vmatpush1.bf16.msra.mxu0 0
      %2284 = vmatprep.mubr.bf16.mxu0 0
      %2285 = vmatmul.mubr.bf16.gmra.mrb[0].mxu0 %v2196
      %v2286 = vpop.f32.mrb[0].mxu0
      %v2287 = vadd.f32 0.0, %v2286
      %v2288 = vpop.f32.mrb[0].mxu0
      %v2289 = vpop.f32.mrb[0].mxu0
      %v2290 = vadd.f32 0.0, %v2289
      %v2291 = vpop.f32.mrb[0].mxu0
      %2292 = vmatprep.mubr.bf16.mxu0 0
      %2293 = vmatmul.mubr.bf16.gmra.mrb[0].mxu0 %v2197
      %v2294 = vpop.f32.mrb[0].mxu0
      %v2295 = vadd.f32 0.0, %v2294
      %v2296 = vpop.f32.mrb[0].mxu0
      %v2297 = vpop.f32.mrb[0].mxu0
      %v2298 = vadd.f32 0.0, %v2297
      %v2299 = vpop.f32.mrb[0].mxu0
      %2300 = vmatprep.mubr.bf16.mxu0 0
      %2301 = vmatmul.mubr.bf16.gmra.mrb[0].mxu0 %v2198
      %v2302 = vpop.f32.mrb[0].mxu0
      %v2303 = vadd.f32 0.0, %v2302
      %v2304 = vpop.f32.mrb[0].mxu0
      %v2305 = vpop.f32.mrb[0].mxu0
      %v2306 = vadd.f32 0.0, %v2305
      %v2307 = vpop.f32.mrb[0].mxu0
      %2308 = vmatprep.mubr.bf16.mxu0 0
      %2309 = vmatmul.mubr.bf16.gmra.mrb[0].mxu0 %v2199
      %v2310 = vpop.f32.mrb[0].mxu0
      %v2311 = vadd.f32 0.0, %v2310
      %v2312 = vpop.f32.mrb[0].mxu0
      %v2313 = vpop.f32.mrb[0].mxu0
      %v2314 = vadd.f32 0.0, %v2313
      %v2315 = vpop.f32.mrb[0].mxu0
      %2316 = vdwg.mxu0
      %v2317 = vadd.f32 %v2035, %v2287
      %v2318 = vadd.f32 %v2036, %v2290
      %v2319 = vadd.f32 %v2037, %v2295
      %v2320 = vadd.f32 %v2038, %v2298
      %v2321 = vadd.f32 %v2039, %v2303
      %v2322 = vadd.f32 %v2040, %v2306
      %v2323 = vadd.f32 %v2041, %v2311
      %v2324 = vadd.f32 %v2042, %v2314
      %v2325 = vld [vmem:[%s1872] sm:$0xe]
      %v2326 = vld [vmem:[%s1872 + $0x8] sm:$0xe]
      %v2327 = vld [vmem:[%s1872 + $0x10] sm:$0xe]
      %v2328 = vld [vmem:[%s1872 + $0x18] sm:$0xe]
      %v2329 = vld [vmem:[%s1872 + $0x20] sm:$0xe]
      %v2330 = vld [vmem:[%s1872 + $0x28] sm:$0xe]
      %v2331 = vld [vmem:[%s1872 + $0x30] sm:$0xe]
      %v2332 = vld [vmem:[%s1872 + $0x38] sm:$0xe]
      %v2349 = vrot.slane %v2325, 5
      %v2350 = vrot.slane %v2349, 4
      %v2351 = vrot.slane %v2044, 5
      %v2352 = vsel %vm1016, %v2350, %v2351
      %v2353 = vrot.slane %v2326, 5
      %v2354 = vrot.slane %v2353, 4
      %v2355 = vrot.slane %v2046, 5
      %v2356 = vsel %vm1016, %v2354, %v2355
      %v2357 = vrot.slane %v2327, 5
      %v2358 = vrot.slane %v2357, 4
      %v2359 = vrot.slane %v2048, 5
      %v2360 = vsel %vm1016, %v2358, %v2359
      %v2361 = vrot.slane %v2328, 5
      %v2362 = vrot.slane %v2361, 4
      %v2363 = vrot.slane %v2050, 5
      %v2364 = vsel %vm1016, %v2362, %v2363
      %v2365 = vrot.slane %v2329, 5
      %v2366 = vrot.slane %v2365, 4
      %v2367 = vrot.slane %v2052, 5
      %v2368 = vsel %vm1016, %v2366, %v2367
      %v2369 = vrot.slane %v2330, 5
      %v2370 = vrot.slane %v2369, 4
      %v2371 = vrot.slane %v2054, 5
      %v2372 = vsel %vm1016, %v2370, %v2371
      %v2373 = vrot.slane %v2331, 5
      %v2374 = vrot.slane %v2373, 4
      %v2375 = vrot.slane %v2056, 5
      %v2376 = vsel %vm1016, %v2374, %v2375
      %v2377 = vrot.slane %v2332, 5
      %v2378 = vrot.slane %v2377, 4
      %v2379 = vrot.slane %v2058, 5
      %v2380 = vsel %vm1016, %v2378, %v2379
      %s2381 = scalar_lea.vmem %s3, 512
      %v2382 = vld [vmem:[%s2381] sm:$0xf]
      %v2383 = vld [vmem:[%s2381 + $0x4] sm:$0xf]
      %v2384 = vld [vmem:[%s2381 + $0x8] sm:$0xf]
      %v2385 = vld [vmem:[%s2381 + $0xc] sm:$0xf]
      %v2386 = vld [vmem:[%s2381 + $0x10] sm:$0xf]
      %v2387 = vld [vmem:[%s2381 + $0x14] sm:$0xf]
      %v2388 = vld [vmem:[%s2381 + $0x18] sm:$0xf]
      %v2389 = vld [vmem:[%s2381 + $0x1c] sm:$0xf]
      %v2390 = vld [vmem:[%s2381 + $0x20] sm:$0xf]
      %v2391 = vld [vmem:[%s2381 + $0x24] sm:$0xf]
      %v2392 = vld [vmem:[%s2381 + $0x28] sm:$0xf]
      %v2393 = vld [vmem:[%s2381 + $0x2c] sm:$0xf]
      %v2394 = vld [vmem:[%s2381 + $0x30] sm:$0xf]
      %v2395 = vld [vmem:[%s2381 + $0x34] sm:$0xf]
      %v2396 = vld [vmem:[%s2381 + $0x38] sm:$0xf]
      %v2397 = vld [vmem:[%s2381 + $0x3c] sm:$0xf]
      %v2398 = vunpack.c.l.b16 %v2352
      %v2399 = vunpack.c.l.b16 %v2356
      %v2400 = vunpack.c.l.b16 %v2360
      %v2401 = vunpack.c.l.b16 %v2364
      %v2402 = vunpack.c.l.b16 %v2368
      %v2403 = vunpack.c.l.b16 %v2372
      %v2404 = vunpack.c.l.b16 %v2376
      %v2405 = vunpack.c.l.b16 %v2380
      %v2406 = vpack.c.b16 %v2399, %v2398
      %v2407 = vpack.c.b16 %v2401, %v2400
      %v2408 = vpack.c.b16 %v2403, %v2402
      %v2409 = vpack.c.b16 %v2405, %v2404
      %v2430 = vunpack.c.l.b16 %v2382
      %v2431 = vunpack.c.l.b16 %v2383
      %v2432 = vunpack.c.l.b16 %v2384
      %v2433 = vunpack.c.l.b16 %v2385
      %v2434 = vunpack.c.l.b16 %v2386
      %v2435 = vunpack.c.l.b16 %v2387
      %v2436 = vunpack.c.l.b16 %v2388
      %v2437 = vunpack.c.l.b16 %v2389
      %v2438 = vunpack.c.l.b16 %v2390
      %v2439 = vunpack.c.l.b16 %v2391
      %v2440 = vunpack.c.l.b16 %v2392
      %v2441 = vunpack.c.l.b16 %v2393
      %v2442 = vunpack.c.l.b16 %v2394
      %v2443 = vunpack.c.l.b16 %v2395
      %v2444 = vunpack.c.l.b16 %v2396
      %v2445 = vunpack.c.l.b16 %v2397
      %v2446 = vpack.c.b16 %v2431, %v2430
      %v2447 = vpack.c.b16 %v2433, %v2432
      %v2448 = vpack.c.b16 %v2435, %v2434
      %v2449 = vpack.c.b16 %v2437, %v2436
      %v2450 = vpack.c.b16 %v2439, %v2438
      %v2451 = vpack.c.b16 %v2441, %v2440
      %v2452 = vpack.c.b16 %v2443, %v2442
      %v2453 = vpack.c.b16 %v2445, %v2444
      %2462 = vmatprep.subr.bf16.mxu0 0
      %2463 = vmatpush1.bf16.msra.mxu0 %v2446
      %2464 = vmatprep.subr.bf16.mxu0 0
      %2465 = vmatpush1.bf16.msra.mxu0 %v2447
      %2466 = vmatprep.subr.bf16.mxu0 0
      %2467 = vmatpush1.bf16.msra.mxu0 %v2448
      %2468 = vmatprep.subr.bf16.mxu0 0
      %2469 = vmatpush1.bf16.msra.mxu0 %v2449
      %2470 = vmatprep.subr.bf16.mxu0 0
      %2471 = vmatpush1.bf16.msra.mxu0 %v2450
      %2472 = vmatprep.subr.bf16.mxu0 0
      %2473 = vmatpush1.bf16.msra.mxu0 %v2451
      %2474 = vmatprep.subr.bf16.mxu0 0
      %2475 = vmatpush1.bf16.msra.mxu0 %v2452
      %2476 = vmatprep.subr.bf16.mxu0 0
      %2477 = vmatpush1.bf16.msra.mxu0 %v2453
      %2478 = vmatprep.subr.bf16.mxu0 0
      %2479 = vmatpush1.bf16.msra.mxu0 0
      %2480 = vmatprep.subr.bf16.mxu0 0
      %2481 = vmatpush1.bf16.msra.mxu0 0
      %2482 = vmatprep.subr.bf16.mxu0 0
      %2483 = vmatpush1.bf16.msra.mxu0 0
      %2484 = vmatprep.subr.bf16.mxu0 0
      %2485 = vmatpush1.bf16.msra.mxu0 0
      %2486 = vmatprep.subr.bf16.mxu0 0
      %2487 = vmatpush1.bf16.msra.mxu0 0
      %2488 = vmatprep.subr.bf16.mxu0 0
      %2489 = vmatpush1.bf16.msra.mxu0 0
      %2490 = vmatprep.subr.bf16.mxu0 0
      %2491 = vmatpush1.bf16.msra.mxu0 0
      %2492 = vmatprep.subr.bf16.mxu0 0
      %2493 = vmatpush1.bf16.msra.mxu0 0
      %2494 = vmatprep.mubr.bf16.mxu0 0
      %2495 = vmatmul.mubr.bf16.gmra.mrb[0].mxu0 %v2406
      %v2496 = vpop.f32.mrb[0].mxu0
      %v2497 = vadd.f32 0.0, %v2496
      %v2498 = vpop.f32.mrb[0].mxu0
      %v2499 = vpop.f32.mrb[0].mxu0
      %v2500 = vadd.f32 0.0, %v2499
      %v2501 = vpop.f32.mrb[0].mxu0
      %2502 = vmatprep.mubr.bf16.mxu0 0
      %2503 = vmatmul.mubr.bf16.gmra.mrb[0].mxu0 %v2407
      %v2504 = vpop.f32.mrb[0].mxu0
      %v2505 = vadd.f32 0.0, %v2504
      %v2506 = vpop.f32.mrb[0].mxu0
      %v2507 = vpop.f32.mrb[0].mxu0
      %v2508 = vadd.f32 0.0, %v2507
      %v2509 = vpop.f32.mrb[0].mxu0
      %2510 = vmatprep.mubr.bf16.mxu0 0
      %2511 = vmatmul.mubr.bf16.gmra.mrb[0].mxu0 %v2408
      %v2512 = vpop.f32.mrb[0].mxu0
      %v2513 = vadd.f32 0.0, %v2512
      %v2514 = vpop.f32.mrb[0].mxu0
      %v2515 = vpop.f32.mrb[0].mxu0
      %v2516 = vadd.f32 0.0, %v2515
      %v2517 = vpop.f32.mrb[0].mxu0
      %2518 = vmatprep.mubr.bf16.mxu0 0
      %2519 = vmatmul.mubr.bf16.gmra.mrb[0].mxu0 %v2409
      %v2520 = vpop.f32.mrb[0].mxu0
      %v2521 = vadd.f32 0.0, %v2520
      %v2522 = vpop.f32.mrb[0].mxu0
      %v2523 = vpop.f32.mrb[0].mxu0
      %v2524 = vadd.f32 0.0, %v2523
      %v2525 = vpop.f32.mrb[0].mxu0
      %2526 = vdwg.mxu0
      %v2527 = vadd.f32 %v2317, %v2497
      %v2528 = vadd.f32 %v2318, %v2500
      %v2529 = vadd.f32 %v2319, %v2505
      %v2530 = vadd.f32 %v2320, %v2508
      %v2531 = vadd.f32 %v2321, %v2513
      %v2532 = vadd.f32 %v2322, %v2516
      %v2533 = vadd.f32 %v2323, %v2521
      %v2534 = vadd.f32 %v2324, %v2524
      %v2535 = vpack.c.bf16 %v2527, %v2527
      %v2536 = vpack.c.bf16 %v2528, %v2528
      %v2537 = vpack.c.bf16 %v2529, %v2529
      %v2538 = vpack.c.bf16 %v2530, %v2530
      %v2539 = vpack.c.bf16 %v2531, %v2531
      %v2540 = vpack.c.bf16 %v2532, %v2532
      %v2541 = vpack.c.bf16 %v2533, %v2533
      %v2542 = vpack.c.bf16 %v2534, %v2534
      %2543 = vst [vmem:[%s262] sm:$0xf] %v2535
      %2544 = vst [vmem:[%s262 + $0x4] sm:$0xf] %v2536
      %2545 = vst [vmem:[%s262 + $0x8] sm:$0xf] %v2537
      %2546 = vst [vmem:[%s262 + $0xc] sm:$0xf] %v2538
      %2547 = vst [vmem:[%s262 + $0x10] sm:$0xf] %v2539
      %2548 = vst [vmem:[%s262 + $0x14] sm:$0xf] %v2540
      %2549 = vst [vmem:[%s262 + $0x18] sm:$0xf] %v2541
      %2550 = vst [vmem:[%s262 + $0x1c] sm:$0xf] %v2542
      %v2551 = vadd.f32 %v2527, %v2528
      %v2552 = vadd.f32 %v2551, %v2529
      %v2553 = vadd.f32 %v2552, %v2530
      %v2554 = vadd.f32 %v2553, %v2531
      %v2555 = vadd.f32 %v2554, %v2532
      %v2556 = vadd.f32 %v2555, %v2533
      %v2557 = vadd.f32 %v2556, %v2534
      %v2558 = vrot.slane %v2557, 4
      %v2559 = vadd.f32 %v2557, %v2558
      %v2560 = vrot.slane %v2559, 2
      %v2561 = vadd.f32 %v2559, %v2560
      %v2562 = vrot.slane %v2561, 1
      %v2563 = vadd.f32 %v2561, %v2562
      %v2564 = vadd.f32 %v2563, 0.0
      %v2565 = vmul.f32 %v2527, %v2527
      %v2566 = vmul.f32 %v2528, %v2528
      %v2567 = vmul.f32 %v2529, %v2529
      %v2568 = vmul.f32 %v2530, %v2530
      %v2569 = vmul.f32 %v2531, %v2531
      %v2570 = vmul.f32 %v2532, %v2532
      %v2571 = vmul.f32 %v2533, %v2533
      %v2572 = vmul.f32 %v2534, %v2534
      %v2573 = vadd.f32 %v2565, %v2566
      %v2574 = vadd.f32 %v2573, %v2567
      %v2575 = vadd.f32 %v2574, %v2568
      %v2576 = vadd.f32 %v2575, %v2569
      %v2577 = vadd.f32 %v2576, %v2570
      %v2578 = vadd.f32 %v2577, %v2571
      %v2579 = vadd.f32 %v2578, %v2572
      %v2580 = vrot.slane %v2579, 4
      %v2581 = vadd.f32 %v2579, %v2580
      %v2582 = vrot.slane %v2581, 2
      %v2583 = vadd.f32 %v2581, %v2582
      %v2584 = vrot.slane %v2583, 1
      %v2585 = vadd.f32 %v2583, %v2584
      %v2586 = vadd.f32 %v2585, 0.0
      %2587 = vst [vmem:[%s265] sm:$0x1] %v2564
      %2588 = vst [vmem:[%s268] sm:$0x1] %v2586
      %p2589 = scmp.lt.s32.totalorder %s18, 1
      %s2590 = scalar_select %p2589, %s18, 1
      %s2591 = smul.addr %s2590, 8
      %s2592 = smul.addr %s2591, 4
      %s2593 = scalar_lea.vmem %s4, %s2592
      %p2594 = scmp.lt.s32.totalorder %s18, 1
      %s2595 = scalar_select %p2594, %s18, 1
      %s2596 = scalar_lea.vmem %s5, %s2595
      %p2597 = scmp.lt.s32.totalorder %s18, 1
      %s2598 = scalar_select %p2597, %s18, 1
      %s2599 = scalar_lea.vmem %s6, %s2598
      // Predicated region
      $region37: #{basic_block_forward.4} parent=35 // pred_check
        %p2600 = pneg %p125
      $region38: #{basic_block_forward.4} parent=35 // pred_check_branch
        %2602 = sbr.rel (%p2600) target = $region40
      $region39: #{basic_block_forward.4} parent=35 // pred_region
        _
      $region40: #{basic_block_forward.4} parent=35 // pred_fallthru
        _
      // Predicated region
      $region41: #{basic_block_forward.4} parent=35 // pred_check
        %p2603 = pneg %p151
      $region42: #{basic_block_forward.4} parent=35 // pred_check_branch
        %2605 = sbr.rel (%p2603) target = $region44
      $region43: #{basic_block_forward.4} parent=35 // pred_region
        _
      $region44: #{basic_block_forward.4} parent=35 // pred_fallthru
        _
      // Predicated region
      $region45: #{basic_block_forward.4} parent=35 // pred_check
        %p2606 = pneg %p177
      $region46: #{basic_block_forward.4} parent=35 // pred_check_branch
        %2608 = sbr.rel (%p2606) target = $region48
      $region47: #{basic_block_forward.4} parent=35 // pred_region
        _
      $region48: #{basic_block_forward.4} parent=35 // pred_fallthru
        _
    $region36: #{basic_block_forward.4} parent=5 // pred_fallthru
      _
    %p2609 = scmp.le.s32.totalorder 2, %s13
    // Predicated region
    $region49: #{basic_block_forward.4} parent=5 // pred_check
      %p2610 = pneg %p2609
    $region50: #{basic_block_forward.4} parent=5 // pred_check_branch
      %2612 = sbr.rel (%p2610) target = $region52
    $region51: #{basic_block_forward.4} parent=5 // pred_region
      %s2613 = ssub.s32 %s13, 2
      // Predicated region
      $region53: #{basic_block_forward.4} parent=51 // pred_check
        %p2614 = pneg %p131
      $region54: #{basic_block_forward.4} parent=51 // pred_check_branch
        %2616 = sbr.rel (%p2614) target = $region56
      $region55: #{basic_block_forward.4} parent=51 // pred_region
        %p2617 = scmp.lt.s32.totalorder %s19, 1
        %s2618 = scalar_select %p2617, %s19, 1
        %s2619 = smul.addr %s2618, 8
        %s2620 = smul.addr %s2619, 4
        %s2621 = scalar_lea.vmem %s4, %s2620
      $region56: #{basic_block_forward.4} parent=51 // pred_fallthru
        _
      // Predicated region
      $region57: #{basic_block_forward.4} parent=51 // pred_check
        %p2622 = pneg %p157
      $region58: #{basic_block_forward.4} parent=51 // pred_check_branch
        %2624 = sbr.rel (%p2622) target = $region60
      $region59: #{basic_block_forward.4} parent=51 // pred_region
        %p2625 = scmp.lt.s32.totalorder %s19, 1
        %s2626 = scalar_select %p2625, %s19, 1
        %s2627 = scalar_lea.vmem %s5, %s2626
      $region60: #{basic_block_forward.4} parent=51 // pred_fallthru
        _
      // Predicated region
      $region61: #{basic_block_forward.4} parent=51 // pred_check
        %p2628 = pneg %p183
      $region62: #{basic_block_forward.4} parent=51 // pred_check_branch
        %2630 = sbr.rel (%p2628) target = $region64
      $region63: #{basic_block_forward.4} parent=51 // pred_region
        %p2631 = scmp.lt.s32.totalorder %s19, 1
        %s2632 = scalar_select %p2631, %s19, 1
        %s2633 = scalar_lea.vmem %s6, %s2632
      $region64: #{basic_block_forward.4} parent=51 // pred_fallthru
        _
    $region52: #{basic_block_forward.4} parent=5 // pred_fallthru
      _
  $region6: #{basic_block_forward.4} parent=0 // loop_footer
    %s17 = sadd.s32 1, %s13
  $region7: #{basic_block_forward.4} parent=0 // loop_footer_branch
    %12 = sbr.rel target = $region3
  $region8: #{basic_block_forward.4} parent=0 // loop_exit
    _

</llo_original>
